<compile_context>
chip_gen: v6e
topology: v6e:2x2x1
jax: 0.10.0
libtpu: 0.0.40
codegen_flags: <defaults>
</compile_context>

<pallas_src>
import jax
import jax.numpy as jnp
from jax import lax
from jax.experimental import pallas as pl
from jax.experimental.pallas import tpu as pltpu

# ---------------- model hyper-params (small, forward-consistent) -------------
BATCH = 2
SEQ = 8
EMBED = 16
HIDDEN = 32
NUM_LAYERS = 2
VOCAB_SIZES = [11, 13]                       # per-feature vocab sizes
NUM_FEATURES = len(VOCAB_SIZES)
FEATURE_DIMS = [v + 1 for v in VOCAB_SIZES]  # nn.Embedding sizes
OUT_DIM = max(FEATURE_DIMS)                  # fc: hidden*F -> max(feature_dims)

H_PAD = 64                                   # per-feature hidden padded width
D_PAD = NUM_FEATURES * H_PAD                 # 128: packed (padded) state width
OUT_PAD = 128                                # lane-dense fc output width
GATE_PERM = (0, 1, 3, 2)                     # dest gate order i,f,o,g (src i,f,g,o)


# ----------------------------- fused Pallas kernel ----------------------------
def make_fused_kernel(num_layers, seq_len, batch, d):
    """d == D_PAD; all gate boundaries are multiples of 128 lanes."""

    def kernel(x0_ref, *refs):
        # refs = [wih_0, whh_0, b_0, ..., wih_{L-1}, whh_{L-1}, b_{L-1},
        #         fc_w_t, fc_b, out_ref, xbuf_scratch, hs_scratch]
        n_w = 3 * num_layers
        layer_refs = refs[:n_w]
        fcw_ref = refs[n_w]          # bf16 [D, OUT_PAD]
        fcb_ref = refs[n_w + 1]      # f32  [1, OUT_PAD]
        out_ref = refs[n_w + 2]      # f32  [B, OUT_PAD]
        xbuf_ref = refs[n_w + 3]     # f32  [T*B, D]  inter-layer, time-major
        hs_ref = refs[n_w + 4]       # f32  [B*T, D]  last layer, batch-major

        # packed, time-major input: row index = t * batch + b   (bf16)
        x = x0_ref[...]

        for l in range(num_layers):
            wih = layer_refs[3 * l][...]        # bf16 [In_p, 4D] block-diag
            whh = layer_refs[3 * l + 1][...]    # bf16 [D, 4D]    block-diag
            bias = layer_refs[3 * l + 2][...]   # f32  [1, 4D]

            # Hoisted input projection: one matmul over the full sequence.
            gx = jnp.dot(x, wih, preferred_element_type=jnp.float32) + bias

            h = jnp.zeros((batch, d), jnp.float32)
            c = jnp.zeros((batch, d), jnp.float32)
            last = (l + 1 == num_layers)
            for t in range(seq_len):                     # fully unrolled (T=8)
                gates = gx[t * batch:(t + 1) * batch, :] + jnp.dot(
                    h.astype(jnp.bfloat16), whh,
                    preferred_element_type=jnp.float32)  # [B, 4D] f32
                # 128-lane aligned gate slabs: i | f | o | g
                i_g = jax.nn.sigmoid(gates[:, 0 * d:1 * d])
                f_g = jax.nn.sigmoid(gates[:, 1 * d:2 * d])
                o_g = jax.nn.sigmoid(gates[:, 2 * d:3 * d])
                g_g = jnp.tanh(gates[:, 3 * d:4 * d])
                c = f_g * c + i_g * g_g
                h = o_g * jnp.tanh(c)
                if last:
                    # batch-major scratch: row = b * T + t  (static indices)
                    for b in range(batch):
                        row = b * seq_len + t
                        hs_ref[row:row + 1, :] = h[b:b + 1, :]
                else:
                    # time-major scratch feeding the next layer
                    xbuf_ref[t * batch:(t + 1) * batch, :] = h
            if not last:
                x = xbuf_ref[...].astype(jnp.bfloat16)   # [T*B, D] next input
            # TODO(synk): on v7x a weight-stationary explicit-MXU path
            # (pltpu.matmul_push_rhs once per layer + matmul_acc_lhs per step)
            # would avoid re-pushing whh 8x; kept on jnp.dot for portability.

        # Dot-product attention + mean pooling over time, per batch element.
        # Each xb is a tile-aligned, contiguous [T, D] slice of the scratch.
        inv_t = 1.0 / seq_len
        fcw = fcw_ref[...]
        fcb = fcb_ref[...]
        for b in range(batch):
            xb = hs_ref[b * seq_len:(b + 1) * seq_len, :]            # [T, D]
            s = lax.dot_general(xb, xb, (((1,), (1,)), ((), ())),
                                preferred_element_type=jnp.float32)  # [T, T]
            s = s - jnp.max(s, axis=-1, keepdims=True)
            e = jnp.exp(s)
            w = e * pl.reciprocal(jnp.sum(e, axis=-1, keepdims=True), approx=True)
            wm = jnp.sum(w, axis=0, keepdims=True) * inv_t           # [1, T]
            ctx = jnp.dot(wm, xb, preferred_element_type=jnp.float32)  # [1, D]
            out_ref[b:b + 1, :] = (jnp.dot(ctx.astype(jnp.bfloat16), fcw,
                                           preferred_element_type=jnp.float32)
                                   + fcb)

    return kernel


def fused_forward(x0, packed_layers, fc_w_t_pad, fc_b_pad):
    args = [x0]
    for layer in packed_layers:
        args.extend(layer)
    args.extend([fc_w_t_pad, fc_b_pad])

    def full_spec(a):
        return pl.BlockSpec(a.shape, lambda: (0,) * a.ndim)

    kernel = make_fused_kernel(NUM_LAYERS, SEQ, BATCH, D_PAD)
    out = pl.pallas_call(
        kernel,
        out_shape=jax.ShapeDtypeStruct((BATCH, OUT_PAD), jnp.float32),
        in_specs=[full_spec(a) for a in args],
        out_specs=pl.BlockSpec((BATCH, OUT_PAD), lambda: (0, 0)),
        scratch_shapes=[
            pltpu.VMEM((SEQ * BATCH, D_PAD), jnp.float32),   # inter-layer acts
            pltpu.VMEM((BATCH * SEQ, D_PAD), jnp.float32),   # attention slab
        ],
        # No grid: whole working set < 100 KB, single invocation.  If B/T grow,
        # add grid=(B//bt,) + dimension_semantics=("parallel",) for v7x's 2 TCs.
    )(*args)
    return out[:, :OUT_DIM]


# ----------------------------- weight packing ---------------------------------
def _pack_lstm_layer(per_feature, in_stride):
    """Pack per-feature LSTM weights of one layer into block-diagonal,
    gate-major (i|f|o|g) matrices on the 128-lane padded packed state.

    per_feature: list of (wih [4H, In], whh [4H, H], b_ih, b_hh) per feature.
    in_stride:   lane stride per feature in the layer input
                 (EMBED for layer 0, H_PAD for deeper layers)."""
    num_f = len(per_feature)
    hid = per_feature[0][1].shape[1]
    in_dim = per_feature[0][0].shape[1]
    in_total = num_f * in_stride
    wih_p = jnp.zeros((in_total, 4 * D_PAD), jnp.float32)
    whh_p = jnp.zeros((D_PAD, 4 * D_PAD), jnp.float32)
    b_p = jnp.zeros((1, 4 * D_PAD), jnp.float32)
    for f, (wih, whh, b_ih, b_hh) in enumerate(per_feature):
        wih_t = wih.T                                   # [In, 4H] cols = i,f,g,o
        whh_t = whh.T                                   # [H, 4H]
        bias = b_ih + b_hh
        for k_dst, k_src in enumerate(GATE_PERM):
            dst = slice(k_dst * D_PAD + f * H_PAD,
                        k_dst * D_PAD + f * H_PAD + hid)
            src = slice(k_src * hid, (k_src + 1) * hid)
            wih_p = wih_p.at[f * in_stride:f * in_stride + in_dim, dst].set(
                wih_t[:, src])
            whh_p = whh_p.at[f * H_PAD:f * H_PAD + hid, dst].set(whh_t[:, src])
            b_p = b_p.at[0, dst].set(bias[src])
    # bf16 MXU operands; bias stays f32 (added post-accumulation).
    return wih_p.astype(jnp.bfloat16), whh_p.astype(jnp.bfloat16), b_p


# ----------------------------- parameters -------------------------------------
def init_params(key):
    k_emb, k_lstm, k_fc = jax.random.split(key, 3)
    params = {"emb": [], "lstm_raw": [], "packed": []}

    emb_keys = jax.random.split(k_emb, NUM_FEATURES)
    for i, fd in enumerate(FEATURE_DIMS):
        params["emb"].append(jax.random.normal(emb_keys[i], (fd, EMBED), jnp.float32))

    bound = 1.0 / float(HIDDEN) ** 0.5
    lstm_keys = jax.random.split(k_lstm, NUM_FEATURES * NUM_LAYERS * 4)
    kk = 0
    for _ in range(NUM_FEATURES):
        layers = []
        for l in range(NUM_LAYERS):
            in_dim = EMBED if l == 0 else HIDDEN
            wih = jax.random.uniform(lstm_keys[kk], (4 * HIDDEN, in_dim),
                                     jnp.float32, -bound, bound); kk += 1
            whh = jax.random.uniform(lstm_keys[kk], (4 * HIDDEN, HIDDEN),
                                     jnp.float32, -bound, bound); kk += 1
            b_ih = jax.random.uniform(lstm_keys[kk], (4 * HIDDEN,),
                                      jnp.float32, -bound, bound); kk += 1
            b_hh = jax.random.uniform(lstm_keys[kk], (4 * HIDDEN,),
                                      jnp.float32, -bound, bound); kk += 1
            layers.append((wih, whh, b_ih, b_hh))
        params["lstm_raw"].append(layers)

    for l in range(NUM_LAYERS):
        per_feature = [params["lstm_raw"][f][l] for f in range(NUM_FEATURES)]
        stride = EMBED if l == 0 else H_PAD
        params["packed"].append(_pack_lstm_layer(per_feature, stride))

    D = HIDDEN * NUM_FEATURES
    fcb_bound = 1.0 / float(D) ** 0.5
    kw, kb = jax.random.split(k_fc)
    fc_w = jax.random.uniform(kw, (OUT_DIM, D), jnp.float32, -fcb_bound, fcb_bound)
    fc_b = jax.random.uniform(kb, (OUT_DIM,), jnp.float32, -fcb_bound, fcb_bound)
    params["fc_w"] = fc_w          # raw (for the pure-JAX reference)
    params["fc_b"] = fc_b

    # lane-dense, zero-padded fc for the kernel (padded h lanes hit zero rows)
    fc_w_t_pad = jnp.zeros((D_PAD, OUT_PAD), jnp.float32)
    fc_wt = fc_w.T                                               # [D, OUT_DIM]
    for f in range(NUM_FEATURES):
        fc_w_t_pad = fc_w_t_pad.at[
            f * H_PAD:f * H_PAD + HIDDEN, :OUT_DIM].set(
            fc_wt[f * HIDDEN:(f + 1) * HIDDEN, :])
    params["fc_w_t_pad"] = fc_w_t_pad.astype(jnp.bfloat16)
    params["fc_b_pad"] = jnp.zeros((1, OUT_PAD), jnp.float32).at[0, :OUT_DIM].set(fc_b)
    return params


# ----------------------------- forward ----------------------------------------
def forward(params, inputs):
    """inputs: int32 [B, num_features, T] -> float32 [B, OUT_DIM]."""
    cols = []
    for i in range(NUM_FEATURES):
        emb = jnp.take(params["emb"][i], inputs[:, i, :], axis=0)   # [B, T, E]
        cols.append(jnp.transpose(emb, (1, 0, 2)).reshape(SEQ * BATCH, EMBED))
    x0 = jnp.concatenate(cols, axis=-1).astype(jnp.bfloat16)        # [T*B, F*E]
    return fused_forward(x0, params["packed"],
                         params["fc_w_t_pad"], params["fc_b_pad"])


# ----------------------------- pure-JAX reference ------------------------------
def _lstm_layer_ref(x_tm, wih, whh, b_ih, b_hh):
    H = whh.shape[1]
    B = x_tm.shape[1]
    wih_t, whh_t = wih.T, whh.T
    bias = (b_ih + b_hh)[None, :]

    def step(carry, x_t):
        h, c = carry
        gates = (jnp.dot(x_t, wih_t, precision=lax.Precision.HIGHEST)
                 + jnp.dot(h, whh_t, precision=lax.Precision.HIGHEST) + bias)
        i = jax.nn.sigmoid(gates[:, :H]); f = jax.nn.sigmoid(gates[:, H:2 * H])
        g = jnp.tanh(gates[:, 2 * H:3 * H]); o = jax.nn.sigmoid(gates[:, 3 * H:])
        c = f * c + i * g
        h = o * jnp.tanh(c)
        return (h, c), h

    (_, _), ys = lax.scan(step, (jnp.zeros((B, H)), jnp.zeros((B, H))), x_tm)
    return ys


def forward_ref(params, inputs):
    outs = []
    for i in range(NUM_FEATURES):
        emb = jnp.take(params["emb"][i], inputs[:, i, :], axis=0)
        x = jnp.transpose(emb, (1, 0, 2))
        for l in range(NUM_LAYERS):
            wih, whh, b_ih, b_hh = params["lstm_raw"][i][l]
            x = _lstm_layer_ref(x, wih, whh, b_ih, b_hh)
        outs.append(jnp.transpose(x, (1, 0, 2)))
    combined = jnp.concatenate(outs, axis=-1)                        # [B, T, H*F]
    scores = jnp.einsum("btd,bsd->bts", combined, combined,
                        precision=lax.Precision.HIGHEST)
    w = jax.nn.softmax(scores, axis=-1)
    ctx = jnp.einsum("bts,bsd->btd", w, combined,
                     precision=lax.Precision.HIGHEST).mean(axis=1)
    return (jnp.dot(ctx, params["fc_w"].T, precision=lax.Precision.HIGHEST)
            + params["fc_b"][None, :])


# ----------------------------- main ---------------------------------------------
if __name__ == "__main__":
    key = jax.random.PRNGKey(0)
    k_params, k_in = jax.random.split(key)
    params = init_params(k_params)

    in_keys = jax.random.split(k_in, NUM_FEATURES)
    cols = [jax.random.randint(in_keys[i], (BATCH, 1, SEQ), 0, FEATURE_DIMS[i],
                               dtype=jnp.int32) for i in range(NUM_FEATURES)]
    inputs = jnp.concatenate(cols, axis=1)                           # [B, F, T] int32

    out = jax.jit(forward)(params, inputs)
    out = jax.block_until_ready(out)

    ref = forward_ref(params, inputs)
    max_err = float(jnp.max(jnp.abs(out - ref)))
    assert out.shape == (BATCH, OUT_DIM), out.shape
    # tolerance covers bf16 MXU operands (f32 accumulation) + approx reciprocal
    assert max_err < 3e-2, f"mismatch vs reference: {max_err}"

    print("KERNEL_OK")
</pallas_src>

<mosaic_0001>
module attributes {stable_mosaic.version = 11 : i64} {
  func.func @kernel(%arg0: memref<16x32xbf16, #tpu.memory_space<vmem>>, %arg1: memref<32x512xbf16, #tpu.memory_space<vmem>>, %arg2: memref<128x512xbf16, #tpu.memory_space<vmem>>, %arg3: memref<1x512xf32, #tpu.memory_space<vmem>>, %arg4: memref<128x512xbf16, #tpu.memory_space<vmem>>, %arg5: memref<128x512xbf16, #tpu.memory_space<vmem>>, %arg6: memref<1x512xf32, #tpu.memory_space<vmem>>, %arg7: memref<128x128xbf16, #tpu.memory_space<vmem>>, %arg8: memref<1x128xf32, #tpu.memory_space<vmem>>, %arg9: memref<2x128xf32, #tpu.memory_space<vmem>>, %arg10: memref<16x128xf32, #tpu.memory_space<vmem>>, %arg11: memref<16x128xf32, #tpu.memory_space<vmem>>) attributes {dimension_semantics = [], scalar_prefetch = 0 : i64, scratch_operands = 2 : i64, tpu.core_type = #tpu.core_type<tc>} {
    %c0 = arith.constant 0 : index
    %c0_0 = arith.constant 0 : index
    %0 = vector.load %arg0[%c0, %c0_0] : memref<16x32xbf16, #tpu.memory_space<vmem>>, vector<16x32xbf16>
    %c0_1 = arith.constant 0 : index
    %c0_2 = arith.constant 0 : index
    %1 = vector.load %arg1[%c0_1, %c0_2] : memref<32x512xbf16, #tpu.memory_space<vmem>>, vector<32x512xbf16>
    %c0_3 = arith.constant 0 : index
    %c0_4 = arith.constant 0 : index
    %2 = vector.load %arg2[%c0_3, %c0_4] : memref<128x512xbf16, #tpu.memory_space<vmem>>, vector<128x512xbf16>
    %c0_5 = arith.constant 0 : index
    %c0_6 = arith.constant 0 : index
    %3 = vector.load %arg3[%c0_5, %c0_6] : memref<1x512xf32, #tpu.memory_space<vmem>>, vector<1x512xf32>
    %cst = arith.constant dense<0.000000e+00> : vector<16x512xf32>
    %4 = tpu.matmul %0, %1, %cst {dimension_numbers = #tpu.dot_dimension_numbers<[1], [0], [0], [1], [0, 0, 1, 1], [], []>} : vector<16x32xbf16>, vector<32x512xbf16>, vector<16x512xf32> -> vector<16x512xf32>
    %5 = vector.broadcast %3 : vector<1x512xf32> to vector<16x512xf32>
    %6 = arith.addf %4, %5 : vector<16x512xf32>
    %cst_7 = arith.constant 0.000000e+00 : f32
    %7 = vector.broadcast %cst_7 : f32 to vector<2x128xf32>
    %cst_8 = arith.constant 0.000000e+00 : f32
    %8 = vector.broadcast %cst_8 : f32 to vector<2x128xf32>
    %9 = vector.extract_strided_slice %6 {offsets = [0, 0], sizes = [2, 512], strides = [1, 1]} : vector<16x512xf32> to vector<2x512xf32>
    %10 = arith.truncf %7 : vector<2x128xf32> to vector<2x128xbf16>
    %cst_9 = arith.constant dense<0.000000e+00> : vector<2x512xf32>
    %11 = tpu.matmul %10, %2, %cst_9 {dimension_numbers = #tpu.dot_dimension_numbers<[1], [0], [0], [1], [0, 0, 1, 1], [], []>} : vector<2x128xbf16>, vector<128x512xbf16>, vector<2x512xf32> -> vector<2x512xf32>
    %12 = arith.addf %9, %11 : vector<2x512xf32>
    %13 = vector.extract_strided_slice %12 {offsets = [0, 0], sizes = [2, 128], strides = [1, 1]} : vector<2x512xf32> to vector<2x128xf32>
    %14 = arith.negf %13 : vector<2x128xf32>
    %15 = math.exp %14 : vector<2x128xf32>
    %cst_10 = arith.constant 1.000000e+00 : f32
    %16 = vector.broadcast %cst_10 : f32 to vector<2x128xf32>
    %17 = arith.addf %16, %15 : vector<2x128xf32>
    %18 = arith.divf %16, %17 : vector<2x128xf32>
    %19 = vector.extract_strided_slice %12 {offsets = [0, 128], sizes = [2, 128], strides = [1, 1]} : vector<2x512xf32> to vector<2x128xf32>
    %20 = arith.negf %19 : vector<2x128xf32>
    %21 = math.exp %20 : vector<2x128xf32>
    %cst_11 = arith.constant 1.000000e+00 : f32
    %22 = vector.broadcast %cst_11 : f32 to vector<2x128xf32>
    %23 = arith.addf %22, %21 : vector<2x128xf32>
    %24 = arith.divf %22, %23 : vector<2x128xf32>
    %25 = vector.extract_strided_slice %12 {offsets = [0, 256], sizes = [2, 128], strides = [1, 1]} : vector<2x512xf32> to vector<2x128xf32>
    %26 = arith.negf %25 : vector<2x128xf32>
    %27 = math.exp %26 : vector<2x128xf32>
    %cst_12 = arith.constant 1.000000e+00 : f32
    %28 = vector.broadcast %cst_12 : f32 to vector<2x128xf32>
    %29 = arith.addf %28, %27 : vector<2x128xf32>
    %30 = arith.divf %28, %29 : vector<2x128xf32>
    %31 = vector.extract_strided_slice %12 {offsets = [0, 384], sizes = [2, 128], strides = [1, 1]} : vector<2x512xf32> to vector<2x128xf32>
    %32 = math.tanh %31 : vector<2x128xf32>
    %33 = arith.mulf %24, %8 : vector<2x128xf32>
    %34 = arith.mulf %18, %32 : vector<2x128xf32>
    %35 = arith.addf %33, %34 : vector<2x128xf32>
    %36 = math.tanh %35 : vector<2x128xf32>
    %37 = arith.mulf %30, %36 : vector<2x128xf32>
    %c0_13 = arith.constant 0 : index
    %c0_14 = arith.constant 0 : index
    %38 = vector.load %arg10[%c0_13, %c0_14] : memref<16x128xf32, #tpu.memory_space<vmem>>, vector<2x128xf32>
    tpu.vector_store %arg10[%c0_13, %c0_14], %37 {strides = array<i32>} : memref<16x128xf32, #tpu.memory_space<vmem>>, vector<2x128xf32>,
    %39 = vector.extract_strided_slice %6 {offsets = [2, 0], sizes = [2, 512], strides = [1, 1]} : vector<16x512xf32> to vector<2x512xf32>
    %40 = arith.truncf %37 : vector<2x128xf32> to vector<2x128xbf16>
    %cst_15 = arith.constant dense<0.000000e+00> : vector<2x512xf32>
    %41 = tpu.matmul %40, %2, %cst_15 {dimension_numbers = #tpu.dot_dimension_numbers<[1], [0], [0], [1], [0, 0, 1, 1], [], []>} : vector<2x128xbf16>, vector<128x512xbf16>, vector<2x512xf32> -> vector<2x512xf32>
    %42 = arith.addf %39, %41 : vector<2x512xf32>
    %43 = vector.extract_strided_slice %42 {offsets = [0, 0], sizes = [2, 128], strides = [1, 1]} : vector<2x512xf32> to vector<2x128xf32>
    %44 = arith.negf %43 : vector<2x128xf32>
    %45 = math.exp %44 : vector<2x128xf32>
    %cst_16 = arith.constant 1.000000e+00 : f32
    %46 = vector.broadcast %cst_16 : f32 to vector<2x128xf32>
    %47 = arith.addf %46, %45 : vector<2x128xf32>
    %48 = arith.divf %46, %47 : vector<2x128xf32>
    %49 = vector.extract_strided_slice %42 {offsets = [0, 128], sizes = [2, 128], strides = [1, 1]} : vector<2x512xf32> to vector<2x128xf32>
    %50 = arith.negf %49 : vector<2x128xf32>
    %51 = math.exp %50 : vector<2x128xf32>
    %cst_17 = arith.constant 1.000000e+00 : f32
    %52 = vector.broadcast %cst_17 : f32 to vector<2x128xf32>
    %53 = arith.addf %52, %51 : vector<2x128xf32>
    %54 = arith.divf %52, %53 : vector<2x128xf32>
    %55 = vector.extract_strided_slice %42 {offsets = [0, 256], sizes = [2, 128], strides = [1, 1]} : vector<2x512xf32> to vector<2x128xf32>
    %56 = arith.negf %55 : vector<2x128xf32>
    %57 = math.exp %56 : vector<2x128xf32>
    %cst_18 = arith.constant 1.000000e+00 : f32
    %58 = vector.broadcast %cst_18 : f32 to vector<2x128xf32>
    %59 = arith.addf %58, %57 : vector<2x128xf32>
    %60 = arith.divf %58, %59 : vector<2x128xf32>
    %61 = vector.extract_strided_slice %42 {offsets = [0, 384], sizes = [2, 128], strides = [1, 1]} : vector<2x512xf32> to vector<2x128xf32>
    %62 = math.tanh %61 : vector<2x128xf32>
    %63 = arith.mulf %54, %35 : vector<2x128xf32>
    %64 = arith.mulf %48, %62 : vector<2x128xf32>
    %65 = arith.addf %63, %64 : vector<2x128xf32>
    %66 = math.tanh %65 : vector<2x128xf32>
    %67 = arith.mulf %60, %66 : vector<2x128xf32>
    %c2 = arith.constant 2 : index
    %c0_19 = arith.constant 0 : index
    %68 = vector.load %arg10[%c2, %c0_19] : memref<16x128xf32, #tpu.memory_space<vmem>>, vector<2x128xf32>
    tpu.vector_store %arg10[%c2, %c0_19], %67 {strides = array<i32>} : memref<16x128xf32, #tpu.memory_space<vmem>>, vector<2x128xf32>,
    %69 = vector.extract_strided_slice %6 {offsets = [4, 0], sizes = [2, 512], strides = [1, 1]} : vector<16x512xf32> to vector<2x512xf32>
    %70 = arith.truncf %67 : vector<2x128xf32> to vector<2x128xbf16>
    %cst_20 = arith.constant dense<0.000000e+00> : vector<2x512xf32>
    %71 = tpu.matmul %70, %2, %cst_20 {dimension_numbers = #tpu.dot_dimension_numbers<[1], [0], [0], [1], [0, 0, 1, 1], [], []>} : vector<2x128xbf16>, vector<128x512xbf16>, vector<2x512xf32> -> vector<2x512xf32>
    %72 = arith.addf %69, %71 : vector<2x512xf32>
    %73 = vector.extract_strided_slice %72 {offsets = [0, 0], sizes = [2, 128], strides = [1, 1]} : vector<2x512xf32> to vector<2x128xf32>
    %74 = arith.negf %73 : vector<2x128xf32>
    %75 = math.exp %74 : vector<2x128xf32>
    %cst_21 = arith.constant 1.000000e+00 : f32
    %76 = vector.broadcast %cst_21 : f32 to vector<2x128xf32>
    %77 = arith.addf %76, %75 : vector<2x128xf32>
    %78 = arith.divf %76, %77 : vector<2x128xf32>
    %79 = vector.extract_strided_slice %72 {offsets = [0, 128], sizes = [2, 128], strides = [1, 1]} : vector<2x512xf32> to vector<2x128xf32>
    %80 = arith.negf %79 : vector<2x128xf32>
    %81 = math.exp %80 : vector<2x128xf32>
    %cst_22 = arith.constant 1.000000e+00 : f32
    %82 = vector.broadcast %cst_22 : f32 to vector<2x128xf32>
    %83 = arith.addf %82, %81 : vector<2x128xf32>
    %84 = arith.divf %82, %83 : vector<2x128xf32>
    %85 = vector.extract_strided_slice %72 {offsets = [0, 256], sizes = [2, 128], strides = [1, 1]} : vector<2x512xf32> to vector<2x128xf32>
    %86 = arith.negf %85 : vector<2x128xf32>
    %87 = math.exp %86 : vector<2x128xf32>
    %cst_23 = arith.constant 1.000000e+00 : f32
    %88 = vector.broadcast %cst_23 : f32 to vector<2x128xf32>
    %89 = arith.addf %88, %87 : vector<2x128xf32>
    %90 = arith.divf %88, %89 : vector<2x128xf32>
    %91 = vector.extract_strided_slice %72 {offsets = [0, 384], sizes = [2, 128], strides = [1, 1]} : vector<2x512xf32> to vector<2x128xf32>
    %92 = math.tanh %91 : vector<2x128xf32>
    %93 = arith.mulf %84, %65 : vector<2x128xf32>
    %94 = arith.mulf %78, %92 : vector<2x128xf32>
    %95 = arith.addf %93, %94 : vector<2x128xf32>
    %96 = math.tanh %95 : vector<2x128xf32>
    %97 = arith.mulf %90, %96 : vector<2x128xf32>
    %c4 = arith.constant 4 : index
    %c0_24 = arith.constant 0 : index
    %98 = vector.load %arg10[%c4, %c0_24] : memref<16x128xf32, #tpu.memory_space<vmem>>, vector<2x128xf32>
    tpu.vector_store %arg10[%c4, %c0_24], %97 {strides = array<i32>} : memref<16x128xf32, #tpu.memory_space<vmem>>, vector<2x128xf32>,
    %99 = vector.extract_strided_slice %6 {offsets = [6, 0], sizes = [2, 512], strides = [1, 1]} : vector<16x512xf32> to vector<2x512xf32>
    %100 = arith.truncf %97 : vector<2x128xf32> to vector<2x128xbf16>
    %cst_25 = arith.constant dense<0.000000e+00> : vector<2x512xf32>
    %101 = tpu.matmul %100, %2, %cst_25 {dimension_numbers = #tpu.dot_dimension_numbers<[1], [0], [0], [1], [0, 0, 1, 1], [], []>} : vector<2x128xbf16>, vector<128x512xbf16>, vector<2x512xf32> -> vector<2x512xf32>
    %102 = arith.addf %99, %101 : vector<2x512xf32>
    %103 = vector.extract_strided_slice %102 {offsets = [0, 0], sizes = [2, 128], strides = [1, 1]} : vector<2x512xf32> to vector<2x128xf32>
    %104 = arith.negf %103 : vector<2x128xf32>
    %105 = math.exp %104 : vector<2x128xf32>
    %cst_26 = arith.constant 1.000000e+00 : f32
    %106 = vector.broadcast %cst_26 : f32 to vector<2x128xf32>
    %107 = arith.addf %106, %105 : vector<2x128xf32>
    %108 = arith.divf %106, %107 : vector<2x128xf32>
    %109 = vector.extract_strided_slice %102 {offsets = [0, 128], sizes = [2, 128], strides = [1, 1]} : vector<2x512xf32> to vector<2x128xf32>
    %110 = arith.negf %109 : vector<2x128xf32>
    %111 = math.exp %110 : vector<2x128xf32>
    %cst_27 = arith.constant 1.000000e+00 : f32
    %112 = vector.broadcast %cst_27 : f32 to vector<2x128xf32>
    %113 = arith.addf %112, %111 : vector<2x128xf32>
    %114 = arith.divf %112, %113 : vector<2x128xf32>
    %115 = vector.extract_strided_slice %102 {offsets = [0, 256], sizes = [2, 128], strides = [1, 1]} : vector<2x512xf32> to vector<2x128xf32>
    %116 = arith.negf %115 : vector<2x128xf32>
    %117 = math.exp %116 : vector<2x128xf32>
    %cst_28 = arith.constant 1.000000e+00 : f32
    %118 = vector.broadcast %cst_28 : f32 to vector<2x128xf32>
    %119 = arith.addf %118, %117 : vector<2x128xf32>
    %120 = arith.divf %118, %119 : vector<2x128xf32>
    %121 = vector.extract_strided_slice %102 {offsets = [0, 384], sizes = [2, 128], strides = [1, 1]} : vector<2x512xf32> to vector<2x128xf32>
    %122 = math.tanh %121 : vector<2x128xf32>
    %123 = arith.mulf %114, %95 : vector<2x128xf32>
    %124 = arith.mulf %108, %122 : vector<2x128xf32>
    %125 = arith.addf %123, %124 : vector<2x128xf32>
    %126 = math.tanh %125 : vector<2x128xf32>
    %127 = arith.mulf %120, %126 : vector<2x128xf32>
    %c6 = arith.constant 6 : index
    %c0_29 = arith.constant 0 : index
    %128 = vector.load %arg10[%c6, %c0_29] : memref<16x128xf32, #tpu.memory_space<vmem>>, vector<2x128xf32>
    tpu.vector_store %arg10[%c6, %c0_29], %127 {strides = array<i32>} : memref<16x128xf32, #tpu.memory_space<vmem>>, vector<2x128xf32>,
    %129 = vector.extract_strided_slice %6 {offsets = [8, 0], sizes = [2, 512], strides = [1, 1]} : vector<16x512xf32> to vector<2x512xf32>
    %130 = arith.truncf %127 : vector<2x128xf32> to vector<2x128xbf16>
    %cst_30 = arith.constant dense<0.000000e+00> : vector<2x512xf32>
    %131 = tpu.matmul %130, %2, %cst_30 {dimension_numbers = #tpu.dot_dimension_numbers<[1], [0], [0], [1], [0, 0, 1, 1], [], []>} : vector<2x128xbf16>, vector<128x512xbf16>, vector<2x512xf32> -> vector<2x512xf32>
    %132 = arith.addf %129, %131 : vector<2x512xf32>
    %133 = vector.extract_strided_slice %132 {offsets = [0, 0], sizes = [2, 128], strides = [1, 1]} : vector<2x512xf32> to vector<2x128xf32>
    %134 = arith.negf %133 : vector<2x128xf32>
    %135 = math.exp %134 : vector<2x128xf32>
    %cst_31 = arith.constant 1.000000e+00 : f32
    %136 = vector.broadcast %cst_31 : f32 to vector<2x128xf32>
    %137 = arith.addf %136, %135 : vector<2x128xf32>
    %138 = arith.divf %136, %137 : vector<2x128xf32>
    %139 = vector.extract_strided_slice %132 {offsets = [0, 128], sizes = [2, 128], strides = [1, 1]} : vector<2x512xf32> to vector<2x128xf32>
    %140 = arith.negf %139 : vector<2x128xf32>
    %141 = math.exp %140 : vector<2x128xf32>
    %cst_32 = arith.constant 1.000000e+00 : f32
    %142 = vector.broadcast %cst_32 : f32 to vector<2x128xf32>
    %143 = arith.addf %142, %141 : vector<2x128xf32>
    %144 = arith.divf %142, %143 : vector<2x128xf32>
    %145 = vector.extract_strided_slice %132 {offsets = [0, 256], sizes = [2, 128], strides = [1, 1]} : vector<2x512xf32> to vector<2x128xf32>
    %146 = arith.negf %145 : vector<2x128xf32>
    %147 = math.exp %146 : vector<2x128xf32>
    %cst_33 = arith.constant 1.000000e+00 : f32
    %148 = vector.broadcast %cst_33 : f32 to vector<2x128xf32>
    %149 = arith.addf %148, %147 : vector<2x128xf32>
    %150 = arith.divf %148, %149 : vector<2x128xf32>
    %151 = vector.extract_strided_slice %132 {offsets = [0, 384], sizes = [2, 128], strides = [1, 1]} : vector<2x512xf32> to vector<2x128xf32>
    %152 = math.tanh %151 : vector<2x128xf32>
    %153 = arith.mulf %144, %125 : vector<2x128xf32>
    %154 = arith.mulf %138, %152 : vector<2x128xf32>
    %155 = arith.addf %153, %154 : vector<2x128xf32>
    %156 = math.tanh %155 : vector<2x128xf32>
    %157 = arith.mulf %150, %156 : vector<2x128xf32>
    %c8 = arith.constant 8 : index
    %c0_34 = arith.constant 0 : index
    %158 = vector.load %arg10[%c8, %c0_34] : memref<16x128xf32, #tpu.memory_space<vmem>>, vector<2x128xf32>
    tpu.vector_store %arg10[%c8, %c0_34], %157 {strides = array<i32>} : memref<16x128xf32, #tpu.memory_space<vmem>>, vector<2x128xf32>,
    %159 = vector.extract_strided_slice %6 {offsets = [10, 0], sizes = [2, 512], strides = [1, 1]} : vector<16x512xf32> to vector<2x512xf32>
    %160 = arith.truncf %157 : vector<2x128xf32> to vector<2x128xbf16>
    %cst_35 = arith.constant dense<0.000000e+00> : vector<2x512xf32>
    %161 = tpu.matmul %160, %2, %cst_35 {dimension_numbers = #tpu.dot_dimension_numbers<[1], [0], [0], [1], [0, 0, 1, 1], [], []>} : vector<2x128xbf16>, vector<128x512xbf16>, vector<2x512xf32> -> vector<2x512xf32>
    %162 = arith.addf %159, %161 : vector<2x512xf32>
    %163 = vector.extract_strided_slice %162 {offsets = [0, 0], sizes = [2, 128], strides = [1, 1]} : vector<2x512xf32> to vector<2x128xf32>
    %164 = arith.negf %163 : vector<2x128xf32>
    %165 = math.exp %164 : vector<2x128xf32>
    %cst_36 = arith.constant 1.000000e+00 : f32
    %166 = vector.broadcast %cst_36 : f32 to vector<2x128xf32>
    %167 = arith.addf %166, %165 : vector<2x128xf32>
    %168 = arith.divf %166, %167 : vector<2x128xf32>
    %169 = vector.extract_strided_slice %162 {offsets = [0, 128], sizes = [2, 128], strides = [1, 1]} : vector<2x512xf32> to vector<2x128xf32>
    %170 = arith.negf %169 : vector<2x128xf32>
    %171 = math.exp %170 : vector<2x128xf32>
    %cst_37 = arith.constant 1.000000e+00 : f32
    %172 = vector.broadcast %cst_37 : f32 to vector<2x128xf32>
    %173 = arith.addf %172, %171 : vector<2x128xf32>
    %174 = arith.divf %172, %173 : vector<2x128xf32>
    %175 = vector.extract_strided_slice %162 {offsets = [0, 256], sizes = [2, 128], strides = [1, 1]} : vector<2x512xf32> to vector<2x128xf32>
    %176 = arith.negf %175 : vector<2x128xf32>
    %177 = math.exp %176 : vector<2x128xf32>
    %cst_38 = arith.constant 1.000000e+00 : f32
    %178 = vector.broadcast %cst_38 : f32 to vector<2x128xf32>
    %179 = arith.addf %178, %177 : vector<2x128xf32>
    %180 = arith.divf %178, %179 : vector<2x128xf32>
    %181 = vector.extract_strided_slice %162 {offsets = [0, 384], sizes = [2, 128], strides = [1, 1]} : vector<2x512xf32> to vector<2x128xf32>
    %182 = math.tanh %181 : vector<2x128xf32>
    %183 = arith.mulf %174, %155 : vector<2x128xf32>
    %184 = arith.mulf %168, %182 : vector<2x128xf32>
    %185 = arith.addf %183, %184 : vector<2x128xf32>
    %186 = math.tanh %185 : vector<2x128xf32>
    %187 = arith.mulf %180, %186 : vector<2x128xf32>
    %c10 = arith.constant 10 : index
    %c0_39 = arith.constant 0 : index
    %188 = vector.load %arg10[%c10, %c0_39] : memref<16x128xf32, #tpu.memory_space<vmem>>, vector<2x128xf32>
    tpu.vector_store %arg10[%c10, %c0_39], %187 {strides = array<i32>} : memref<16x128xf32, #tpu.memory_space<vmem>>, vector<2x128xf32>,
    %189 = vector.extract_strided_slice %6 {offsets = [12, 0], sizes = [2, 512], strides = [1, 1]} : vector<16x512xf32> to vector<2x512xf32>
    %190 = arith.truncf %187 : vector<2x128xf32> to vector<2x128xbf16>
    %cst_40 = arith.constant dense<0.000000e+00> : vector<2x512xf32>
    %191 = tpu.matmul %190, %2, %cst_40 {dimension_numbers = #tpu.dot_dimension_numbers<[1], [0], [0], [1], [0, 0, 1, 1], [], []>} : vector<2x128xbf16>, vector<128x512xbf16>, vector<2x512xf32> -> vector<2x512xf32>
    %192 = arith.addf %189, %191 : vector<2x512xf32>
    %193 = vector.extract_strided_slice %192 {offsets = [0, 0], sizes = [2, 128], strides = [1, 1]} : vector<2x512xf32> to vector<2x128xf32>
    %194 = arith.negf %193 : vector<2x128xf32>
    %195 = math.exp %194 : vector<2x128xf32>
    %cst_41 = arith.constant 1.000000e+00 : f32
    %196 = vector.broadcast %cst_41 : f32 to vector<2x128xf32>
    %197 = arith.addf %196, %195 : vector<2x128xf32>
    %198 = arith.divf %196, %197 : vector<2x128xf32>
    %199 = vector.extract_strided_slice %192 {offsets = [0, 128], sizes = [2, 128], strides = [1, 1]} : vector<2x512xf32> to vector<2x128xf32>
    %200 = arith.negf %199 : vector<2x128xf32>
    %201 = math.exp %200 : vector<2x128xf32>
    %cst_42 = arith.constant 1.000000e+00 : f32
    %202 = vector.broadcast %cst_42 : f32 to vector<2x128xf32>
    %203 = arith.addf %202, %201 : vector<2x128xf32>
    %204 = arith.divf %202, %203 : vector<2x128xf32>
    %205 = vector.extract_strided_slice %192 {offsets = [0, 256], sizes = [2, 128], strides = [1, 1]} : vector<2x512xf32> to vector<2x128xf32>
    %206 = arith.negf %205 : vector<2x128xf32>
    %207 = math.exp %206 : vector<2x128xf32>
    %cst_43 = arith.constant 1.000000e+00 : f32
    %208 = vector.broadcast %cst_43 : f32 to vector<2x128xf32>
    %209 = arith.addf %208, %207 : vector<2x128xf32>
    %210 = arith.divf %208, %209 : vector<2x128xf32>
    %211 = vector.extract_strided_slice %192 {offsets = [0, 384], sizes = [2, 128], strides = [1, 1]} : vector<2x512xf32> to vector<2x128xf32>
    %212 = math.tanh %211 : vector<2x128xf32>
    %213 = arith.mulf %204, %185 : vector<2x128xf32>
    %214 = arith.mulf %198, %212 : vector<2x128xf32>
    %215 = arith.addf %213, %214 : vector<2x128xf32>
    %216 = math.tanh %215 : vector<2x128xf32>
    %217 = arith.mulf %210, %216 : vector<2x128xf32>
    %c12 = arith.constant 12 : index
    %c0_44 = arith.constant 0 : index
    %218 = vector.load %arg10[%c12, %c0_44] : memref<16x128xf32, #tpu.memory_space<vmem>>, vector<2x128xf32>
    tpu.vector_store %arg10[%c12, %c0_44], %217 {strides = array<i32>} : memref<16x128xf32, #tpu.memory_space<vmem>>, vector<2x128xf32>,
    %219 = vector.extract_strided_slice %6 {offsets = [14, 0], sizes = [2, 512], strides = [1, 1]} : vector<16x512xf32> to vector<2x512xf32>
    %220 = arith.truncf %217 : vector<2x128xf32> to vector<2x128xbf16>
    %cst_45 = arith.constant dense<0.000000e+00> : vector<2x512xf32>
    %221 = tpu.matmul %220, %2, %cst_45 {dimension_numbers = #tpu.dot_dimension_numbers<[1], [0], [0], [1], [0, 0, 1, 1], [], []>} : vector<2x128xbf16>, vector<128x512xbf16>, vector<2x512xf32> -> vector<2x512xf32>
    %222 = arith.addf %219, %221 : vector<2x512xf32>
    %223 = vector.extract_strided_slice %222 {offsets = [0, 0], sizes = [2, 128], strides = [1, 1]} : vector<2x512xf32> to vector<2x128xf32>
    %224 = arith.negf %223 : vector<2x128xf32>
    %225 = math.exp %224 : vector<2x128xf32>
    %cst_46 = arith.constant 1.000000e+00 : f32
    %226 = vector.broadcast %cst_46 : f32 to vector<2x128xf32>
    %227 = arith.addf %226, %225 : vector<2x128xf32>
    %228 = arith.divf %226, %227 : vector<2x128xf32>
    %229 = vector.extract_strided_slice %222 {offsets = [0, 128], sizes = [2, 128], strides = [1, 1]} : vector<2x512xf32> to vector<2x128xf32>
    %230 = arith.negf %229 : vector<2x128xf32>
    %231 = math.exp %230 : vector<2x128xf32>
    %cst_47 = arith.constant 1.000000e+00 : f32
    %232 = vector.broadcast %cst_47 : f32 to vector<2x128xf32>
    %233 = arith.addf %232, %231 : vector<2x128xf32>
    %234 = arith.divf %232, %233 : vector<2x128xf32>
    %235 = vector.extract_strided_slice %222 {offsets = [0, 256], sizes = [2, 128], strides = [1, 1]} : vector<2x512xf32> to vector<2x128xf32>
    %236 = arith.negf %235 : vector<2x128xf32>
    %237 = math.exp %236 : vector<2x128xf32>
    %cst_48 = arith.constant 1.000000e+00 : f32
    %238 = vector.broadcast %cst_48 : f32 to vector<2x128xf32>
    %239 = arith.addf %238, %237 : vector<2x128xf32>
    %240 = arith.divf %238, %239 : vector<2x128xf32>
    %241 = vector.extract_strided_slice %222 {offsets = [0, 384], sizes = [2, 128], strides = [1, 1]} : vector<2x512xf32> to vector<2x128xf32>
    %242 = math.tanh %241 : vector<2x128xf32>
    %243 = arith.mulf %234, %215 : vector<2x128xf32>
    %244 = arith.mulf %228, %242 : vector<2x128xf32>
    %245 = arith.addf %243, %244 : vector<2x128xf32>
    %246 = math.tanh %245 : vector<2x128xf32>
    %247 = arith.mulf %240, %246 : vector<2x128xf32>
    %c14 = arith.constant 14 : index
    %c0_49 = arith.constant 0 : index
    %248 = vector.load %arg10[%c14, %c0_49] : memref<16x128xf32, #tpu.memory_space<vmem>>, vector<2x128xf32>
    tpu.vector_store %arg10[%c14, %c0_49], %247 {strides = array<i32>} : memref<16x128xf32, #tpu.memory_space<vmem>>, vector<2x128xf32>,
    %c0_50 = arith.constant 0 : index
    %c0_51 = arith.constant 0 : index
    %249 = vector.load %arg10[%c0_50, %c0_51] : memref<16x128xf32, #tpu.memory_space<vmem>>, vector<16x128xf32>
    %250 = arith.truncf %249 : vector<16x128xf32> to vector<16x128xbf16>
    %c0_52 = arith.constant 0 : index
    %c0_53 = arith.constant 0 : index
    %251 = vector.load %arg4[%c0_52, %c0_53] : memref<128x512xbf16, #tpu.memory_space<vmem>>, vector<128x512xbf16>
    %c0_54 = arith.constant 0 : index
    %c0_55 = arith.constant 0 : index
    %252 = vector.load %arg5[%c0_54, %c0_55] : memref<128x512xbf16, #tpu.memory_space<vmem>>, vector<128x512xbf16>
    %c0_56 = arith.constant 0 : index
    %c0_57 = arith.constant 0 : index
    %253 = vector.load %arg6[%c0_56, %c0_57] : memref<1x512xf32, #tpu.memory_space<vmem>>, vector<1x512xf32>
    %cst_58 = arith.constant dense<0.000000e+00> : vector<16x512xf32>
    %254 = tpu.matmul %250, %251, %cst_58 {dimension_numbers = #tpu.dot_dimension_numbers<[1], [0], [0], [1], [0, 0, 1, 1], [], []>} : vector<16x128xbf16>, vector<128x512xbf16>, vector<16x512xf32> -> vector<16x512xf32>
    %255 = vector.broadcast %253 : vector<1x512xf32> to vector<16x512xf32>
    %256 = arith.addf %254, %255 : vector<16x512xf32>
    %cst_59 = arith.constant 0.000000e+00 : f32
    %257 = vector.broadcast %cst_59 : f32 to vector<2x128xf32>
    %cst_60 = arith.constant 0.000000e+00 : f32
    %258 = vector.broadcast %cst_60 : f32 to vector<2x128xf32>
    %259 = vector.extract_strided_slice %256 {offsets = [0, 0], sizes = [2, 512], strides = [1, 1]} : vector<16x512xf32> to vector<2x512xf32>
    %260 = arith.truncf %257 : vector<2x128xf32> to vector<2x128xbf16>
    %cst_61 = arith.constant dense<0.000000e+00> : vector<2x512xf32>
    %261 = tpu.matmul %260, %252, %cst_61 {dimension_numbers = #tpu.dot_dimension_numbers<[1], [0], [0], [1], [0, 0, 1, 1], [], []>} : vector<2x128xbf16>, vector<128x512xbf16>, vector<2x512xf32> -> vector<2x512xf32>
    %262 = arith.addf %259, %261 : vector<2x512xf32>
    %263 = vector.extract_strided_slice %262 {offsets = [0, 0], sizes = [2, 128], strides = [1, 1]} : vector<2x512xf32> to vector<2x128xf32>
    %264 = arith.negf %263 : vector<2x128xf32>
    %265 = math.exp %264 : vector<2x128xf32>
    %cst_62 = arith.constant 1.000000e+00 : f32
    %266 = vector.broadcast %cst_62 : f32 to vector<2x128xf32>
    %267 = arith.addf %266, %265 : vector<2x128xf32>
    %268 = arith.divf %266, %267 : vector<2x128xf32>
    %269 = vector.extract_strided_slice %262 {offsets = [0, 128], sizes = [2, 128], strides = [1, 1]} : vector<2x512xf32> to vector<2x128xf32>
    %270 = arith.negf %269 : vector<2x128xf32>
    %271 = math.exp %270 : vector<2x128xf32>
    %cst_63 = arith.constant 1.000000e+00 : f32
    %272 = vector.broadcast %cst_63 : f32 to vector<2x128xf32>
    %273 = arith.addf %272, %271 : vector<2x128xf32>
    %274 = arith.divf %272, %273 : vector<2x128xf32>
    %275 = vector.extract_strided_slice %262 {offsets = [0, 256], sizes = [2, 128], strides = [1, 1]} : vector<2x512xf32> to vector<2x128xf32>
    %276 = arith.negf %275 : vector<2x128xf32>
    %277 = math.exp %276 : vector<2x128xf32>
    %cst_64 = arith.constant 1.000000e+00 : f32
    %278 = vector.broadcast %cst_64 : f32 to vector<2x128xf32>
    %279 = arith.addf %278, %277 : vector<2x128xf32>
    %280 = arith.divf %278, %279 : vector<2x128xf32>
    %281 = vector.extract_strided_slice %262 {offsets = [0, 384], sizes = [2, 128], strides = [1, 1]} : vector<2x512xf32> to vector<2x128xf32>
    %282 = math.tanh %281 : vector<2x128xf32>
    %283 = arith.mulf %274, %258 : vector<2x128xf32>
    %284 = arith.mulf %268, %282 : vector<2x128xf32>
    %285 = arith.addf %283, %284 : vector<2x128xf32>
    %286 = math.tanh %285 : vector<2x128xf32>
    %287 = arith.mulf %280, %286 : vector<2x128xf32>
    %288 = vector.extract_strided_slice %287 {offsets = [0, 0], sizes = [1, 128], strides = [1, 1]} : vector<2x128xf32> to vector<1x128xf32>
    %c0_65 = arith.constant 0 : index
    %c0_66 = arith.constant 0 : index
    %289 = vector.load %arg11[%c0_65, %c0_66] : memref<16x128xf32, #tpu.memory_space<vmem>>, vector<1x128xf32>
    tpu.vector_store %arg11[%c0_65, %c0_66], %288 {strides = array<i32>} : memref<16x128xf32, #tpu.memory_space<vmem>>, vector<1x128xf32>,
    %290 = vector.extract_strided_slice %287 {offsets = [1, 0], sizes = [1, 128], strides = [1, 1]} : vector<2x128xf32> to vector<1x128xf32>
    %c8_67 = arith.constant 8 : index
    %c0_68 = arith.constant 0 : index
    %291 = vector.load %arg11[%c8_67, %c0_68] : memref<16x128xf32, #tpu.memory_space<vmem>>, vector<1x128xf32>
    tpu.vector_store %arg11[%c8_67, %c0_68], %290 {strides = array<i32>} : memref<16x128xf32, #tpu.memory_space<vmem>>, vector<1x128xf32>,
    %292 = vector.extract_strided_slice %256 {offsets = [2, 0], sizes = [2, 512], strides = [1, 1]} : vector<16x512xf32> to vector<2x512xf32>
    %293 = arith.truncf %287 : vector<2x128xf32> to vector<2x128xbf16>
    %cst_69 = arith.constant dense<0.000000e+00> : vector<2x512xf32>
    %294 = tpu.matmul %293, %252, %cst_69 {dimension_numbers = #tpu.dot_dimension_numbers<[1], [0], [0], [1], [0, 0, 1, 1], [], []>} : vector<2x128xbf16>, vector<128x512xbf16>, vector<2x512xf32> -> vector<2x512xf32>
    %295 = arith.addf %292, %294 : vector<2x512xf32>
    %296 = vector.extract_strided_slice %295 {offsets = [0, 0], sizes = [2, 128], strides = [1, 1]} : vector<2x512xf32> to vector<2x128xf32>
    %297 = arith.negf %296 : vector<2x128xf32>
    %298 = math.exp %297 : vector<2x128xf32>
    %cst_70 = arith.constant 1.000000e+00 : f32
    %299 = vector.broadcast %cst_70 : f32 to vector<2x128xf32>
    %300 = arith.addf %299, %298 : vector<2x128xf32>
    %301 = arith.divf %299, %300 : vector<2x128xf32>
    %302 = vector.extract_strided_slice %295 {offsets = [0, 128], sizes = [2, 128], strides = [1, 1]} : vector<2x512xf32> to vector<2x128xf32>
    %303 = arith.negf %302 : vector<2x128xf32>
    %304 = math.exp %303 : vector<2x128xf32>
    %cst_71 = arith.constant 1.000000e+00 : f32
    %305 = vector.broadcast %cst_71 : f32 to vector<2x128xf32>
    %306 = arith.addf %305, %304 : vector<2x128xf32>
    %307 = arith.divf %305, %306 : vector<2x128xf32>
    %308 = vector.extract_strided_slice %295 {offsets = [0, 256], sizes = [2, 128], strides = [1, 1]} : vector<2x512xf32> to vector<2x128xf32>
    %309 = arith.negf %308 : vector<2x128xf32>
    %310 = math.exp %309 : vector<2x128xf32>
    %cst_72 = arith.constant 1.000000e+00 : f32
    %311 = vector.broadcast %cst_72 : f32 to vector<2x128xf32>
    %312 = arith.addf %311, %310 : vector<2x128xf32>
    %313 = arith.divf %311, %312 : vector<2x128xf32>
    %314 = vector.extract_strided_slice %295 {offsets = [0, 384], sizes = [2, 128], strides = [1, 1]} : vector<2x512xf32> to vector<2x128xf32>
    %315 = math.tanh %314 : vector<2x128xf32>
    %316 = arith.mulf %307, %285 : vector<2x128xf32>
    %317 = arith.mulf %301, %315 : vector<2x128xf32>
    %318 = arith.addf %316, %317 : vector<2x128xf32>
    %319 = math.tanh %318 : vector<2x128xf32>
    %320 = arith.mulf %313, %319 : vector<2x128xf32>
    %321 = vector.extract_strided_slice %320 {offsets = [0, 0], sizes = [1, 128], strides = [1, 1]} : vector<2x128xf32> to vector<1x128xf32>
    %c1 = arith.constant 1 : index
    %c0_73 = arith.constant 0 : index
    %322 = vector.load %arg11[%c1, %c0_73] : memref<16x128xf32, #tpu.memory_space<vmem>>, vector<1x128xf32>
    tpu.vector_store %arg11[%c1, %c0_73], %321 {strides = array<i32>} : memref<16x128xf32, #tpu.memory_space<vmem>>, vector<1x128xf32>,
    %323 = vector.extract_strided_slice %320 {offsets = [1, 0], sizes = [1, 128], strides = [1, 1]} : vector<2x128xf32> to vector<1x128xf32>
    %c9 = arith.constant 9 : index
    %c0_74 = arith.constant 0 : index
    %324 = vector.load %arg11[%c9, %c0_74] : memref<16x128xf32, #tpu.memory_space<vmem>>, vector<1x128xf32>
    tpu.vector_store %arg11[%c9, %c0_74], %323 {strides = array<i32>} : memref<16x128xf32, #tpu.memory_space<vmem>>, vector<1x128xf32>,
    %325 = vector.extract_strided_slice %256 {offsets = [4, 0], sizes = [2, 512], strides = [1, 1]} : vector<16x512xf32> to vector<2x512xf32>
    %326 = arith.truncf %320 : vector<2x128xf32> to vector<2x128xbf16>
    %cst_75 = arith.constant dense<0.000000e+00> : vector<2x512xf32>
    %327 = tpu.matmul %326, %252, %cst_75 {dimension_numbers = #tpu.dot_dimension_numbers<[1], [0], [0], [1], [0, 0, 1, 1], [], []>} : vector<2x128xbf16>, vector<128x512xbf16>, vector<2x512xf32> -> vector<2x512xf32>
    %328 = arith.addf %325, %327 : vector<2x512xf32>
    %329 = vector.extract_strided_slice %328 {offsets = [0, 0], sizes = [2, 128], strides = [1, 1]} : vector<2x512xf32> to vector<2x128xf32>
    %330 = arith.negf %329 : vector<2x128xf32>
    %331 = math.exp %330 : vector<2x128xf32>
    %cst_76 = arith.constant 1.000000e+00 : f32
    %332 = vector.broadcast %cst_76 : f32 to vector<2x128xf32>
    %333 = arith.addf %332, %331 : vector<2x128xf32>
    %334 = arith.divf %332, %333 : vector<2x128xf32>
    %335 = vector.extract_strided_slice %328 {offsets = [0, 128], sizes = [2, 128], strides = [1, 1]} : vector<2x512xf32> to vector<2x128xf32>
    %336 = arith.negf %335 : vector<2x128xf32>
    %337 = math.exp %336 : vector<2x128xf32>
    %cst_77 = arith.constant 1.000000e+00 : f32
    %338 = vector.broadcast %cst_77 : f32 to vector<2x128xf32>
    %339 = arith.addf %338, %337 : vector<2x128xf32>
    %340 = arith.divf %338, %339 : vector<2x128xf32>
    %341 = vector.extract_strided_slice %328 {offsets = [0, 256], sizes = [2, 128], strides = [1, 1]} : vector<2x512xf32> to vector<2x128xf32>
    %342 = arith.negf %341 : vector<2x128xf32>
    %343 = math.exp %342 : vector<2x128xf32>
    %cst_78 = arith.constant 1.000000e+00 : f32
    %344 = vector.broadcast %cst_78 : f32 to vector<2x128xf32>
    %345 = arith.addf %344, %343 : vector<2x128xf32>
    %346 = arith.divf %344, %345 : vector<2x128xf32>
    %347 = vector.extract_strided_slice %328 {offsets = [0, 384], sizes = [2, 128], strides = [1, 1]} : vector<2x512xf32> to vector<2x128xf32>
    %348 = math.tanh %347 : vector<2x128xf32>
    %349 = arith.mulf %340, %318 : vector<2x128xf32>
    %350 = arith.mulf %334, %348 : vector<2x128xf32>
    %351 = arith.addf %349, %350 : vector<2x128xf32>
    %352 = math.tanh %351 : vector<2x128xf32>
    %353 = arith.mulf %346, %352 : vector<2x128xf32>
    %354 = vector.extract_strided_slice %353 {offsets = [0, 0], sizes = [1, 128], strides = [1, 1]} : vector<2x128xf32> to vector<1x128xf32>
    %c2_79 = arith.constant 2 : index
    %c0_80 = arith.constant 0 : index
    %355 = vector.load %arg11[%c2_79, %c0_80] : memref<16x128xf32, #tpu.memory_space<vmem>>, vector<1x128xf32>
    tpu.vector_store %arg11[%c2_79, %c0_80], %354 {strides = array<i32>} : memref<16x128xf32, #tpu.memory_space<vmem>>, vector<1x128xf32>,
    %356 = vector.extract_strided_slice %353 {offsets = [1, 0], sizes = [1, 128], strides = [1, 1]} : vector<2x128xf32> to vector<1x128xf32>
    %c10_81 = arith.constant 10 : index
    %c0_82 = arith.constant 0 : index
    %357 = vector.load %arg11[%c10_81, %c0_82] : memref<16x128xf32, #tpu.memory_space<vmem>>, vector<1x128xf32>
    tpu.vector_store %arg11[%c10_81, %c0_82], %356 {strides = array<i32>} : memref<16x128xf32, #tpu.memory_space<vmem>>, vector<1x128xf32>,
    %358 = vector.extract_strided_slice %256 {offsets = [6, 0], sizes = [2, 512], strides = [1, 1]} : vector<16x512xf32> to vector<2x512xf32>
    %359 = arith.truncf %353 : vector<2x128xf32> to vector<2x128xbf16>
    %cst_83 = arith.constant dense<0.000000e+00> : vector<2x512xf32>
    %360 = tpu.matmul %359, %252, %cst_83 {dimension_numbers = #tpu.dot_dimension_numbers<[1], [0], [0], [1], [0, 0, 1, 1], [], []>} : vector<2x128xbf16>, vector<128x512xbf16>, vector<2x512xf32> -> vector<2x512xf32>
    %361 = arith.addf %358, %360 : vector<2x512xf32>
    %362 = vector.extract_strided_slice %361 {offsets = [0, 0], sizes = [2, 128], strides = [1, 1]} : vector<2x512xf32> to vector<2x128xf32>
    %363 = arith.negf %362 : vector<2x128xf32>
    %364 = math.exp %363 : vector<2x128xf32>
    %cst_84 = arith.constant 1.000000e+00 : f32
    %365 = vector.broadcast %cst_84 : f32 to vector<2x128xf32>
    %366 = arith.addf %365, %364 : vector<2x128xf32>
    %367 = arith.divf %365, %366 : vector<2x128xf32>
    %368 = vector.extract_strided_slice %361 {offsets = [0, 128], sizes = [2, 128], strides = [1, 1]} : vector<2x512xf32> to vector<2x128xf32>
    %369 = arith.negf %368 : vector<2x128xf32>
    %370 = math.exp %369 : vector<2x128xf32>
    %cst_85 = arith.constant 1.000000e+00 : f32
    %371 = vector.broadcast %cst_85 : f32 to vector<2x128xf32>
    %372 = arith.addf %371, %370 : vector<2x128xf32>
    %373 = arith.divf %371, %372 : vector<2x128xf32>
    %374 = vector.extract_strided_slice %361 {offsets = [0, 256], sizes = [2, 128], strides = [1, 1]} : vector<2x512xf32> to vector<2x128xf32>
    %375 = arith.negf %374 : vector<2x128xf32>
    %376 = math.exp %375 : vector<2x128xf32>
    %cst_86 = arith.constant 1.000000e+00 : f32
    %377 = vector.broadcast %cst_86 : f32 to vector<2x128xf32>
    %378 = arith.addf %377, %376 : vector<2x128xf32>
    %379 = arith.divf %377, %378 : vector<2x128xf32>
    %380 = vector.extract_strided_slice %361 {offsets = [0, 384], sizes = [2, 128], strides = [1, 1]} : vector<2x512xf32> to vector<2x128xf32>
    %381 = math.tanh %380 : vector<2x128xf32>
    %382 = arith.mulf %373, %351 : vector<2x128xf32>
    %383 = arith.mulf %367, %381 : vector<2x128xf32>
    %384 = arith.addf %382, %383 : vector<2x128xf32>
    %385 = math.tanh %384 : vector<2x128xf32>
    %386 = arith.mulf %379, %385 : vector<2x128xf32>
    %387 = vector.extract_strided_slice %386 {offsets = [0, 0], sizes = [1, 128], strides = [1, 1]} : vector<2x128xf32> to vector<1x128xf32>
    %c3 = arith.constant 3 : index
    %c0_87 = arith.constant 0 : index
    %388 = vector.load %arg11[%c3, %c0_87] : memref<16x128xf32, #tpu.memory_space<vmem>>, vector<1x128xf32>
    tpu.vector_store %arg11[%c3, %c0_87], %387 {strides = array<i32>} : memref<16x128xf32, #tpu.memory_space<vmem>>, vector<1x128xf32>,
    %389 = vector.extract_strided_slice %386 {offsets = [1, 0], sizes = [1, 128], strides = [1, 1]} : vector<2x128xf32> to vector<1x128xf32>
    %c11 = arith.constant 11 : index
    %c0_88 = arith.constant 0 : index
    %390 = vector.load %arg11[%c11, %c0_88] : memref<16x128xf32, #tpu.memory_space<vmem>>, vector<1x128xf32>
    tpu.vector_store %arg11[%c11, %c0_88], %389 {strides = array<i32>} : memref<16x128xf32, #tpu.memory_space<vmem>>, vector<1x128xf32>,
    %391 = vector.extract_strided_slice %256 {offsets = [8, 0], sizes = [2, 512], strides = [1, 1]} : vector<16x512xf32> to vector<2x512xf32>
    %392 = arith.truncf %386 : vector<2x128xf32> to vector<2x128xbf16>
    %cst_89 = arith.constant dense<0.000000e+00> : vector<2x512xf32>
    %393 = tpu.matmul %392, %252, %cst_89 {dimension_numbers = #tpu.dot_dimension_numbers<[1], [0], [0], [1], [0, 0, 1, 1], [], []>} : vector<2x128xbf16>, vector<128x512xbf16>, vector<2x512xf32> -> vector<2x512xf32>
    %394 = arith.addf %391, %393 : vector<2x512xf32>
    %395 = vector.extract_strided_slice %394 {offsets = [0, 0], sizes = [2, 128], strides = [1, 1]} : vector<2x512xf32> to vector<2x128xf32>
    %396 = arith.negf %395 : vector<2x128xf32>
    %397 = math.exp %396 : vector<2x128xf32>
    %cst_90 = arith.constant 1.000000e+00 : f32
    %398 = vector.broadcast %cst_90 : f32 to vector<2x128xf32>
    %399 = arith.addf %398, %397 : vector<2x128xf32>
    %400 = arith.divf %398, %399 : vector<2x128xf32>
    %401 = vector.extract_strided_slice %394 {offsets = [0, 128], sizes = [2, 128], strides = [1, 1]} : vector<2x512xf32> to vector<2x128xf32>
    %402 = arith.negf %401 : vector<2x128xf32>
    %403 = math.exp %402 : vector<2x128xf32>
    %cst_91 = arith.constant 1.000000e+00 : f32
    %404 = vector.broadcast %cst_91 : f32 to vector<2x128xf32>
    %405 = arith.addf %404, %403 : vector<2x128xf32>
    %406 = arith.divf %404, %405 : vector<2x128xf32>
    %407 = vector.extract_strided_slice %394 {offsets = [0, 256], sizes = [2, 128], strides = [1, 1]} : vector<2x512xf32> to vector<2x128xf32>
    %408 = arith.negf %407 : vector<2x128xf32>
    %409 = math.exp %408 : vector<2x128xf32>
    %cst_92 = arith.constant 1.000000e+00 : f32
    %410 = vector.broadcast %cst_92 : f32 to vector<2x128xf32>
    %411 = arith.addf %410, %409 : vector<2x128xf32>
    %412 = arith.divf %410, %411 : vector<2x128xf32>
    %413 = vector.extract_strided_slice %394 {offsets = [0, 384], sizes = [2, 128], strides = [1, 1]} : vector<2x512xf32> to vector<2x128xf32>
    %414 = math.tanh %413 : vector<2x128xf32>
    %415 = arith.mulf %406, %384 : vector<2x128xf32>
    %416 = arith.mulf %400, %414 : vector<2x128xf32>
    %417 = arith.addf %415, %416 : vector<2x128xf32>
    %418 = math.tanh %417 : vector<2x128xf32>
    %419 = arith.mulf %412, %418 : vector<2x128xf32>
    %420 = vector.extract_strided_slice %419 {offsets = [0, 0], sizes = [1, 128], strides = [1, 1]} : vector<2x128xf32> to vector<1x128xf32>
    %c4_93 = arith.constant 4 : index
    %c0_94 = arith.constant 0 : index
    %421 = vector.load %arg11[%c4_93, %c0_94] : memref<16x128xf32, #tpu.memory_space<vmem>>, vector<1x128xf32>
    tpu.vector_store %arg11[%c4_93, %c0_94], %420 {strides = array<i32>} : memref<16x128xf32, #tpu.memory_space<vmem>>, vector<1x128xf32>,
    %422 = vector.extract_strided_slice %419 {offsets = [1, 0], sizes = [1, 128], strides = [1, 1]} : vector<2x128xf32> to vector<1x128xf32>
    %c12_95 = arith.constant 12 : index
    %c0_96 = arith.constant 0 : index
    %423 = vector.load %arg11[%c12_95, %c0_96] : memref<16x128xf32, #tpu.memory_space<vmem>>, vector<1x128xf32>
    tpu.vector_store %arg11[%c12_95, %c0_96], %422 {strides = array<i32>} : memref<16x128xf32, #tpu.memory_space<vmem>>, vector<1x128xf32>,
    %424 = vector.extract_strided_slice %256 {offsets = [10, 0], sizes = [2, 512], strides = [1, 1]} : vector<16x512xf32> to vector<2x512xf32>
    %425 = arith.truncf %419 : vector<2x128xf32> to vector<2x128xbf16>
    %cst_97 = arith.constant dense<0.000000e+00> : vector<2x512xf32>
    %426 = tpu.matmul %425, %252, %cst_97 {dimension_numbers = #tpu.dot_dimension_numbers<[1], [0], [0], [1], [0, 0, 1, 1], [], []>} : vector<2x128xbf16>, vector<128x512xbf16>, vector<2x512xf32> -> vector<2x512xf32>
    %427 = arith.addf %424, %426 : vector<2x512xf32>
    %428 = vector.extract_strided_slice %427 {offsets = [0, 0], sizes = [2, 128], strides = [1, 1]} : vector<2x512xf32> to vector<2x128xf32>
    %429 = arith.negf %428 : vector<2x128xf32>
    %430 = math.exp %429 : vector<2x128xf32>
    %cst_98 = arith.constant 1.000000e+00 : f32
    %431 = vector.broadcast %cst_98 : f32 to vector<2x128xf32>
    %432 = arith.addf %431, %430 : vector<2x128xf32>
    %433 = arith.divf %431, %432 : vector<2x128xf32>
    %434 = vector.extract_strided_slice %427 {offsets = [0, 128], sizes = [2, 128], strides = [1, 1]} : vector<2x512xf32> to vector<2x128xf32>
    %435 = arith.negf %434 : vector<2x128xf32>
    %436 = math.exp %435 : vector<2x128xf32>
    %cst_99 = arith.constant 1.000000e+00 : f32
    %437 = vector.broadcast %cst_99 : f32 to vector<2x128xf32>
    %438 = arith.addf %437, %436 : vector<2x128xf32>
    %439 = arith.divf %437, %438 : vector<2x128xf32>
    %440 = vector.extract_strided_slice %427 {offsets = [0, 256], sizes = [2, 128], strides = [1, 1]} : vector<2x512xf32> to vector<2x128xf32>
    %441 = arith.negf %440 : vector<2x128xf32>
    %442 = math.exp %441 : vector<2x128xf32>
    %cst_100 = arith.constant 1.000000e+00 : f32
    %443 = vector.broadcast %cst_100 : f32 to vector<2x128xf32>
    %444 = arith.addf %443, %442 : vector<2x128xf32>
    %445 = arith.divf %443, %444 : vector<2x128xf32>
    %446 = vector.extract_strided_slice %427 {offsets = [0, 384], sizes = [2, 128], strides = [1, 1]} : vector<2x512xf32> to vector<2x128xf32>
    %447 = math.tanh %446 : vector<2x128xf32>
    %448 = arith.mulf %439, %417 : vector<2x128xf32>
    %449 = arith.mulf %433, %447 : vector<2x128xf32>
    %450 = arith.addf %448, %449 : vector<2x128xf32>
    %451 = math.tanh %450 : vector<2x128xf32>
    %452 = arith.mulf %445, %451 : vector<2x128xf32>
    %453 = vector.extract_strided_slice %452 {offsets = [0, 0], sizes = [1, 128], strides = [1, 1]} : vector<2x128xf32> to vector<1x128xf32>
    %c5 = arith.constant 5 : index
    %c0_101 = arith.constant 0 : index
    %454 = vector.load %arg11[%c5, %c0_101] : memref<16x128xf32, #tpu.memory_space<vmem>>, vector<1x128xf32>
    tpu.vector_store %arg11[%c5, %c0_101], %453 {strides = array<i32>} : memref<16x128xf32, #tpu.memory_space<vmem>>, vector<1x128xf32>,
    %455 = vector.extract_strided_slice %452 {offsets = [1, 0], sizes = [1, 128], strides = [1, 1]} : vector<2x128xf32> to vector<1x128xf32>
    %c13 = arith.constant 13 : index
    %c0_102 = arith.constant 0 : index
    %456 = vector.load %arg11[%c13, %c0_102] : memref<16x128xf32, #tpu.memory_space<vmem>>, vector<1x128xf32>
    tpu.vector_store %arg11[%c13, %c0_102], %455 {strides = array<i32>} : memref<16x128xf32, #tpu.memory_space<vmem>>, vector<1x128xf32>,
    %457 = vector.extract_strided_slice %256 {offsets = [12, 0], sizes = [2, 512], strides = [1, 1]} : vector<16x512xf32> to vector<2x512xf32>
    %458 = arith.truncf %452 : vector<2x128xf32> to vector<2x128xbf16>
    %cst_103 = arith.constant dense<0.000000e+00> : vector<2x512xf32>
    %459 = tpu.matmul %458, %252, %cst_103 {dimension_numbers = #tpu.dot_dimension_numbers<[1], [0], [0], [1], [0, 0, 1, 1], [], []>} : vector<2x128xbf16>, vector<128x512xbf16>, vector<2x512xf32> -> vector<2x512xf32>
    %460 = arith.addf %457, %459 : vector<2x512xf32>
    %461 = vector.extract_strided_slice %460 {offsets = [0, 0], sizes = [2, 128], strides = [1, 1]} : vector<2x512xf32> to vector<2x128xf32>
    %462 = arith.negf %461 : vector<2x128xf32>
    %463 = math.exp %462 : vector<2x128xf32>
    %cst_104 = arith.constant 1.000000e+00 : f32
    %464 = vector.broadcast %cst_104 : f32 to vector<2x128xf32>
    %465 = arith.addf %464, %463 : vector<2x128xf32>
    %466 = arith.divf %464, %465 : vector<2x128xf32>
    %467 = vector.extract_strided_slice %460 {offsets = [0, 128], sizes = [2, 128], strides = [1, 1]} : vector<2x512xf32> to vector<2x128xf32>
    %468 = arith.negf %467 : vector<2x128xf32>
    %469 = math.exp %468 : vector<2x128xf32>
    %cst_105 = arith.constant 1.000000e+00 : f32
    %470 = vector.broadcast %cst_105 : f32 to vector<2x128xf32>
    %471 = arith.addf %470, %469 : vector<2x128xf32>
    %472 = arith.divf %470, %471 : vector<2x128xf32>
    %473 = vector.extract_strided_slice %460 {offsets = [0, 256], sizes = [2, 128], strides = [1, 1]} : vector<2x512xf32> to vector<2x128xf32>
    %474 = arith.negf %473 : vector<2x128xf32>
    %475 = math.exp %474 : vector<2x128xf32>
    %cst_106 = arith.constant 1.000000e+00 : f32
    %476 = vector.broadcast %cst_106 : f32 to vector<2x128xf32>
    %477 = arith.addf %476, %475 : vector<2x128xf32>
    %478 = arith.divf %476, %477 : vector<2x128xf32>
    %479 = vector.extract_strided_slice %460 {offsets = [0, 384], sizes = [2, 128], strides = [1, 1]} : vector<2x512xf32> to vector<2x128xf32>
    %480 = math.tanh %479 : vector<2x128xf32>
    %481 = arith.mulf %472, %450 : vector<2x128xf32>
    %482 = arith.mulf %466, %480 : vector<2x128xf32>
    %483 = arith.addf %481, %482 : vector<2x128xf32>
    %484 = math.tanh %483 : vector<2x128xf32>
    %485 = arith.mulf %478, %484 : vector<2x128xf32>
    %486 = vector.extract_strided_slice %485 {offsets = [0, 0], sizes = [1, 128], strides = [1, 1]} : vector<2x128xf32> to vector<1x128xf32>
    %c6_107 = arith.constant 6 : index
    %c0_108 = arith.constant 0 : index
    %487 = vector.load %arg11[%c6_107, %c0_108] : memref<16x128xf32, #tpu.memory_space<vmem>>, vector<1x128xf32>
    tpu.vector_store %arg11[%c6_107, %c0_108], %486 {strides = array<i32>} : memref<16x128xf32, #tpu.memory_space<vmem>>, vector<1x128xf32>,
    %488 = vector.extract_strided_slice %485 {offsets = [1, 0], sizes = [1, 128], strides = [1, 1]} : vector<2x128xf32> to vector<1x128xf32>
    %c14_109 = arith.constant 14 : index
    %c0_110 = arith.constant 0 : index
    %489 = vector.load %arg11[%c14_109, %c0_110] : memref<16x128xf32, #tpu.memory_space<vmem>>, vector<1x128xf32>
    tpu.vector_store %arg11[%c14_109, %c0_110], %488 {strides = array<i32>} : memref<16x128xf32, #tpu.memory_space<vmem>>, vector<1x128xf32>,
    %490 = vector.extract_strided_slice %256 {offsets = [14, 0], sizes = [2, 512], strides = [1, 1]} : vector<16x512xf32> to vector<2x512xf32>
    %491 = arith.truncf %485 : vector<2x128xf32> to vector<2x128xbf16>
    %cst_111 = arith.constant dense<0.000000e+00> : vector<2x512xf32>
    %492 = tpu.matmul %491, %252, %cst_111 {dimension_numbers = #tpu.dot_dimension_numbers<[1], [0], [0], [1], [0, 0, 1, 1], [], []>} : vector<2x128xbf16>, vector<128x512xbf16>, vector<2x512xf32> -> vector<2x512xf32>
    %493 = arith.addf %490, %492 : vector<2x512xf32>
    %494 = vector.extract_strided_slice %493 {offsets = [0, 0], sizes = [2, 128], strides = [1, 1]} : vector<2x512xf32> to vector<2x128xf32>
    %495 = arith.negf %494 : vector<2x128xf32>
    %496 = math.exp %495 : vector<2x128xf32>
    %cst_112 = arith.constant 1.000000e+00 : f32
    %497 = vector.broadcast %cst_112 : f32 to vector<2x128xf32>
    %498 = arith.addf %497, %496 : vector<2x128xf32>
    %499 = arith.divf %497, %498 : vector<2x128xf32>
    %500 = vector.extract_strided_slice %493 {offsets = [0, 128], sizes = [2, 128], strides = [1, 1]} : vector<2x512xf32> to vector<2x128xf32>
    %501 = arith.negf %500 : vector<2x128xf32>
    %502 = math.exp %501 : vector<2x128xf32>
    %cst_113 = arith.constant 1.000000e+00 : f32
    %503 = vector.broadcast %cst_113 : f32 to vector<2x128xf32>
    %504 = arith.addf %503, %502 : vector<2x128xf32>
    %505 = arith.divf %503, %504 : vector<2x128xf32>
    %506 = vector.extract_strided_slice %493 {offsets = [0, 256], sizes = [2, 128], strides = [1, 1]} : vector<2x512xf32> to vector<2x128xf32>
    %507 = arith.negf %506 : vector<2x128xf32>
    %508 = math.exp %507 : vector<2x128xf32>
    %cst_114 = arith.constant 1.000000e+00 : f32
    %509 = vector.broadcast %cst_114 : f32 to vector<2x128xf32>
    %510 = arith.addf %509, %508 : vector<2x128xf32>
    %511 = arith.divf %509, %510 : vector<2x128xf32>
    %512 = vector.extract_strided_slice %493 {offsets = [0, 384], sizes = [2, 128], strides = [1, 1]} : vector<2x512xf32> to vector<2x128xf32>
    %513 = math.tanh %512 : vector<2x128xf32>
    %514 = arith.mulf %505, %483 : vector<2x128xf32>
    %515 = arith.mulf %499, %513 : vector<2x128xf32>
    %516 = arith.addf %514, %515 : vector<2x128xf32>
    %517 = math.tanh %516 : vector<2x128xf32>
    %518 = arith.mulf %511, %517 : vector<2x128xf32>
    %519 = vector.extract_strided_slice %518 {offsets = [0, 0], sizes = [1, 128], strides = [1, 1]} : vector<2x128xf32> to vector<1x128xf32>
    %c7 = arith.constant 7 : index
    %c0_115 = arith.constant 0 : index
    %520 = vector.load %arg11[%c7, %c0_115] : memref<16x128xf32, #tpu.memory_space<vmem>>, vector<1x128xf32>
    tpu.vector_store %arg11[%c7, %c0_115], %519 {strides = array<i32>} : memref<16x128xf32, #tpu.memory_space<vmem>>, vector<1x128xf32>,
    %521 = vector.extract_strided_slice %518 {offsets = [1, 0], sizes = [1, 128], strides = [1, 1]} : vector<2x128xf32> to vector<1x128xf32>
    %c15 = arith.constant 15 : index
    %c0_116 = arith.constant 0 : index
    %522 = vector.load %arg11[%c15, %c0_116] : memref<16x128xf32, #tpu.memory_space<vmem>>, vector<1x128xf32>
    tpu.vector_store %arg11[%c15, %c0_116], %521 {strides = array<i32>} : memref<16x128xf32, #tpu.memory_space<vmem>>, vector<1x128xf32>,
    %c0_117 = arith.constant 0 : index
    %c0_118 = arith.constant 0 : index
    %523 = vector.load %arg7[%c0_117, %c0_118] : memref<128x128xbf16, #tpu.memory_space<vmem>>, vector<128x128xbf16>
    %c0_119 = arith.constant 0 : index
    %c0_120 = arith.constant 0 : index
    %524 = vector.load %arg8[%c0_119, %c0_120] : memref<1x128xf32, #tpu.memory_space<vmem>>, vector<1x128xf32>
    %c0_121 = arith.constant 0 : index
    %c0_122 = arith.constant 0 : index
    %525 = vector.load %arg11[%c0_121, %c0_122] : memref<16x128xf32, #tpu.memory_space<vmem>>, vector<8x128xf32>
    %cst_123 = arith.constant dense<0.000000e+00> : vector<8x8xf32>
    %526 = tpu.matmul %525, %525, %cst_123 {dimension_numbers = #tpu.dot_dimension_numbers<[1], [1], [0], [0], [0, 0, 1, 0], [], []>} : vector<8x128xf32>, vector<8x128xf32>, vector<8x8xf32> -> vector<8x8xf32>
    %cst_124 = arith.constant dense<0xFF800000> : vector<8xf32>
    %527 = vector.multi_reduction <maximumf>, %526, %cst_124 [1] : vector<8x8xf32> to vector<8xf32>
    %528 = vector.shape_cast %527 : vector<8xf32> to vector<8x1xf32>
    %529 = vector.broadcast %528 : vector<8x1xf32> to vector<8x8xf32>
    %530 = arith.subf %526, %529 : vector<8x8xf32>
    %531 = math.exp %530 : vector<8x8xf32>
    %cst_125 = arith.constant dense<0.000000e+00> : vector<8xf32>
    %532 = vector.multi_reduction <add>, %531, %cst_125 [1] : vector<8x8xf32> to vector<8xf32>
    %533 = vector.shape_cast %532 : vector<8xf32> to vector<8x1xf32>
    %534 = tpu.reciprocal %533 {approx = true} : vector<8x1xf32> -> vector<8x1xf32>
    %535 = vector.broadcast %534 : vector<8x1xf32> to vector<8x8xf32>
    %536 = arith.mulf %531, %535 : vector<8x8xf32>
    %cst_126 = arith.constant dense<0.000000e+00> : vector<8xf32>
    %537 = vector.multi_reduction <add>, %536, %cst_126 [0] : vector<8x8xf32> to vector<8xf32>
    %538 = vector.shape_cast %537 : vector<8xf32> to vector<1x8xf32>
    %cst_127 = arith.constant 1.250000e-01 : f32
    %539 = vector.broadcast %cst_127 : f32 to vector<1x8xf32>
    %540 = arith.mulf %538, %539 : vector<1x8xf32>
    %cst_128 = arith.constant dense<0.000000e+00> : vector<1x128xf32>
    %541 = tpu.matmul %540, %525, %cst_128 {dimension_numbers = #tpu.dot_dimension_numbers<[1], [0], [0], [1], [0, 0, 1, 1], [], []>} : vector<1x8xf32>, vector<8x128xf32>, vector<1x128xf32> -> vector<1x128xf32>
    %542 = arith.truncf %541 : vector<1x128xf32> to vector<1x128xbf16>
    %cst_129 = arith.constant dense<0.000000e+00> : vector<1x128xf32>
    %543 = tpu.matmul %542, %523, %cst_129 {dimension_numbers = #tpu.dot_dimension_numbers<[1], [0], [0], [1], [0, 0, 1, 1], [], []>} : vector<1x128xbf16>, vector<128x128xbf16>, vector<1x128xf32> -> vector<1x128xf32>
    %544 = arith.addf %543, %524 : vector<1x128xf32>
    %c0_130 = arith.constant 0 : index
    %c0_131 = arith.constant 0 : index
    %545 = vector.load %arg9[%c0_130, %c0_131] : memref<2x128xf32, #tpu.memory_space<vmem>>, vector<1x128xf32>
    tpu.vector_store %arg9[%c0_130, %c0_131], %544 {strides = array<i32>} : memref<2x128xf32, #tpu.memory_space<vmem>>, vector<1x128xf32>,
    %c8_132 = arith.constant 8 : index
    %c0_133 = arith.constant 0 : index
    %546 = vector.load %arg11[%c8_132, %c0_133] : memref<16x128xf32, #tpu.memory_space<vmem>>, vector<8x128xf32>
    %cst_134 = arith.constant dense<0.000000e+00> : vector<8x8xf32>
    %547 = tpu.matmul %546, %546, %cst_134 {dimension_numbers = #tpu.dot_dimension_numbers<[1], [1], [0], [0], [0, 0, 1, 0], [], []>} : vector<8x128xf32>, vector<8x128xf32>, vector<8x8xf32> -> vector<8x8xf32>
    %cst_135 = arith.constant dense<0xFF800000> : vector<8xf32>
    %548 = vector.multi_reduction <maximumf>, %547, %cst_135 [1] : vector<8x8xf32> to vector<8xf32>
    %549 = vector.shape_cast %548 : vector<8xf32> to vector<8x1xf32>
    %550 = vector.broadcast %549 : vector<8x1xf32> to vector<8x8xf32>
    %551 = arith.subf %547, %550 : vector<8x8xf32>
    %552 = math.exp %551 : vector<8x8xf32>
    %cst_136 = arith.constant dense<0.000000e+00> : vector<8xf32>
    %553 = vector.multi_reduction <add>, %552, %cst_136 [1] : vector<8x8xf32> to vector<8xf32>
    %554 = vector.shape_cast %553 : vector<8xf32> to vector<8x1xf32>
    %555 = tpu.reciprocal %554 {approx = true} : vector<8x1xf32> -> vector<8x1xf32>
    %556 = vector.broadcast %555 : vector<8x1xf32> to vector<8x8xf32>
    %557 = arith.mulf %552, %556 : vector<8x8xf32>
    %cst_137 = arith.constant dense<0.000000e+00> : vector<8xf32>
    %558 = vector.multi_reduction <add>, %557, %cst_137 [0] : vector<8x8xf32> to vector<8xf32>
    %559 = vector.shape_cast %558 : vector<8xf32> to vector<1x8xf32>
    %cst_138 = arith.constant 1.250000e-01 : f32
    %560 = vector.broadcast %cst_138 : f32 to vector<1x8xf32>
    %561 = arith.mulf %559, %560 : vector<1x8xf32>
    %cst_139 = arith.constant dense<0.000000e+00> : vector<1x128xf32>
    %562 = tpu.matmul %561, %546, %cst_139 {dimension_numbers = #tpu.dot_dimension_numbers<[1], [0], [0], [1], [0, 0, 1, 1], [], []>} : vector<1x8xf32>, vector<8x128xf32>, vector<1x128xf32> -> vector<1x128xf32>
    %563 = arith.truncf %562 : vector<1x128xf32> to vector<1x128xbf16>
    %cst_140 = arith.constant dense<0.000000e+00> : vector<1x128xf32>
    %564 = tpu.matmul %563, %523, %cst_140 {dimension_numbers = #tpu.dot_dimension_numbers<[1], [0], [0], [1], [0, 0, 1, 1], [], []>} : vector<1x128xbf16>, vector<128x128xbf16>, vector<1x128xf32> -> vector<1x128xf32>
    %565 = arith.addf %564, %524 : vector<1x128xf32>
    %c1_141 = arith.constant 1 : index
    %c0_142 = arith.constant 0 : index
    %566 = vector.load %arg9[%c1_141, %c0_142] : memref<2x128xf32, #tpu.memory_space<vmem>>, vector<1x128xf32>
    tpu.vector_store %arg9[%c1_141, %c0_142], %565 {strides = array<i32>} : memref<2x128xf32, #tpu.memory_space<vmem>>, vector<1x128xf32>,
    return
  }
}

</mosaic_0001>

<llo_original>
// kernel: forward.1
$region0: #{forward.1}
  #allocation0 [shape = 'u32[]', space=smem, size = 0x4, offset = 0x4, fixed_abs, tag = 'smem constant byte address 0x4 - core index']
  #allocation1 [shape = 'u32[144,128]{1,0:T(1,128)}', space=vmem, size = 0x12000, scoped, tag = 'internal scratch']
  #allocation2 [shape = 'f32[16,128]{1,0:T(8,128)}', space=vmem, size = 0x2000, scoped, tag = 'scratch operand']
  #allocation3 [shape = 'f32[16,128]{1,0:T(8,128)}', space=vmem, size = 0x2000, scoped, tag = 'scratch operand']
  %s0 = inlined_call_operand.vmem [shape: bf16[16,32], index: 0, kind: input, shape index: {}]
  %s1 = inlined_call_operand.hbm [shape: bf16[32,512], index: 1, kind: input, shape index: {}]
  %s2 = inlined_call_operand.vmem [shape: bf16[128,512], index: 2, kind: input, shape index: {}]
  %s3 = inlined_call_operand.vmem [shape: f32[1,512], index: 3, kind: input, shape index: {}]
  %s4 = inlined_call_operand.hbm [shape: bf16[128,512], index: 4, kind: input, shape index: {}]
  %s5 = inlined_call_operand.hbm [shape: bf16[128,512], index: 5, kind: input, shape index: {}]
  %s6 = inlined_call_operand.vmem [shape: f32[1,512], index: 6, kind: input, shape index: {}]
  %s7 = inlined_call_operand.hbm [shape: bf16[128,128], index: 7, kind: input, shape index: {}]
  %s8 = inlined_call_operand.vmem [shape: f32[1,128], index: 8, kind: input, shape index: {}]
  %s9 = inlined_call_operand.hbm [shape: f32[2,128], index: 9, kind: output, shape index: {}]
  %s10 = sld [smem:[#allocation0]]
  $region62: #{forward.1} parent=0
    _
  %s12 = ssub.s32 1, %s10
  %s13 = scalar_select 0, %s12, %s10
  $region1: #{forward.1} parent=0
    #allocation4 [shape = 'u8[32768]{0}', space=vmem, size = 0x8000, scoped, tag = 'input window, operand 1, single buffered']
    #allocation5 [shape = 's32[1]{0}', space=sflag, size = 0x4, scoped, tag = 'scoped memory for forward.1']
    #allocation6 [shape = 's32[1]{0}', space=sflag, size = 0x4, scoped, tag = 'scoped memory for forward.1']
    #allocation7 [shape = 'u8[131072]{0}', space=vmem, size = 0x20000, scoped, tag = 'input window, operand 4, single buffered']
    #allocation8 [shape = 's32[1]{0}', space=sflag, size = 0x4, scoped, tag = 'scoped memory for forward.1']
    #allocation9 [shape = 'u8[131072]{0}', space=vmem, size = 0x20000, scoped, tag = 'input window, operand 5, single buffered']
    #allocation10 [shape = 'u8[32768]{0}', space=vmem, size = 0x8000, scoped, tag = 'input window, operand 7, single buffered']
    #allocation11 [shape = 's32[1]{0}', space=sflag, size = 0x4, scoped, tag = 'scoped memory for forward.1']
    #allocation12 [shape = 'u8[1024]{0}', space=vmem, size = 0x400, scoped, tag = 'output window, operand 0, single buffered']
    %14 = vsyncpa [#allocation5], 0
    %15 = vsyncpa [#allocation8], 0
    %16 = vsyncpa [#allocation11], 0
    %17 = vsyncpa [#allocation6], 0
    // Predicated region
    $region2: #{forward.1} parent=1 // pred_check
      _
    $region3: #{forward.1} parent=1 // pred_check_branch
      %19 = sbr.rel (0) target = $region5
    $region4: #{forward.1} parent=1 // pred_region
      _
    $region5: #{forward.1} parent=1 // pred_fallthru
      _
    // Predicated region
    $region6: #{forward.1} parent=1 // pred_check
      _
    $region7: #{forward.1} parent=1 // pred_check_branch
      %21 = sbr.rel (0) target = $region9
    $region8: #{forward.1} parent=1 // pred_region
      %s23 = ssub.s32 1024, 1024
      %24 = vsyncadd [#allocation5], %s23
      %s25 = sshll.u32 [#allocation4], 4
      %s26 = int_to_ptr.vmem [resolvable:$true] %s25
      %31 = dma.hbm_to_vmem [thread:$0]  %s1, 1024, %s26, [#allocation5], 256, 256, 16
    $region9: #{forward.1} parent=1 // pred_fallthru
      _
    // Predicated region
    $region10: #{forward.1} parent=1 // pred_check
      _
    $region11: #{forward.1} parent=1 // pred_check_branch
      %33 = sbr.rel (0) target = $region13
    $region12: #{forward.1} parent=1 // pred_region
      _
    $region13: #{forward.1} parent=1 // pred_fallthru
      _
    // Predicated region
    $region14: #{forward.1} parent=1 // pred_check
      _
    $region15: #{forward.1} parent=1 // pred_check_branch
      %35 = sbr.rel (0) target = $region17
    $region16: #{forward.1} parent=1 // pred_region
      _
    $region17: #{forward.1} parent=1 // pred_fallthru
      _
    // Predicated region
    $region18: #{forward.1} parent=1 // pred_check
      _
    $region19: #{forward.1} parent=1 // pred_check_branch
      %37 = sbr.rel (0) target = $region21
    $region20: #{forward.1} parent=1 // pred_region
      %s39 = ssub.s32 4096, 4096
      %40 = vsyncadd [#allocation8], %s39
      %s41 = sshll.u32 [#allocation7], 4
      %s42 = int_to_ptr.vmem [resolvable:$true] %s41
      %47 = dma.hbm_to_vmem [thread:$0]  %s4, 4096, %s42, [#allocation8], 256, 256, 16
    $region21: #{forward.1} parent=1 // pred_fallthru
      _
    // Predicated region
    $region22: #{forward.1} parent=1 // pred_check
      _
    $region23: #{forward.1} parent=1 // pred_check_branch
      %49 = sbr.rel (0) target = $region25
    $region24: #{forward.1} parent=1 // pred_region
      %s51 = ssub.s32 4096, 4096
      %52 = vsyncadd [#allocation8], %s51
      %s53 = sshll.u32 [#allocation9], 4
      %s54 = int_to_ptr.vmem [resolvable:$true] %s53
      %59 = dma.hbm_to_vmem [thread:$0]  %s5, 4096, %s54, [#allocation8], 256, 256, 16
    $region25: #{forward.1} parent=1 // pred_fallthru
      _
    // Predicated region
    $region26: #{forward.1} parent=1 // pred_check
      _
    $region27: #{forward.1} parent=1 // pred_check_branch
      %61 = sbr.rel (0) target = $region29
    $region28: #{forward.1} parent=1 // pred_region
      _
    $region29: #{forward.1} parent=1 // pred_fallthru
      _
    // Predicated region
    $region30: #{forward.1} parent=1 // pred_check
      _
    $region31: #{forward.1} parent=1 // pred_check_branch
      %63 = sbr.rel (0) target = $region33
    $region32: #{forward.1} parent=1 // pred_region
      %s65 = ssub.s32 1024, 1024
      %66 = vsyncadd [#allocation11], %s65
      %s67 = sshll.u32 [#allocation10], 4
      %s68 = int_to_ptr.vmem [resolvable:$true] %s67
      %73 = dma.hbm_to_vmem [thread:$0]  %s7, 1024, %s68, [#allocation11], 64, 64, 4
    $region33: #{forward.1} parent=1 // pred_fallthru
      _
    // Predicated region
    $region34: #{forward.1} parent=1 // pred_check
      _
    $region35: #{forward.1} parent=1 // pred_check_branch
      %75 = sbr.rel (0) target = $region37
    $region36: #{forward.1} parent=1 // pred_region
      _
    $region37: #{forward.1} parent=1 // pred_fallthru
      _
    // Predicated region
    $region38: #{forward.1} parent=1 // pred_check
      _
    $region39: #{forward.1} parent=1 // pred_check_branch
      %77 = sbr.rel (0) target = $region41
    $region40: #{forward.1} parent=1 // pred_region
      %78 = dma.done [#allocation5], 1024
    $region41: #{forward.1} parent=1 // pred_fallthru
      _
    // Predicated region
    $region42: #{forward.1} parent=1 // pred_check
      _
    $region43: #{forward.1} parent=1 // pred_check_branch
      %80 = sbr.rel (0) target = $region45
    $region44: #{forward.1} parent=1 // pred_region
      %81 = dma.done [#allocation8], 4096
    $region45: #{forward.1} parent=1 // pred_fallthru
      _
    // Predicated region
    $region46: #{forward.1} parent=1 // pred_check
      _
    $region47: #{forward.1} parent=1 // pred_check_branch
      %83 = sbr.rel (0) target = $region49
    $region48: #{forward.1} parent=1 // pred_region
      %84 = dma.done [#allocation8], 4096
    $region49: #{forward.1} parent=1 // pred_fallthru
      _
    // Predicated region
    $region50: #{forward.1} parent=1 // pred_check
      _
    $region51: #{forward.1} parent=1 // pred_check_branch
      %86 = sbr.rel (0) target = $region53
    $region52: #{forward.1} parent=1 // pred_region
      %87 = dma.done [#allocation11], 1024
    $region53: #{forward.1} parent=1 // pred_fallthru
      _
    %v89 = vld [vmem:[%s0] sm:$0xf]
    %v90 = vld [vmem:[%s0 + $0x4] sm:$0xf]
    %v91 = vld [vmem:[#allocation4] sm:$0xff]
    %v92 = vld [vmem:[#allocation4 + $0x8] sm:$0xff]
    %v93 = vld [vmem:[#allocation4 + $0x10] sm:$0xff]
    %v94 = vld [vmem:[#allocation4 + $0x18] sm:$0xff]
    %v95 = vld [vmem:[#allocation4 + $0x20] sm:$0xff]
    %v96 = vld [vmem:[#allocation4 + $0x28] sm:$0xff]
    %v97 = vld [vmem:[#allocation4 + $0x30] sm:$0xff]
    %v98 = vld [vmem:[#allocation4 + $0x38] sm:$0xff]
    %v99 = vld [vmem:[%s2] sm:$0xff]
    %v100 = vld [vmem:[%s2 + $0x8] sm:$0xff]
    %v101 = vld [vmem:[%s2 + $0x10] sm:$0xff]
    %v102 = vld [vmem:[%s2 + $0x18] sm:$0xff]
    %v103 = vld [vmem:[%s2 + $0x20] sm:$0xff]
    %v104 = vld [vmem:[%s2 + $0x28] sm:$0xff]
    %v105 = vld [vmem:[%s2 + $0x30] sm:$0xff]
    %v106 = vld [vmem:[%s2 + $0x38] sm:$0xff]
    %v107 = vld [vmem:[%s2 + $0x40] sm:$0xff]
    %v108 = vld [vmem:[%s2 + $0x48] sm:$0xff]
    %v109 = vld [vmem:[%s2 + $0x50] sm:$0xff]
    %v110 = vld [vmem:[%s2 + $0x58] sm:$0xff]
    %v111 = vld [vmem:[%s2 + $0x60] sm:$0xff]
    %v112 = vld [vmem:[%s2 + $0x68] sm:$0xff]
    %v113 = vld [vmem:[%s2 + $0x70] sm:$0xff]
    %v114 = vld [vmem:[%s2 + $0x78] sm:$0xff]
    %v115 = vld [vmem:[%s2 + $0x80] sm:$0xff]
    %v116 = vld [vmem:[%s2 + $0x88] sm:$0xff]
    %v117 = vld [vmem:[%s2 + $0x90] sm:$0xff]
    %v118 = vld [vmem:[%s2 + $0x98] sm:$0xff]
    %v119 = vld [vmem:[%s2 + $0xa0] sm:$0xff]
    %v120 = vld [vmem:[%s2 + $0xa8] sm:$0xff]
    %v121 = vld [vmem:[%s2 + $0xb0] sm:$0xff]
    %v122 = vld [vmem:[%s2 + $0xb8] sm:$0xff]
    %v123 = vld [vmem:[%s2 + $0xc0] sm:$0xff]
    %v124 = vld [vmem:[%s2 + $0xc8] sm:$0xff]
    %v125 = vld [vmem:[%s2 + $0xd0] sm:$0xff]
    %v126 = vld [vmem:[%s2 + $0xd8] sm:$0xff]
    %v127 = vld [vmem:[%s2 + $0xe0] sm:$0xff]
    %v128 = vld [vmem:[%s2 + $0xe8] sm:$0xff]
    %v129 = vld [vmem:[%s2 + $0xf0] sm:$0xff]
    %v130 = vld [vmem:[%s2 + $0xf8] sm:$0xff]
    %v131 = vld [vmem:[%s3] sm:$0xf]
    %v133 = vlaneseq
    %v134 = vshrl.u32 %v133, 7
    %v135 = vsub.s32 0, %v134
    %v136 = vrot.slane %v131, %v135
    %v137 = vlaneseq
    %v138 = vshrl.u32 %v137, 7
    %v139 = vsub.s32 1, %v138
    %v140 = vrot.slane %v131, %v139
    %v141 = vlaneseq
    %v142 = vshrl.u32 %v141, 7
    %v143 = vsub.s32 2, %v142
    %v144 = vrot.slane %v131, %v143
    %v145 = vlaneseq
    %v146 = vshrl.u32 %v145, 7
    %v147 = vsub.s32 3, %v146
    %v148 = vrot.slane %v131, %v147
    %v155 = vunpack.c.l.b16 %v89
    %v156 = vunpack.c.l.b16 %v90
    %v157 = vpack.c.b16 %v156, %v155
    %v166 = vunpack.c.l.b16 %v91
    %v167 = vunpack.c.h.b16 %v91
    %v168 = vunpack.c.l.b16 %v92
    %v169 = vunpack.c.h.b16 %v92
    %v170 = vunpack.c.l.b16 %v93
    %v171 = vunpack.c.h.b16 %v93
    %v172 = vunpack.c.l.b16 %v94
    %v173 = vunpack.c.h.b16 %v94
    %v174 = vunpack.c.l.b16 %v95
    %v175 = vunpack.c.h.b16 %v95
    %v176 = vunpack.c.l.b16 %v96
    %v177 = vunpack.c.h.b16 %v96
    %v178 = vunpack.c.l.b16 %v97
    %v179 = vunpack.c.h.b16 %v97
    %v180 = vunpack.c.l.b16 %v98
    %v181 = vunpack.c.h.b16 %v98
    %v182 = vpack.c.b16 %v170, %v166
    %v183 = vpack.c.b16 %v171, %v167
    %v184 = vpack.c.b16 %v172, %v168
    %v185 = vpack.c.b16 %v173, %v169
    %v186 = vpack.c.b16 %v178, %v174
    %v187 = vpack.c.b16 %v179, %v175
    %v188 = vpack.c.b16 %v180, %v176
    %v189 = vpack.c.b16 %v181, %v177
    %vm198 = vcmask 261120
    %v200 = vsel %vm198, %v157, 0
    %202 = vmatprep.subr.bf16.mxu0 0
    %203 = vmatpush1.bf16.msra.mxu0 0
    %204 = vmatprep.subr.bf16.mxu0 0
    %205 = vmatpush1.bf16.msra.mxu0 0
    %206 = vmatprep.subr.bf16.mxu0 0
    %207 = vmatpush1.bf16.msra.mxu0 0
    %208 = vmatprep.subr.bf16.mxu0 0
    %209 = vmatpush1.bf16.msra.mxu0 0
    %210 = vmatprep.subr.bf16.mxu0 0
    %211 = vmatpush1.bf16.msra.mxu0 0
    %212 = vmatprep.subr.bf16.mxu0 0
    %213 = vmatpush1.bf16.msra.mxu0 0
    %214 = vmatprep.subr.bf16.mxu0 %v187
    %215 = vmatpush1.bf16.msra.mxu0 %v186
    %216 = vmatprep.subr.bf16.mxu0 %v183
    %217 = vmatpush1.bf16.msra.mxu0 %v182
    %218 = vmatprep.subr.bf16.mxu0 0
    %219 = vmatpush2.bf16.msra.mxu0 0
    %220 = vmatprep.subr.bf16.mxu0 0
    %221 = vmatpush2.bf16.msra.mxu0 0
    %222 = vmatprep.subr.bf16.mxu0 0
    %223 = vmatpush2.bf16.msra.mxu0 0
    %224 = vmatprep.subr.bf16.mxu0 0
    %225 = vmatpush2.bf16.msra.mxu0 0
    %226 = vmatprep.subr.bf16.mxu0 0
    %227 = vmatpush2.bf16.msra.mxu0 0
    %228 = vmatprep.subr.bf16.mxu0 0
    %229 = vmatpush2.bf16.msra.mxu0 0
    %230 = vmatprep.subr.bf16.mxu0 0
    %231 = vmatpush2.bf16.msra.mxu0 0
    %232 = vmatprep.subr.bf16.mxu0 0
    %233 = vmatpush2.bf16.msra.mxu0 0
    %234 = vmatprep.mubr.bf16.mxu0 0
    %235 = vmatmul.mubr.bf16.gmra.mxu0 %v200
    %v236 = vpop.f32.mrf.mxu0
    %v237 = vadd.f32 %v136, %v236
    %v238 = vpop.f32.mrf.mxu0
    %v239 = vadd.f32 %v140, %v238
    %v240 = vpop.f32.mrf.mxu0
    %v241 = vadd.f32 %v136, %v240
    %v242 = vpop.f32.mrf.mxu0
    %v243 = vadd.f32 %v140, %v242
    %244 = vdwg.mxu0
    %245 = vmatprep.subr.bf16.mxu0 0
    %246 = vmatpush1.bf16.msra.mxu0 0
    %247 = vmatprep.subr.bf16.mxu0 0
    %248 = vmatpush1.bf16.msra.mxu0 0
    %249 = vmatprep.subr.bf16.mxu0 0
    %250 = vmatpush1.bf16.msra.mxu0 0
    %251 = vmatprep.subr.bf16.mxu0 0
    %252 = vmatpush1.bf16.msra.mxu0 0
    %253 = vmatprep.subr.bf16.mxu0 0
    %254 = vmatpush1.bf16.msra.mxu0 0
    %255 = vmatprep.subr.bf16.mxu0 0
    %256 = vmatpush1.bf16.msra.mxu0 0
    %257 = vmatprep.subr.bf16.mxu0 %v189
    %258 = vmatpush1.bf16.msra.mxu0 %v188
    %259 = vmatprep.subr.bf16.mxu0 %v185
    %260 = vmatpush1.bf16.msra.mxu0 %v184
    %261 = vmatprep.subr.bf16.mxu0 0
    %262 = vmatpush2.bf16.msra.mxu0 0
    %263 = vmatprep.subr.bf16.mxu0 0
    %264 = vmatpush2.bf16.msra.mxu0 0
    %265 = vmatprep.subr.bf16.mxu0 0
    %266 = vmatpush2.bf16.msra.mxu0 0
    %267 = vmatprep.subr.bf16.mxu0 0
    %268 = vmatpush2.bf16.msra.mxu0 0
    %269 = vmatprep.subr.bf16.mxu0 0
    %270 = vmatpush2.bf16.msra.mxu0 0
    %271 = vmatprep.subr.bf16.mxu0 0
    %272 = vmatpush2.bf16.msra.mxu0 0
    %273 = vmatprep.subr.bf16.mxu0 0
    %274 = vmatpush2.bf16.msra.mxu0 0
    %275 = vmatprep.subr.bf16.mxu0 0
    %276 = vmatpush2.bf16.msra.mxu0 0
    %277 = vmatprep.mubr.bf16.mxu0 0
    %278 = vmatmul.mubr.bf16.gmra.mxu0 %v200
    %v279 = vpop.f32.mrf.mxu0
    %v280 = vadd.f32 %v144, %v279
    %v281 = vpop.f32.mrf.mxu0
    %v282 = vadd.f32 %v148, %v281
    %v283 = vpop.f32.mrf.mxu0
    %v284 = vadd.f32 %v144, %v283
    %v285 = vpop.f32.mrf.mxu0
    %v286 = vadd.f32 %v148, %v285
    %287 = vdwg.mxu0
    %v320 = vunpack.c.l.b16 %v99
    %v321 = vunpack.c.h.b16 %v99
    %v322 = vunpack.c.l.b16 %v100
    %v323 = vunpack.c.h.b16 %v100
    %v324 = vunpack.c.l.b16 %v101
    %v325 = vunpack.c.h.b16 %v101
    %v326 = vunpack.c.l.b16 %v102
    %v327 = vunpack.c.h.b16 %v102
    %v328 = vunpack.c.l.b16 %v103
    %v329 = vunpack.c.h.b16 %v103
    %v330 = vunpack.c.l.b16 %v104
    %v331 = vunpack.c.h.b16 %v104
    %v332 = vunpack.c.l.b16 %v105
    %v333 = vunpack.c.h.b16 %v105
    %v334 = vunpack.c.l.b16 %v106
    %v335 = vunpack.c.h.b16 %v106
    %v336 = vunpack.c.l.b16 %v107
    %v337 = vunpack.c.h.b16 %v107
    %v338 = vunpack.c.l.b16 %v108
    %v339 = vunpack.c.h.b16 %v108
    %v340 = vunpack.c.l.b16 %v109
    %v341 = vunpack.c.h.b16 %v109
    %v342 = vunpack.c.l.b16 %v110
    %v343 = vunpack.c.h.b16 %v110
    %v344 = vunpack.c.l.b16 %v111
    %v345 = vunpack.c.h.b16 %v111
    %v346 = vunpack.c.l.b16 %v112
    %v347 = vunpack.c.h.b16 %v112
    %v348 = vunpack.c.l.b16 %v113
    %v349 = vunpack.c.h.b16 %v113
    %v350 = vunpack.c.l.b16 %v114
    %v351 = vunpack.c.h.b16 %v114
    %v352 = vunpack.c.l.b16 %v115
    %v353 = vunpack.c.h.b16 %v115
    %v354 = vunpack.c.l.b16 %v116
    %v355 = vunpack.c.h.b16 %v116
    %v356 = vunpack.c.l.b16 %v117
    %v357 = vunpack.c.h.b16 %v117
    %v358 = vunpack.c.l.b16 %v118
    %v359 = vunpack.c.h.b16 %v118
    %v360 = vunpack.c.l.b16 %v119
    %v361 = vunpack.c.h.b16 %v119
    %v362 = vunpack.c.l.b16 %v120
    %v363 = vunpack.c.h.b16 %v120
    %v364 = vunpack.c.l.b16 %v121
    %v365 = vunpack.c.h.b16 %v121
    %v366 = vunpack.c.l.b16 %v122
    %v367 = vunpack.c.h.b16 %v122
    %v368 = vunpack.c.l.b16 %v123
    %v369 = vunpack.c.h.b16 %v123
    %v370 = vunpack.c.l.b16 %v124
    %v371 = vunpack.c.h.b16 %v124
    %v372 = vunpack.c.l.b16 %v125
    %v373 = vunpack.c.h.b16 %v125
    %v374 = vunpack.c.l.b16 %v126
    %v375 = vunpack.c.h.b16 %v126
    %v376 = vunpack.c.l.b16 %v127
    %v377 = vunpack.c.h.b16 %v127
    %v378 = vunpack.c.l.b16 %v128
    %v379 = vunpack.c.h.b16 %v128
    %v380 = vunpack.c.l.b16 %v129
    %v381 = vunpack.c.h.b16 %v129
    %v382 = vunpack.c.l.b16 %v130
    %v383 = vunpack.c.h.b16 %v130
    %v384 = vpack.c.b16 %v324, %v320
    %v385 = vpack.c.b16 %v325, %v321
    %v386 = vpack.c.b16 %v326, %v322
    %v387 = vpack.c.b16 %v327, %v323
    %v388 = vpack.c.b16 %v332, %v328
    %v389 = vpack.c.b16 %v333, %v329
    %v390 = vpack.c.b16 %v334, %v330
    %v391 = vpack.c.b16 %v335, %v331
    %v392 = vpack.c.b16 %v340, %v336
    %v393 = vpack.c.b16 %v341, %v337
    %v394 = vpack.c.b16 %v342, %v338
    %v395 = vpack.c.b16 %v343, %v339
    %v396 = vpack.c.b16 %v348, %v344
    %v397 = vpack.c.b16 %v349, %v345
    %v398 = vpack.c.b16 %v350, %v346
    %v399 = vpack.c.b16 %v351, %v347
    %v400 = vpack.c.b16 %v356, %v352
    %v401 = vpack.c.b16 %v357, %v353
    %v402 = vpack.c.b16 %v358, %v354
    %v403 = vpack.c.b16 %v359, %v355
    %v404 = vpack.c.b16 %v364, %v360
    %v405 = vpack.c.b16 %v365, %v361
    %v406 = vpack.c.b16 %v366, %v362
    %v407 = vpack.c.b16 %v367, %v363
    %v408 = vpack.c.b16 %v372, %v368
    %v409 = vpack.c.b16 %v373, %v369
    %v410 = vpack.c.b16 %v374, %v370
    %v411 = vpack.c.b16 %v375, %v371
    %v412 = vpack.c.b16 %v380, %v376
    %v413 = vpack.c.b16 %v381, %v377
    %v414 = vpack.c.b16 %v382, %v378
    %v415 = vpack.c.b16 %v383, %v379
    %448 = vmatprep.subr.bf16.mxu0 %v413
    %449 = vmatpush1.bf16.msra.mxu0 %v412
    %450 = vmatprep.subr.bf16.mxu0 %v409
    %451 = vmatpush1.bf16.msra.mxu0 %v408
    %452 = vmatprep.subr.bf16.mxu0 %v405
    %453 = vmatpush1.bf16.msra.mxu0 %v404
    %454 = vmatprep.subr.bf16.mxu0 %v401
    %455 = vmatpush1.bf16.msra.mxu0 %v400
    %456 = vmatprep.subr.bf16.mxu0 %v397
    %457 = vmatpush1.bf16.msra.mxu0 %v396
    %458 = vmatprep.subr.bf16.mxu0 %v393
    %459 = vmatpush1.bf16.msra.mxu0 %v392
    %460 = vmatprep.subr.bf16.mxu0 %v389
    %461 = vmatpush1.bf16.msra.mxu0 %v388
    %462 = vmatprep.subr.bf16.mxu0 %v385
    %463 = vmatpush1.bf16.msra.mxu0 %v384
    %464 = vmatprep.subr.bf16.mxu0 0
    %465 = vmatpush2.bf16.msra.mxu0 0
    %466 = vmatprep.subr.bf16.mxu0 0
    %467 = vmatpush2.bf16.msra.mxu0 0
    %468 = vmatprep.subr.bf16.mxu0 0
    %469 = vmatpush2.bf16.msra.mxu0 0
    %470 = vmatprep.subr.bf16.mxu0 0
    %471 = vmatpush2.bf16.msra.mxu0 0
    %472 = vmatprep.subr.bf16.mxu0 0
    %473 = vmatpush2.bf16.msra.mxu0 0
    %474 = vmatprep.subr.bf16.mxu0 0
    %475 = vmatpush2.bf16.msra.mxu0 0
    %476 = vmatprep.subr.bf16.mxu0 0
    %477 = vmatpush2.bf16.msra.mxu0 0
    %478 = vmatprep.subr.bf16.mxu0 0
    %479 = vmatpush2.bf16.msra.mxu0 0
    %480 = vmatprep.mubr.bf16.mxu0 0
    %481 = vmatmul.mubr.bf16.gmra.mxu0 0
    %v482 = vpop.f32.mrf.mxu0
    %v483 = vadd.f32 0.0, %v482
    %v484 = vpop.f32.mrf.mxu0
    %v485 = vadd.f32 0.0, %v484
    %v486 = vpop.f32.mrf.mxu0
    %v487 = vpop.f32.mrf.mxu0
    %488 = vdwg.mxu0
    %489 = vmatprep.subr.bf16.mxu0 %v415
    %490 = vmatpush1.bf16.msra.mxu0 %v414
    %491 = vmatprep.subr.bf16.mxu0 %v411
    %492 = vmatpush1.bf16.msra.mxu0 %v410
    %493 = vmatprep.subr.bf16.mxu0 %v407
    %494 = vmatpush1.bf16.msra.mxu0 %v406
    %495 = vmatprep.subr.bf16.mxu0 %v403
    %496 = vmatpush1.bf16.msra.mxu0 %v402
    %497 = vmatprep.subr.bf16.mxu0 %v399
    %498 = vmatpush1.bf16.msra.mxu0 %v398
    %499 = vmatprep.subr.bf16.mxu0 %v395
    %500 = vmatpush1.bf16.msra.mxu0 %v394
    %501 = vmatprep.subr.bf16.mxu0 %v391
    %502 = vmatpush1.bf16.msra.mxu0 %v390
    %503 = vmatprep.subr.bf16.mxu0 %v387
    %504 = vmatpush1.bf16.msra.mxu0 %v386
    %505 = vmatprep.subr.bf16.mxu0 0
    %506 = vmatpush2.bf16.msra.mxu0 0
    %507 = vmatprep.subr.bf16.mxu0 0
    %508 = vmatpush2.bf16.msra.mxu0 0
    %509 = vmatprep.subr.bf16.mxu0 0
    %510 = vmatpush2.bf16.msra.mxu0 0
    %511 = vmatprep.subr.bf16.mxu0 0
    %512 = vmatpush2.bf16.msra.mxu0 0
    %513 = vmatprep.subr.bf16.mxu0 0
    %514 = vmatpush2.bf16.msra.mxu0 0
    %515 = vmatprep.subr.bf16.mxu0 0
    %516 = vmatpush2.bf16.msra.mxu0 0
    %517 = vmatprep.subr.bf16.mxu0 0
    %518 = vmatpush2.bf16.msra.mxu0 0
    %519 = vmatprep.subr.bf16.mxu0 0
    %520 = vmatpush2.bf16.msra.mxu0 0
    %521 = vmatprep.mubr.bf16.mxu0 0
    %522 = vmatmul.mubr.bf16.gmra.mxu0 0
    %v523 = vpop.f32.mrf.mxu0
    %v524 = vadd.f32 0.0, %v523
    %v525 = vpop.f32.mrf.mxu0
    %v526 = vadd.f32 0.0, %v525
    %v527 = vpop.f32.mrf.mxu0
    %v528 = vpop.f32.mrf.mxu0
    %529 = vdwg.mxu0
    %v530 = vadd.f32 %v237, %v483
    %v531 = vadd.f32 %v239, %v485
    %v532 = vadd.f32 %v280, %v524
    %v533 = vadd.f32 %v282, %v526
    %v534 = vxor.u32 %v530, 2147483648
    %v535 = vmul.f32 %v534, 1.442695
    %v536 = vpow.pop %v535
    %v537 = vadd.f32 %v536, 1.0
    %v538 = vrcp.pop %v537
    %v539 = vmul.f32 1.0, %v538
    %v540 = vxor.u32 %v531, 2147483648
    %v541 = vmul.f32 %v540, 1.442695
    %v542 = vpow.pop %v541
    %v543 = vadd.f32 %v542, 1.0
    %v544 = vrcp.pop %v543
    %v545 = vmul.f32 1.0, %v544
    %v546 = vxor.u32 %v532, 2147483648
    %v547 = vmul.f32 %v546, 1.442695
    %v548 = vpow.pop %v547
    %v549 = vadd.f32 %v548, 1.0
    %v550 = vrcp.pop %v549
    %v551 = vmul.f32 1.0, %v550
    %v552 = vtanh.pop %v533
    %v553 = vmul.f32 %v545, 0.0
    %v554 = vmul.f32 %v539, %v552
    %v555 = vadd.f32 %v553, %v554
    %v556 = vtanh.pop %v555
    %v557 = vmul.f32 %v551, %v556
    %558 = vst [vmem:[#allocation2] sm:$0x3] %v557
    %v559 = vpack.c.bf16 %v557, %v557
    %560 = vmatprep.subr.bf16.mxu0 %v413
    %561 = vmatpush1.bf16.msra.mxu0 %v412
    %562 = vmatprep.subr.bf16.mxu0 %v409
    %563 = vmatpush1.bf16.msra.mxu0 %v408
    %564 = vmatprep.subr.bf16.mxu0 %v405
    %565 = vmatpush1.bf16.msra.mxu0 %v404
    %566 = vmatprep.subr.bf16.mxu0 %v401
    %567 = vmatpush1.bf16.msra.mxu0 %v400
    %568 = vmatprep.subr.bf16.mxu0 %v397
    %569 = vmatpush1.bf16.msra.mxu0 %v396
    %570 = vmatprep.subr.bf16.mxu0 %v393
    %571 = vmatpush1.bf16.msra.mxu0 %v392
    %572 = vmatprep.subr.bf16.mxu0 %v389
    %573 = vmatpush1.bf16.msra.mxu0 %v388
    %574 = vmatprep.subr.bf16.mxu0 %v385
    %575 = vmatpush1.bf16.msra.mxu0 %v384
    %576 = vmatprep.subr.bf16.mxu0 0
    %577 = vmatpush2.bf16.msra.mxu0 0
    %578 = vmatprep.subr.bf16.mxu0 0
    %579 = vmatpush2.bf16.msra.mxu0 0
    %580 = vmatprep.subr.bf16.mxu0 0
    %581 = vmatpush2.bf16.msra.mxu0 0
    %582 = vmatprep.subr.bf16.mxu0 0
    %583 = vmatpush2.bf16.msra.mxu0 0
    %584 = vmatprep.subr.bf16.mxu0 0
    %585 = vmatpush2.bf16.msra.mxu0 0
    %586 = vmatprep.subr.bf16.mxu0 0
    %587 = vmatpush2.bf16.msra.mxu0 0
    %588 = vmatprep.subr.bf16.mxu0 0
    %589 = vmatpush2.bf16.msra.mxu0 0
    %590 = vmatprep.subr.bf16.mxu0 0
    %591 = vmatpush2.bf16.msra.mxu0 0
    %592 = vmatprep.mubr.bf16.mxu0 0
    %593 = vmatmul.mubr.bf16.gmra.mxu0 %v559
    %v594 = vpop.f32.mrf.mxu0
    %v595 = vadd.f32 0.0, %v594
    %v596 = vpop.f32.mrf.mxu0
    %v597 = vadd.f32 0.0, %v596
    %v598 = vpop.f32.mrf.mxu0
    %v599 = vpop.f32.mrf.mxu0
    %600 = vdwg.mxu0
    %601 = vmatprep.subr.bf16.mxu0 %v415
    %602 = vmatpush1.bf16.msra.mxu0 %v414
    %603 = vmatprep.subr.bf16.mxu0 %v411
    %604 = vmatpush1.bf16.msra.mxu0 %v410
    %605 = vmatprep.subr.bf16.mxu0 %v407
    %606 = vmatpush1.bf16.msra.mxu0 %v406
    %607 = vmatprep.subr.bf16.mxu0 %v403
    %608 = vmatpush1.bf16.msra.mxu0 %v402
    %609 = vmatprep.subr.bf16.mxu0 %v399
    %610 = vmatpush1.bf16.msra.mxu0 %v398
    %611 = vmatprep.subr.bf16.mxu0 %v395
    %612 = vmatpush1.bf16.msra.mxu0 %v394
    %613 = vmatprep.subr.bf16.mxu0 %v391
    %614 = vmatpush1.bf16.msra.mxu0 %v390
    %615 = vmatprep.subr.bf16.mxu0 %v387
    %616 = vmatpush1.bf16.msra.mxu0 %v386
    %617 = vmatprep.subr.bf16.mxu0 0
    %618 = vmatpush2.bf16.msra.mxu0 0
    %619 = vmatprep.subr.bf16.mxu0 0
    %620 = vmatpush2.bf16.msra.mxu0 0
    %621 = vmatprep.subr.bf16.mxu0 0
    %622 = vmatpush2.bf16.msra.mxu0 0
    %623 = vmatprep.subr.bf16.mxu0 0
    %624 = vmatpush2.bf16.msra.mxu0 0
    %625 = vmatprep.subr.bf16.mxu0 0
    %626 = vmatpush2.bf16.msra.mxu0 0
    %627 = vmatprep.subr.bf16.mxu0 0
    %628 = vmatpush2.bf16.msra.mxu0 0
    %629 = vmatprep.subr.bf16.mxu0 0
    %630 = vmatpush2.bf16.msra.mxu0 0
    %631 = vmatprep.subr.bf16.mxu0 0
    %632 = vmatpush2.bf16.msra.mxu0 0
    %633 = vmatprep.mubr.bf16.mxu0 0
    %634 = vmatmul.mubr.bf16.gmra.mxu0 %v559
    %v635 = vpop.f32.mrf.mxu0
    %v636 = vadd.f32 0.0, %v635
    %v637 = vpop.f32.mrf.mxu0
    %v638 = vadd.f32 0.0, %v637
    %v639 = vpop.f32.mrf.mxu0
    %v640 = vpop.f32.mrf.mxu0
    %641 = vdwg.mxu0
    %v646 = vrot.slane %v595, 6
    %v647 = vrot.slane %v597, 6
    %v648 = vrot.slane %v636, 6
    %v649 = vrot.slane %v638, 6
    %v654 = vadd.f32 %v237, %v646
    %v655 = vadd.f32 %v239, %v647
    %v656 = vadd.f32 %v280, %v648
    %v657 = vadd.f32 %v282, %v649
    %v658 = vxor.u32 %v654, 2147483648
    %v659 = vmul.f32 %v658, 1.442695
    %v660 = vpow.pop %v659
    %v661 = vadd.f32 %v660, 1.0
    %v662 = vrcp.pop %v661
    %v663 = vmul.f32 1.0, %v662
    %v664 = vxor.u32 %v655, 2147483648
    %v665 = vmul.f32 %v664, 1.442695
    %v666 = vpow.pop %v665
    %v667 = vadd.f32 %v666, 1.0
    %v668 = vrcp.pop %v667
    %v669 = vmul.f32 1.0, %v668
    %v670 = vxor.u32 %v656, 2147483648
    %v671 = vmul.f32 %v670, 1.442695
    %v672 = vpow.pop %v671
    %v673 = vadd.f32 %v672, 1.0
    %v674 = vrcp.pop %v673
    %v675 = vmul.f32 1.0, %v674
    %v676 = vtanh.pop %v657
    %v678 = vrot.slane %v555, 6
    %v680 = vmul.f32 %v669, %v678
    %v681 = vmul.f32 %v663, %v676
    %v682 = vadd.f32 %v680, %v681
    %v683 = vtanh.pop %v682
    %v684 = vmul.f32 %v675, %v683
    %685 = vst [vmem:[#allocation2] sm:$0xc] %v684
    %v686 = vpack.c.bf16 %v684, %v684
    %v688 = vrot.slane %v686, 1
    %690 = vmatprep.subr.bf16.mxu0 %v413
    %691 = vmatpush1.bf16.msra.mxu0 %v412
    %692 = vmatprep.subr.bf16.mxu0 %v409
    %693 = vmatpush1.bf16.msra.mxu0 %v408
    %694 = vmatprep.subr.bf16.mxu0 %v405
    %695 = vmatpush1.bf16.msra.mxu0 %v404
    %696 = vmatprep.subr.bf16.mxu0 %v401
    %697 = vmatpush1.bf16.msra.mxu0 %v400
    %698 = vmatprep.subr.bf16.mxu0 %v397
    %699 = vmatpush1.bf16.msra.mxu0 %v396
    %700 = vmatprep.subr.bf16.mxu0 %v393
    %701 = vmatpush1.bf16.msra.mxu0 %v392
    %702 = vmatprep.subr.bf16.mxu0 %v389
    %703 = vmatpush1.bf16.msra.mxu0 %v388
    %704 = vmatprep.subr.bf16.mxu0 %v385
    %705 = vmatpush1.bf16.msra.mxu0 %v384
    %706 = vmatprep.subr.bf16.mxu0 0
    %707 = vmatpush2.bf16.msra.mxu0 0
    %708 = vmatprep.subr.bf16.mxu0 0
    %709 = vmatpush2.bf16.msra.mxu0 0
    %710 = vmatprep.subr.bf16.mxu0 0
    %711 = vmatpush2.bf16.msra.mxu0 0
    %712 = vmatprep.subr.bf16.mxu0 0
    %713 = vmatpush2.bf16.msra.mxu0 0
    %714 = vmatprep.subr.bf16.mxu0 0
    %715 = vmatpush2.bf16.msra.mxu0 0
    %716 = vmatprep.subr.bf16.mxu0 0
    %717 = vmatpush2.bf16.msra.mxu0 0
    %718 = vmatprep.subr.bf16.mxu0 0
    %719 = vmatpush2.bf16.msra.mxu0 0
    %720 = vmatprep.subr.bf16.mxu0 0
    %721 = vmatpush2.bf16.msra.mxu0 0
    %722 = vmatprep.mubr.bf16.mxu0 0
    %723 = vmatmul.mubr.bf16.gmra.mxu0 %v688
    %v724 = vpop.f32.mrf.mxu0
    %v725 = vadd.f32 0.0, %v724
    %v726 = vpop.f32.mrf.mxu0
    %v727 = vadd.f32 0.0, %v726
    %v728 = vpop.f32.mrf.mxu0
    %v729 = vpop.f32.mrf.mxu0
    %730 = vdwg.mxu0
    %731 = vmatprep.subr.bf16.mxu0 %v415
    %732 = vmatpush1.bf16.msra.mxu0 %v414
    %733 = vmatprep.subr.bf16.mxu0 %v411
    %734 = vmatpush1.bf16.msra.mxu0 %v410
    %735 = vmatprep.subr.bf16.mxu0 %v407
    %736 = vmatpush1.bf16.msra.mxu0 %v406
    %737 = vmatprep.subr.bf16.mxu0 %v403
    %738 = vmatpush1.bf16.msra.mxu0 %v402
    %739 = vmatprep.subr.bf16.mxu0 %v399
    %740 = vmatpush1.bf16.msra.mxu0 %v398
    %741 = vmatprep.subr.bf16.mxu0 %v395
    %742 = vmatpush1.bf16.msra.mxu0 %v394
    %743 = vmatprep.subr.bf16.mxu0 %v391
    %744 = vmatpush1.bf16.msra.mxu0 %v390
    %745 = vmatprep.subr.bf16.mxu0 %v387
    %746 = vmatpush1.bf16.msra.mxu0 %v386
    %747 = vmatprep.subr.bf16.mxu0 0
    %748 = vmatpush2.bf16.msra.mxu0 0
    %749 = vmatprep.subr.bf16.mxu0 0
    %750 = vmatpush2.bf16.msra.mxu0 0
    %751 = vmatprep.subr.bf16.mxu0 0
    %752 = vmatpush2.bf16.msra.mxu0 0
    %753 = vmatprep.subr.bf16.mxu0 0
    %754 = vmatpush2.bf16.msra.mxu0 0
    %755 = vmatprep.subr.bf16.mxu0 0
    %756 = vmatpush2.bf16.msra.mxu0 0
    %757 = vmatprep.subr.bf16.mxu0 0
    %758 = vmatpush2.bf16.msra.mxu0 0
    %759 = vmatprep.subr.bf16.mxu0 0
    %760 = vmatpush2.bf16.msra.mxu0 0
    %761 = vmatprep.subr.bf16.mxu0 0
    %762 = vmatpush2.bf16.msra.mxu0 0
    %763 = vmatprep.mubr.bf16.mxu0 0
    %764 = vmatmul.mubr.bf16.gmra.mxu0 %v688
    %v765 = vpop.f32.mrf.mxu0
    %v766 = vadd.f32 0.0, %v765
    %v767 = vpop.f32.mrf.mxu0
    %v768 = vadd.f32 0.0, %v767
    %v769 = vpop.f32.mrf.mxu0
    %v770 = vpop.f32.mrf.mxu0
    %771 = vdwg.mxu0
    %v776 = vrot.slane %v725, 4
    %v777 = vrot.slane %v727, 4
    %v778 = vrot.slane %v766, 4
    %v779 = vrot.slane %v768, 4
    %v784 = vadd.f32 %v237, %v776
    %v785 = vadd.f32 %v239, %v777
    %v786 = vadd.f32 %v280, %v778
    %v787 = vadd.f32 %v282, %v779
    %v788 = vxor.u32 %v784, 2147483648
    %v789 = vmul.f32 %v788, 1.442695
    %v790 = vpow.pop %v789
    %v791 = vadd.f32 %v790, 1.0
    %v792 = vrcp.pop %v791
    %v793 = vmul.f32 1.0, %v792
    %v794 = vxor.u32 %v785, 2147483648
    %v795 = vmul.f32 %v794, 1.442695
    %v796 = vpow.pop %v795
    %v797 = vadd.f32 %v796, 1.0
    %v798 = vrcp.pop %v797
    %v799 = vmul.f32 1.0, %v798
    %v800 = vxor.u32 %v786, 2147483648
    %v801 = vmul.f32 %v800, 1.442695
    %v802 = vpow.pop %v801
    %v803 = vadd.f32 %v802, 1.0
    %v804 = vrcp.pop %v803
    %v805 = vmul.f32 1.0, %v804
    %v806 = vtanh.pop %v787
    %v808 = vrot.slane %v682, 6
    %v810 = vmul.f32 %v799, %v808
    %v811 = vmul.f32 %v793, %v806
    %v812 = vadd.f32 %v810, %v811
    %v813 = vtanh.pop %v812
    %v814 = vmul.f32 %v805, %v813
    %815 = vst [vmem:[#allocation2] sm:$0x30] %v814
    %v816 = vpack.c.bf16 %v814, %v814
    %v818 = vrot.slane %v816, 2
    %820 = vmatprep.subr.bf16.mxu0 %v413
    %821 = vmatpush1.bf16.msra.mxu0 %v412
    %822 = vmatprep.subr.bf16.mxu0 %v409
    %823 = vmatpush1.bf16.msra.mxu0 %v408
    %824 = vmatprep.subr.bf16.mxu0 %v405
    %825 = vmatpush1.bf16.msra.mxu0 %v404
    %826 = vmatprep.subr.bf16.mxu0 %v401
    %827 = vmatpush1.bf16.msra.mxu0 %v400
    %828 = vmatprep.subr.bf16.mxu0 %v397
    %829 = vmatpush1.bf16.msra.mxu0 %v396
    %830 = vmatprep.subr.bf16.mxu0 %v393
    %831 = vmatpush1.bf16.msra.mxu0 %v392
    %832 = vmatprep.subr.bf16.mxu0 %v389
    %833 = vmatpush1.bf16.msra.mxu0 %v388
    %834 = vmatprep.subr.bf16.mxu0 %v385
    %835 = vmatpush1.bf16.msra.mxu0 %v384
    %836 = vmatprep.subr.bf16.mxu0 0
    %837 = vmatpush2.bf16.msra.mxu0 0
    %838 = vmatprep.subr.bf16.mxu0 0
    %839 = vmatpush2.bf16.msra.mxu0 0
    %840 = vmatprep.subr.bf16.mxu0 0
    %841 = vmatpush2.bf16.msra.mxu0 0
    %842 = vmatprep.subr.bf16.mxu0 0
    %843 = vmatpush2.bf16.msra.mxu0 0
    %844 = vmatprep.subr.bf16.mxu0 0
    %845 = vmatpush2.bf16.msra.mxu0 0
    %846 = vmatprep.subr.bf16.mxu0 0
    %847 = vmatpush2.bf16.msra.mxu0 0
    %848 = vmatprep.subr.bf16.mxu0 0
    %849 = vmatpush2.bf16.msra.mxu0 0
    %850 = vmatprep.subr.bf16.mxu0 0
    %851 = vmatpush2.bf16.msra.mxu0 0
    %852 = vmatprep.mubr.bf16.mxu0 0
    %853 = vmatmul.mubr.bf16.gmra.mxu0 %v818
    %v854 = vpop.f32.mrf.mxu0
    %v855 = vadd.f32 0.0, %v854
    %v856 = vpop.f32.mrf.mxu0
    %v857 = vadd.f32 0.0, %v856
    %v858 = vpop.f32.mrf.mxu0
    %v859 = vpop.f32.mrf.mxu0
    %860 = vdwg.mxu0
    %861 = vmatprep.subr.bf16.mxu0 %v415
    %862 = vmatpush1.bf16.msra.mxu0 %v414
    %863 = vmatprep.subr.bf16.mxu0 %v411
    %864 = vmatpush1.bf16.msra.mxu0 %v410
    %865 = vmatprep.subr.bf16.mxu0 %v407
    %866 = vmatpush1.bf16.msra.mxu0 %v406
    %867 = vmatprep.subr.bf16.mxu0 %v403
    %868 = vmatpush1.bf16.msra.mxu0 %v402
    %869 = vmatprep.subr.bf16.mxu0 %v399
    %870 = vmatpush1.bf16.msra.mxu0 %v398
    %871 = vmatprep.subr.bf16.mxu0 %v395
    %872 = vmatpush1.bf16.msra.mxu0 %v394
    %873 = vmatprep.subr.bf16.mxu0 %v391
    %874 = vmatpush1.bf16.msra.mxu0 %v390
    %875 = vmatprep.subr.bf16.mxu0 %v387
    %876 = vmatpush1.bf16.msra.mxu0 %v386
    %877 = vmatprep.subr.bf16.mxu0 0
    %878 = vmatpush2.bf16.msra.mxu0 0
    %879 = vmatprep.subr.bf16.mxu0 0
    %880 = vmatpush2.bf16.msra.mxu0 0
    %881 = vmatprep.subr.bf16.mxu0 0
    %882 = vmatpush2.bf16.msra.mxu0 0
    %883 = vmatprep.subr.bf16.mxu0 0
    %884 = vmatpush2.bf16.msra.mxu0 0
    %885 = vmatprep.subr.bf16.mxu0 0
    %886 = vmatpush2.bf16.msra.mxu0 0
    %887 = vmatprep.subr.bf16.mxu0 0
    %888 = vmatpush2.bf16.msra.mxu0 0
    %889 = vmatprep.subr.bf16.mxu0 0
    %890 = vmatpush2.bf16.msra.mxu0 0
    %891 = vmatprep.subr.bf16.mxu0 0
    %892 = vmatpush2.bf16.msra.mxu0 0
    %893 = vmatprep.mubr.bf16.mxu0 0
    %894 = vmatmul.mubr.bf16.gmra.mxu0 %v818
    %v895 = vpop.f32.mrf.mxu0
    %v896 = vadd.f32 0.0, %v895
    %v897 = vpop.f32.mrf.mxu0
    %v898 = vadd.f32 0.0, %v897
    %v899 = vpop.f32.mrf.mxu0
    %v900 = vpop.f32.mrf.mxu0
    %901 = vdwg.mxu0
    %v906 = vrot.slane %v855, 2
    %v907 = vrot.slane %v857, 2
    %v908 = vrot.slane %v896, 2
    %v909 = vrot.slane %v898, 2
    %v914 = vadd.f32 %v237, %v906
    %v915 = vadd.f32 %v239, %v907
    %v916 = vadd.f32 %v280, %v908
    %v917 = vadd.f32 %v282, %v909
    %v918 = vxor.u32 %v914, 2147483648
    %v919 = vmul.f32 %v918, 1.442695
    %v920 = vpow.pop %v919
    %v921 = vadd.f32 %v920, 1.0
    %v922 = vrcp.pop %v921
    %v923 = vmul.f32 1.0, %v922
    %v924 = vxor.u32 %v915, 2147483648
    %v925 = vmul.f32 %v924, 1.442695
    %v926 = vpow.pop %v925
    %v927 = vadd.f32 %v926, 1.0
    %v928 = vrcp.pop %v927
    %v929 = vmul.f32 1.0, %v928
    %v930 = vxor.u32 %v916, 2147483648
    %v931 = vmul.f32 %v930, 1.442695
    %v932 = vpow.pop %v931
    %v933 = vadd.f32 %v932, 1.0
    %v934 = vrcp.pop %v933
    %v935 = vmul.f32 1.0, %v934
    %v936 = vtanh.pop %v917
    %v938 = vrot.slane %v812, 6
    %v940 = vmul.f32 %v929, %v938
    %v941 = vmul.f32 %v923, %v936
    %v942 = vadd.f32 %v940, %v941
    %v943 = vtanh.pop %v942
    %v944 = vmul.f32 %v935, %v943
    %945 = vst [vmem:[#allocation2] sm:$0xc0] %v944
    %v946 = vpack.c.bf16 %v944, %v944
    %v948 = vrot.slane %v946, 3
    %950 = vmatprep.subr.bf16.mxu0 %v413
    %951 = vmatpush1.bf16.msra.mxu0 %v412
    %952 = vmatprep.subr.bf16.mxu0 %v409
    %953 = vmatpush1.bf16.msra.mxu0 %v408
    %954 = vmatprep.subr.bf16.mxu0 %v405
    %955 = vmatpush1.bf16.msra.mxu0 %v404
    %956 = vmatprep.subr.bf16.mxu0 %v401
    %957 = vmatpush1.bf16.msra.mxu0 %v400
    %958 = vmatprep.subr.bf16.mxu0 %v397
    %959 = vmatpush1.bf16.msra.mxu0 %v396
    %960 = vmatprep.subr.bf16.mxu0 %v393
    %961 = vmatpush1.bf16.msra.mxu0 %v392
    %962 = vmatprep.subr.bf16.mxu0 %v389
    %963 = vmatpush1.bf16.msra.mxu0 %v388
    %964 = vmatprep.subr.bf16.mxu0 %v385
    %965 = vmatpush1.bf16.msra.mxu0 %v384
    %966 = vmatprep.subr.bf16.mxu0 0
    %967 = vmatpush2.bf16.msra.mxu0 0
    %968 = vmatprep.subr.bf16.mxu0 0
    %969 = vmatpush2.bf16.msra.mxu0 0
    %970 = vmatprep.subr.bf16.mxu0 0
    %971 = vmatpush2.bf16.msra.mxu0 0
    %972 = vmatprep.subr.bf16.mxu0 0
    %973 = vmatpush2.bf16.msra.mxu0 0
    %974 = vmatprep.subr.bf16.mxu0 0
    %975 = vmatpush2.bf16.msra.mxu0 0
    %976 = vmatprep.subr.bf16.mxu0 0
    %977 = vmatpush2.bf16.msra.mxu0 0
    %978 = vmatprep.subr.bf16.mxu0 0
    %979 = vmatpush2.bf16.msra.mxu0 0
    %980 = vmatprep.subr.bf16.mxu0 0
    %981 = vmatpush2.bf16.msra.mxu0 0
    %982 = vmatprep.mubr.bf16.mxu0 0
    %983 = vmatmul.mubr.bf16.gmra.mxu0 %v948
    %v984 = vpop.f32.mrf.mxu0
    %v985 = vadd.f32 0.0, %v984
    %v986 = vpop.f32.mrf.mxu0
    %v987 = vadd.f32 0.0, %v986
    %v988 = vpop.f32.mrf.mxu0
    %v989 = vpop.f32.mrf.mxu0
    %990 = vdwg.mxu0
    %991 = vmatprep.subr.bf16.mxu0 %v415
    %992 = vmatpush1.bf16.msra.mxu0 %v414
    %993 = vmatprep.subr.bf16.mxu0 %v411
    %994 = vmatpush1.bf16.msra.mxu0 %v410
    %995 = vmatprep.subr.bf16.mxu0 %v407
    %996 = vmatpush1.bf16.msra.mxu0 %v406
    %997 = vmatprep.subr.bf16.mxu0 %v403
    %998 = vmatpush1.bf16.msra.mxu0 %v402
    %999 = vmatprep.subr.bf16.mxu0 %v399
    %1000 = vmatpush1.bf16.msra.mxu0 %v398
    %1001 = vmatprep.subr.bf16.mxu0 %v395
    %1002 = vmatpush1.bf16.msra.mxu0 %v394
    %1003 = vmatprep.subr.bf16.mxu0 %v391
    %1004 = vmatpush1.bf16.msra.mxu0 %v390
    %1005 = vmatprep.subr.bf16.mxu0 %v387
    %1006 = vmatpush1.bf16.msra.mxu0 %v386
    %1007 = vmatprep.subr.bf16.mxu0 0
    %1008 = vmatpush2.bf16.msra.mxu0 0
    %1009 = vmatprep.subr.bf16.mxu0 0
    %1010 = vmatpush2.bf16.msra.mxu0 0
    %1011 = vmatprep.subr.bf16.mxu0 0
    %1012 = vmatpush2.bf16.msra.mxu0 0
    %1013 = vmatprep.subr.bf16.mxu0 0
    %1014 = vmatpush2.bf16.msra.mxu0 0
    %1015 = vmatprep.subr.bf16.mxu0 0
    %1016 = vmatpush2.bf16.msra.mxu0 0
    %1017 = vmatprep.subr.bf16.mxu0 0
    %1018 = vmatpush2.bf16.msra.mxu0 0
    %1019 = vmatprep.subr.bf16.mxu0 0
    %1020 = vmatpush2.bf16.msra.mxu0 0
    %1021 = vmatprep.subr.bf16.mxu0 0
    %1022 = vmatpush2.bf16.msra.mxu0 0
    %1023 = vmatprep.mubr.bf16.mxu0 0
    %1024 = vmatmul.mubr.bf16.gmra.mxu0 %v948
    %v1025 = vpop.f32.mrf.mxu0
    %v1026 = vadd.f32 0.0, %v1025
    %v1027 = vpop.f32.mrf.mxu0
    %v1028 = vadd.f32 0.0, %v1027
    %v1029 = vpop.f32.mrf.mxu0
    %v1030 = vpop.f32.mrf.mxu0
    %1031 = vdwg.mxu0
    %v1032 = vadd.f32 %v241, %v985
    %v1033 = vadd.f32 %v243, %v987
    %v1034 = vadd.f32 %v284, %v1026
    %v1035 = vadd.f32 %v286, %v1028
    %v1036 = vxor.u32 %v1032, 2147483648
    %v1037 = vmul.f32 %v1036, 1.442695
    %v1038 = vpow.pop %v1037
    %v1039 = vadd.f32 %v1038, 1.0
    %v1040 = vrcp.pop %v1039
    %v1041 = vmul.f32 1.0, %v1040
    %v1042 = vxor.u32 %v1033, 2147483648
    %v1043 = vmul.f32 %v1042, 1.442695
    %v1044 = vpow.pop %v1043
    %v1045 = vadd.f32 %v1044, 1.0
    %v1046 = vrcp.pop %v1045
    %v1047 = vmul.f32 1.0, %v1046
    %v1048 = vxor.u32 %v1034, 2147483648
    %v1049 = vmul.f32 %v1048, 1.442695
    %v1050 = vpow.pop %v1049
    %v1051 = vadd.f32 %v1050, 1.0
    %v1052 = vrcp.pop %v1051
    %v1053 = vmul.f32 1.0, %v1052
    %v1054 = vtanh.pop %v1035
    %v1056 = vrot.slane %v942, 6
    %v1058 = vmul.f32 %v1047, %v1056
    %v1059 = vmul.f32 %v1041, %v1054
    %v1060 = vadd.f32 %v1058, %v1059
    %v1061 = vtanh.pop %v1060
    %v1062 = vmul.f32 %v1053, %v1061
    %1063 = vst [vmem:[#allocation2 + $0x8] sm:$0x3] %v1062
    %v1064 = vpack.c.bf16 %v1062, %v1062
    %1065 = vmatprep.subr.bf16.mxu0 %v413
    %1066 = vmatpush1.bf16.msra.mxu0 %v412
    %1067 = vmatprep.subr.bf16.mxu0 %v409
    %1068 = vmatpush1.bf16.msra.mxu0 %v408
    %1069 = vmatprep.subr.bf16.mxu0 %v405
    %1070 = vmatpush1.bf16.msra.mxu0 %v404
    %1071 = vmatprep.subr.bf16.mxu0 %v401
    %1072 = vmatpush1.bf16.msra.mxu0 %v400
    %1073 = vmatprep.subr.bf16.mxu0 %v397
    %1074 = vmatpush1.bf16.msra.mxu0 %v396
    %1075 = vmatprep.subr.bf16.mxu0 %v393
    %1076 = vmatpush1.bf16.msra.mxu0 %v392
    %1077 = vmatprep.subr.bf16.mxu0 %v389
    %1078 = vmatpush1.bf16.msra.mxu0 %v388
    %1079 = vmatprep.subr.bf16.mxu0 %v385
    %1080 = vmatpush1.bf16.msra.mxu0 %v384
    %1081 = vmatprep.subr.bf16.mxu0 0
    %1082 = vmatpush2.bf16.msra.mxu0 0
    %1083 = vmatprep.subr.bf16.mxu0 0
    %1084 = vmatpush2.bf16.msra.mxu0 0
    %1085 = vmatprep.subr.bf16.mxu0 0
    %1086 = vmatpush2.bf16.msra.mxu0 0
    %1087 = vmatprep.subr.bf16.mxu0 0
    %1088 = vmatpush2.bf16.msra.mxu0 0
    %1089 = vmatprep.subr.bf16.mxu0 0
    %1090 = vmatpush2.bf16.msra.mxu0 0
    %1091 = vmatprep.subr.bf16.mxu0 0
    %1092 = vmatpush2.bf16.msra.mxu0 0
    %1093 = vmatprep.subr.bf16.mxu0 0
    %1094 = vmatpush2.bf16.msra.mxu0 0
    %1095 = vmatprep.subr.bf16.mxu0 0
    %1096 = vmatpush2.bf16.msra.mxu0 0
    %1097 = vmatprep.mubr.bf16.mxu0 0
    %1098 = vmatmul.mubr.bf16.gmra.mxu0 %v1064
    %v1099 = vpop.f32.mrf.mxu0
    %v1100 = vadd.f32 0.0, %v1099
    %v1101 = vpop.f32.mrf.mxu0
    %v1102 = vadd.f32 0.0, %v1101
    %v1103 = vpop.f32.mrf.mxu0
    %v1104 = vpop.f32.mrf.mxu0
    %1105 = vdwg.mxu0
    %1106 = vmatprep.subr.bf16.mxu0 %v415
    %1107 = vmatpush1.bf16.msra.mxu0 %v414
    %1108 = vmatprep.subr.bf16.mxu0 %v411
    %1109 = vmatpush1.bf16.msra.mxu0 %v410
    %1110 = vmatprep.subr.bf16.mxu0 %v407
    %1111 = vmatpush1.bf16.msra.mxu0 %v406
    %1112 = vmatprep.subr.bf16.mxu0 %v403
    %1113 = vmatpush1.bf16.msra.mxu0 %v402
    %1114 = vmatprep.subr.bf16.mxu0 %v399
    %1115 = vmatpush1.bf16.msra.mxu0 %v398
    %1116 = vmatprep.subr.bf16.mxu0 %v395
    %1117 = vmatpush1.bf16.msra.mxu0 %v394
    %1118 = vmatprep.subr.bf16.mxu0 %v391
    %1119 = vmatpush1.bf16.msra.mxu0 %v390
    %1120 = vmatprep.subr.bf16.mxu0 %v387
    %1121 = vmatpush1.bf16.msra.mxu0 %v386
    %1122 = vmatprep.subr.bf16.mxu0 0
    %1123 = vmatpush2.bf16.msra.mxu0 0
    %1124 = vmatprep.subr.bf16.mxu0 0
    %1125 = vmatpush2.bf16.msra.mxu0 0
    %1126 = vmatprep.subr.bf16.mxu0 0
    %1127 = vmatpush2.bf16.msra.mxu0 0
    %1128 = vmatprep.subr.bf16.mxu0 0
    %1129 = vmatpush2.bf16.msra.mxu0 0
    %1130 = vmatprep.subr.bf16.mxu0 0
    %1131 = vmatpush2.bf16.msra.mxu0 0
    %1132 = vmatprep.subr.bf16.mxu0 0
    %1133 = vmatpush2.bf16.msra.mxu0 0
    %1134 = vmatprep.subr.bf16.mxu0 0
    %1135 = vmatpush2.bf16.msra.mxu0 0
    %1136 = vmatprep.subr.bf16.mxu0 0
    %1137 = vmatpush2.bf16.msra.mxu0 0
    %1138 = vmatprep.mubr.bf16.mxu0 0
    %1139 = vmatmul.mubr.bf16.gmra.mxu0 %v1064
    %v1140 = vpop.f32.mrf.mxu0
    %v1141 = vadd.f32 0.0, %v1140
    %v1142 = vpop.f32.mrf.mxu0
    %v1143 = vadd.f32 0.0, %v1142
    %v1144 = vpop.f32.mrf.mxu0
    %v1145 = vpop.f32.mrf.mxu0
    %1146 = vdwg.mxu0
    %v1151 = vrot.slane %v1100, 6
    %v1152 = vrot.slane %v1102, 6
    %v1153 = vrot.slane %v1141, 6
    %v1154 = vrot.slane %v1143, 6
    %v1159 = vadd.f32 %v241, %v1151
    %v1160 = vadd.f32 %v243, %v1152
    %v1161 = vadd.f32 %v284, %v1153
    %v1162 = vadd.f32 %v286, %v1154
    %v1163 = vxor.u32 %v1159, 2147483648
    %v1164 = vmul.f32 %v1163, 1.442695
    %v1165 = vpow.pop %v1164
    %v1166 = vadd.f32 %v1165, 1.0
    %v1167 = vrcp.pop %v1166
    %v1168 = vmul.f32 1.0, %v1167
    %v1169 = vxor.u32 %v1160, 2147483648
    %v1170 = vmul.f32 %v1169, 1.442695
    %v1171 = vpow.pop %v1170
    %v1172 = vadd.f32 %v1171, 1.0
    %v1173 = vrcp.pop %v1172
    %v1174 = vmul.f32 1.0, %v1173
    %v1175 = vxor.u32 %v1161, 2147483648
    %v1176 = vmul.f32 %v1175, 1.442695
    %v1177 = vpow.pop %v1176
    %v1178 = vadd.f32 %v1177, 1.0
    %v1179 = vrcp.pop %v1178
    %v1180 = vmul.f32 1.0, %v1179
    %v1181 = vtanh.pop %v1162
    %v1183 = vrot.slane %v1060, 6
    %v1185 = vmul.f32 %v1174, %v1183
    %v1186 = vmul.f32 %v1168, %v1181
    %v1187 = vadd.f32 %v1185, %v1186
    %v1188 = vtanh.pop %v1187
    %v1189 = vmul.f32 %v1180, %v1188
    %1190 = vst [vmem:[#allocation2 + $0x8] sm:$0xc] %v1189
    %v1191 = vpack.c.bf16 %v1189, %v1189
    %v1193 = vrot.slane %v1191, 1
    %1195 = vmatprep.subr.bf16.mxu0 %v413
    %1196 = vmatpush1.bf16.msra.mxu0 %v412
    %1197 = vmatprep.subr.bf16.mxu0 %v409
    %1198 = vmatpush1.bf16.msra.mxu0 %v408
    %1199 = vmatprep.subr.bf16.mxu0 %v405
    %1200 = vmatpush1.bf16.msra.mxu0 %v404
    %1201 = vmatprep.subr.bf16.mxu0 %v401
    %1202 = vmatpush1.bf16.msra.mxu0 %v400
    %1203 = vmatprep.subr.bf16.mxu0 %v397
    %1204 = vmatpush1.bf16.msra.mxu0 %v396
    %1205 = vmatprep.subr.bf16.mxu0 %v393
    %1206 = vmatpush1.bf16.msra.mxu0 %v392
    %1207 = vmatprep.subr.bf16.mxu0 %v389
    %1208 = vmatpush1.bf16.msra.mxu0 %v388
    %1209 = vmatprep.subr.bf16.mxu0 %v385
    %1210 = vmatpush1.bf16.msra.mxu0 %v384
    %1211 = vmatprep.subr.bf16.mxu0 0
    %1212 = vmatpush2.bf16.msra.mxu0 0
    %1213 = vmatprep.subr.bf16.mxu0 0
    %1214 = vmatpush2.bf16.msra.mxu0 0
    %1215 = vmatprep.subr.bf16.mxu0 0
    %1216 = vmatpush2.bf16.msra.mxu0 0
    %1217 = vmatprep.subr.bf16.mxu0 0
    %1218 = vmatpush2.bf16.msra.mxu0 0
    %1219 = vmatprep.subr.bf16.mxu0 0
    %1220 = vmatpush2.bf16.msra.mxu0 0
    %1221 = vmatprep.subr.bf16.mxu0 0
    %1222 = vmatpush2.bf16.msra.mxu0 0
    %1223 = vmatprep.subr.bf16.mxu0 0
    %1224 = vmatpush2.bf16.msra.mxu0 0
    %1225 = vmatprep.subr.bf16.mxu0 0
    %1226 = vmatpush2.bf16.msra.mxu0 0
    %1227 = vmatprep.mubr.bf16.mxu0 0
    %1228 = vmatmul.mubr.bf16.gmra.mxu0 %v1193
    %v1229 = vpop.f32.mrf.mxu0
    %v1230 = vadd.f32 0.0, %v1229
    %v1231 = vpop.f32.mrf.mxu0
    %v1232 = vadd.f32 0.0, %v1231
    %v1233 = vpop.f32.mrf.mxu0
    %v1234 = vpop.f32.mrf.mxu0
    %1235 = vdwg.mxu0
    %1236 = vmatprep.subr.bf16.mxu0 %v415
    %1237 = vmatpush1.bf16.msra.mxu0 %v414
    %1238 = vmatprep.subr.bf16.mxu0 %v411
    %1239 = vmatpush1.bf16.msra.mxu0 %v410
    %1240 = vmatprep.subr.bf16.mxu0 %v407
    %1241 = vmatpush1.bf16.msra.mxu0 %v406
    %1242 = vmatprep.subr.bf16.mxu0 %v403
    %1243 = vmatpush1.bf16.msra.mxu0 %v402
    %1244 = vmatprep.subr.bf16.mxu0 %v399
    %1245 = vmatpush1.bf16.msra.mxu0 %v398
    %1246 = vmatprep.subr.bf16.mxu0 %v395
    %1247 = vmatpush1.bf16.msra.mxu0 %v394
    %1248 = vmatprep.subr.bf16.mxu0 %v391
    %1249 = vmatpush1.bf16.msra.mxu0 %v390
    %1250 = vmatprep.subr.bf16.mxu0 %v387
    %1251 = vmatpush1.bf16.msra.mxu0 %v386
    %1252 = vmatprep.subr.bf16.mxu0 0
    %1253 = vmatpush2.bf16.msra.mxu0 0
    %1254 = vmatprep.subr.bf16.mxu0 0
    %1255 = vmatpush2.bf16.msra.mxu0 0
    %1256 = vmatprep.subr.bf16.mxu0 0
    %1257 = vmatpush2.bf16.msra.mxu0 0
    %1258 = vmatprep.subr.bf16.mxu0 0
    %1259 = vmatpush2.bf16.msra.mxu0 0
    %1260 = vmatprep.subr.bf16.mxu0 0
    %1261 = vmatpush2.bf16.msra.mxu0 0
    %1262 = vmatprep.subr.bf16.mxu0 0
    %1263 = vmatpush2.bf16.msra.mxu0 0
    %1264 = vmatprep.subr.bf16.mxu0 0
    %1265 = vmatpush2.bf16.msra.mxu0 0
    %1266 = vmatprep.subr.bf16.mxu0 0
    %1267 = vmatpush2.bf16.msra.mxu0 0
    %1268 = vmatprep.mubr.bf16.mxu0 0
    %1269 = vmatmul.mubr.bf16.gmra.mxu0 %v1193
    %v1270 = vpop.f32.mrf.mxu0
    %v1271 = vadd.f32 0.0, %v1270
    %v1272 = vpop.f32.mrf.mxu0
    %v1273 = vadd.f32 0.0, %v1272
    %v1274 = vpop.f32.mrf.mxu0
    %v1275 = vpop.f32.mrf.mxu0
    %1276 = vdwg.mxu0
    %v1281 = vrot.slane %v1230, 4
    %v1282 = vrot.slane %v1232, 4
    %v1283 = vrot.slane %v1271, 4
    %v1284 = vrot.slane %v1273, 4
    %v1289 = vadd.f32 %v241, %v1281
    %v1290 = vadd.f32 %v243, %v1282
    %v1291 = vadd.f32 %v284, %v1283
    %v1292 = vadd.f32 %v286, %v1284
    %v1293 = vxor.u32 %v1289, 2147483648
    %v1294 = vmul.f32 %v1293, 1.442695
    %v1295 = vpow.pop %v1294
    %v1296 = vadd.f32 %v1295, 1.0
    %v1297 = vrcp.pop %v1296
    %v1298 = vmul.f32 1.0, %v1297
    %v1299 = vxor.u32 %v1290, 2147483648
    %v1300 = vmul.f32 %v1299, 1.442695
    %v1301 = vpow.pop %v1300
    %v1302 = vadd.f32 %v1301, 1.0
    %v1303 = vrcp.pop %v1302
    %v1304 = vmul.f32 1.0, %v1303
    %v1305 = vxor.u32 %v1291, 2147483648
    %v1306 = vmul.f32 %v1305, 1.442695
    %v1307 = vpow.pop %v1306
    %v1308 = vadd.f32 %v1307, 1.0
    %v1309 = vrcp.pop %v1308
    %v1310 = vmul.f32 1.0, %v1309
    %v1311 = vtanh.pop %v1292
    %v1313 = vrot.slane %v1187, 6
    %v1315 = vmul.f32 %v1304, %v1313
    %v1316 = vmul.f32 %v1298, %v1311
    %v1317 = vadd.f32 %v1315, %v1316
    %v1318 = vtanh.pop %v1317
    %v1319 = vmul.f32 %v1310, %v1318
    %1320 = vst [vmem:[#allocation2 + $0x8] sm:$0x30] %v1319
    %v1321 = vpack.c.bf16 %v1319, %v1319
    %v1323 = vrot.slane %v1321, 2
    %1325 = vmatprep.subr.bf16.mxu0 %v413
    %1326 = vmatpush1.bf16.msra.mxu0 %v412
    %1327 = vmatprep.subr.bf16.mxu0 %v409
    %1328 = vmatpush1.bf16.msra.mxu0 %v408
    %1329 = vmatprep.subr.bf16.mxu0 %v405
    %1330 = vmatpush1.bf16.msra.mxu0 %v404
    %1331 = vmatprep.subr.bf16.mxu0 %v401
    %1332 = vmatpush1.bf16.msra.mxu0 %v400
    %1333 = vmatprep.subr.bf16.mxu0 %v397
    %1334 = vmatpush1.bf16.msra.mxu0 %v396
    %1335 = vmatprep.subr.bf16.mxu0 %v393
    %1336 = vmatpush1.bf16.msra.mxu0 %v392
    %1337 = vmatprep.subr.bf16.mxu0 %v389
    %1338 = vmatpush1.bf16.msra.mxu0 %v388
    %1339 = vmatprep.subr.bf16.mxu0 %v385
    %1340 = vmatpush1.bf16.msra.mxu0 %v384
    %1341 = vmatprep.subr.bf16.mxu0 0
    %1342 = vmatpush2.bf16.msra.mxu0 0
    %1343 = vmatprep.subr.bf16.mxu0 0
    %1344 = vmatpush2.bf16.msra.mxu0 0
    %1345 = vmatprep.subr.bf16.mxu0 0
    %1346 = vmatpush2.bf16.msra.mxu0 0
    %1347 = vmatprep.subr.bf16.mxu0 0
    %1348 = vmatpush2.bf16.msra.mxu0 0
    %1349 = vmatprep.subr.bf16.mxu0 0
    %1350 = vmatpush2.bf16.msra.mxu0 0
    %1351 = vmatprep.subr.bf16.mxu0 0
    %1352 = vmatpush2.bf16.msra.mxu0 0
    %1353 = vmatprep.subr.bf16.mxu0 0
    %1354 = vmatpush2.bf16.msra.mxu0 0
    %1355 = vmatprep.subr.bf16.mxu0 0
    %1356 = vmatpush2.bf16.msra.mxu0 0
    %1357 = vmatprep.mubr.bf16.mxu0 0
    %1358 = vmatmul.mubr.bf16.gmra.mxu0 %v1323
    %v1359 = vpop.f32.mrf.mxu0
    %v1360 = vadd.f32 0.0, %v1359
    %v1361 = vpop.f32.mrf.mxu0
    %v1362 = vadd.f32 0.0, %v1361
    %v1363 = vpop.f32.mrf.mxu0
    %v1364 = vpop.f32.mrf.mxu0
    %1365 = vdwg.mxu0
    %1366 = vmatprep.subr.bf16.mxu0 %v415
    %1367 = vmatpush1.bf16.msra.mxu0 %v414
    %1368 = vmatprep.subr.bf16.mxu0 %v411
    %1369 = vmatpush1.bf16.msra.mxu0 %v410
    %1370 = vmatprep.subr.bf16.mxu0 %v407
    %1371 = vmatpush1.bf16.msra.mxu0 %v406
    %1372 = vmatprep.subr.bf16.mxu0 %v403
    %1373 = vmatpush1.bf16.msra.mxu0 %v402
    %1374 = vmatprep.subr.bf16.mxu0 %v399
    %1375 = vmatpush1.bf16.msra.mxu0 %v398
    %1376 = vmatprep.subr.bf16.mxu0 %v395
    %1377 = vmatpush1.bf16.msra.mxu0 %v394
    %1378 = vmatprep.subr.bf16.mxu0 %v391
    %1379 = vmatpush1.bf16.msra.mxu0 %v390
    %1380 = vmatprep.subr.bf16.mxu0 %v387
    %1381 = vmatpush1.bf16.msra.mxu0 %v386
    %1382 = vmatprep.subr.bf16.mxu0 0
    %1383 = vmatpush2.bf16.msra.mxu0 0
    %1384 = vmatprep.subr.bf16.mxu0 0
    %1385 = vmatpush2.bf16.msra.mxu0 0
    %1386 = vmatprep.subr.bf16.mxu0 0
    %1387 = vmatpush2.bf16.msra.mxu0 0
    %1388 = vmatprep.subr.bf16.mxu0 0
    %1389 = vmatpush2.bf16.msra.mxu0 0
    %1390 = vmatprep.subr.bf16.mxu0 0
    %1391 = vmatpush2.bf16.msra.mxu0 0
    %1392 = vmatprep.subr.bf16.mxu0 0
    %1393 = vmatpush2.bf16.msra.mxu0 0
    %1394 = vmatprep.subr.bf16.mxu0 0
    %1395 = vmatpush2.bf16.msra.mxu0 0
    %1396 = vmatprep.subr.bf16.mxu0 0
    %1397 = vmatpush2.bf16.msra.mxu0 0
    %1398 = vmatprep.mubr.bf16.mxu0 0
    %1399 = vmatmul.mubr.bf16.gmra.mxu0 %v1323
    %v1400 = vpop.f32.mrf.mxu0
    %v1401 = vadd.f32 0.0, %v1400
    %v1402 = vpop.f32.mrf.mxu0
    %v1403 = vadd.f32 0.0, %v1402
    %v1404 = vpop.f32.mrf.mxu0
    %v1405 = vpop.f32.mrf.mxu0
    %1406 = vdwg.mxu0
    %v1411 = vrot.slane %v1360, 2
    %v1412 = vrot.slane %v1362, 2
    %v1413 = vrot.slane %v1401, 2
    %v1414 = vrot.slane %v1403, 2
    %v1419 = vadd.f32 %v241, %v1411
    %v1420 = vadd.f32 %v243, %v1412
    %v1421 = vadd.f32 %v284, %v1413
    %v1422 = vadd.f32 %v286, %v1414
    %v1423 = vxor.u32 %v1419, 2147483648
    %v1424 = vmul.f32 %v1423, 1.442695
    %v1425 = vpow.pop %v1424
    %v1426 = vadd.f32 %v1425, 1.0
    %v1427 = vrcp.pop %v1426
    %v1428 = vmul.f32 1.0, %v1427
    %v1429 = vxor.u32 %v1420, 2147483648
    %v1430 = vmul.f32 %v1429, 1.442695
    %v1431 = vpow.pop %v1430
    %v1432 = vadd.f32 %v1431, 1.0
    %v1433 = vrcp.pop %v1432
    %v1434 = vmul.f32 1.0, %v1433
    %v1435 = vxor.u32 %v1421, 2147483648
    %v1436 = vmul.f32 %v1435, 1.442695
    %v1437 = vpow.pop %v1436
    %v1438 = vadd.f32 %v1437, 1.0
    %v1439 = vrcp.pop %v1438
    %v1440 = vmul.f32 1.0, %v1439
    %v1441 = vtanh.pop %v1422
    %v1443 = vrot.slane %v1317, 6
    %v1445 = vmul.f32 %v1434, %v1443
    %v1446 = vmul.f32 %v1428, %v1441
    %v1447 = vadd.f32 %v1445, %v1446
    %v1448 = vtanh.pop %v1447
    %v1449 = vmul.f32 %v1440, %v1448
    %1450 = vst [vmem:[#allocation2 + $0x8] sm:$0xc0] %v1449
    %v1451 = vld [vmem:[#allocation2] sm:$0xff]
    %v1452 = vld [vmem:[#allocation2 + $0x8] sm:$0xff]
    %v1453 = vpack.c.bf16 %v1452, %v1451
    %v1454 = vld [vmem:[#allocation7] sm:$0xff]
    %v1455 = vld [vmem:[#allocation7 + $0x8] sm:$0xff]
    %v1456 = vld [vmem:[#allocation7 + $0x10] sm:$0xff]
    %v1457 = vld [vmem:[#allocation7 + $0x18] sm:$0xff]
    %v1458 = vld [vmem:[#allocation7 + $0x20] sm:$0xff]
    %v1459 = vld [vmem:[#allocation7 + $0x28] sm:$0xff]
    %v1460 = vld [vmem:[#allocation7 + $0x30] sm:$0xff]
    %v1461 = vld [vmem:[#allocation7 + $0x38] sm:$0xff]
    %v1462 = vld [vmem:[#allocation7 + $0x40] sm:$0xff]
    %v1463 = vld [vmem:[#allocation7 + $0x48] sm:$0xff]
    %v1464 = vld [vmem:[#allocation7 + $0x50] sm:$0xff]
    %v1465 = vld [vmem:[#allocation7 + $0x58] sm:$0xff]
    %v1466 = vld [vmem:[#allocation7 + $0x60] sm:$0xff]
    %v1467 = vld [vmem:[#allocation7 + $0x68] sm:$0xff]
    %v1468 = vld [vmem:[#allocation7 + $0x70] sm:$0xff]
    %v1469 = vld [vmem:[#allocation7 + $0x78] sm:$0xff]
    %v1470 = vld [vmem:[#allocation7 + $0x80] sm:$0xff]
    %v1471 = vld [vmem:[#allocation7 + $0x88] sm:$0xff]
    %v1472 = vld [vmem:[#allocation7 + $0x90] sm:$0xff]
    %v1473 = vld [vmem:[#allocation7 + $0x98] sm:$0xff]
    %v1474 = vld [vmem:[#allocation7 + $0xa0] sm:$0xff]
    %v1475 = vld [vmem:[#allocation7 + $0xa8] sm:$0xff]
    %v1476 = vld [vmem:[#allocation7 + $0xb0] sm:$0xff]
    %v1477 = vld [vmem:[#allocation7 + $0xb8] sm:$0xff]
    %v1478 = vld [vmem:[#allocation7 + $0xc0] sm:$0xff]
    %v1479 = vld [vmem:[#allocation7 + $0xc8] sm:$0xff]
    %v1480 = vld [vmem:[#allocation7 + $0xd0] sm:$0xff]
    %v1481 = vld [vmem:[#allocation7 + $0xd8] sm:$0xff]
    %v1482 = vld [vmem:[#allocation7 + $0xe0] sm:$0xff]
    %v1483 = vld [vmem:[#allocation7 + $0xe8] sm:$0xff]
    %v1484 = vld [vmem:[#allocation7 + $0xf0] sm:$0xff]
    %v1485 = vld [vmem:[#allocation7 + $0xf8] sm:$0xff]
    %v1486 = vld [vmem:[#allocation9] sm:$0xff]
    %v1487 = vld [vmem:[#allocation9 + $0x8] sm:$0xff]
    %v1488 = vld [vmem:[#allocation9 + $0x10] sm:$0xff]
    %v1489 = vld [vmem:[#allocation9 + $0x18] sm:$0xff]
    %v1490 = vld [vmem:[#allocation9 + $0x20] sm:$0xff]
    %v1491 = vld [vmem:[#allocation9 + $0x28] sm:$0xff]
    %v1492 = vld [vmem:[#allocation9 + $0x30] sm:$0xff]
    %v1493 = vld [vmem:[#allocation9 + $0x38] sm:$0xff]
    %v1494 = vld [vmem:[#allocation9 + $0x40] sm:$0xff]
    %v1495 = vld [vmem:[#allocation9 + $0x48] sm:$0xff]
    %v1496 = vld [vmem:[#allocation9 + $0x50] sm:$0xff]
    %v1497 = vld [vmem:[#allocation9 + $0x58] sm:$0xff]
    %v1498 = vld [vmem:[#allocation9 + $0x60] sm:$0xff]
    %v1499 = vld [vmem:[#allocation9 + $0x68] sm:$0xff]
    %v1500 = vld [vmem:[#allocation9 + $0x70] sm:$0xff]
    %v1501 = vld [vmem:[#allocation9 + $0x78] sm:$0xff]
    %v1502 = vld [vmem:[#allocation9 + $0x80] sm:$0xff]
    %v1503 = vld [vmem:[#allocation9 + $0x88] sm:$0xff]
    %v1504 = vld [vmem:[#allocation9 + $0x90] sm:$0xff]
    %v1505 = vld [vmem:[#allocation9 + $0x98] sm:$0xff]
    %v1506 = vld [vmem:[#allocation9 + $0xa0] sm:$0xff]
    %v1507 = vld [vmem:[#allocation9 + $0xa8] sm:$0xff]
    %v1508 = vld [vmem:[#allocation9 + $0xb0] sm:$0xff]
    %v1509 = vld [vmem:[#allocation9 + $0xb8] sm:$0xff]
    %v1510 = vld [vmem:[#allocation9 + $0xc0] sm:$0xff]
    %v1511 = vld [vmem:[#allocation9 + $0xc8] sm:$0xff]
    %v1512 = vld [vmem:[#allocation9 + $0xd0] sm:$0xff]
    %v1513 = vld [vmem:[#allocation9 + $0xd8] sm:$0xff]
    %v1514 = vld [vmem:[#allocation9 + $0xe0] sm:$0xff]
    %v1515 = vld [vmem:[#allocation9 + $0xe8] sm:$0xff]
    %v1516 = vld [vmem:[#allocation9 + $0xf0] sm:$0xff]
    %v1517 = vld [vmem:[#allocation9 + $0xf8] sm:$0xff]
    %v1518 = vld [vmem:[%s6] sm:$0xf]
    %v1520 = vlaneseq
    %v1521 = vshrl.u32 %v1520, 7
    %v1522 = vsub.s32 0, %v1521
    %v1523 = vrot.slane %v1518, %v1522
    %v1524 = vlaneseq
    %v1525 = vshrl.u32 %v1524, 7
    %v1526 = vsub.s32 1, %v1525
    %v1527 = vrot.slane %v1518, %v1526
    %v1528 = vlaneseq
    %v1529 = vshrl.u32 %v1528, 7
    %v1530 = vsub.s32 2, %v1529
    %v1531 = vrot.slane %v1518, %v1530
    %v1532 = vlaneseq
    %v1533 = vshrl.u32 %v1532, 7
    %v1534 = vsub.s32 3, %v1533
    %v1535 = vrot.slane %v1518, %v1534
    %v1572 = vunpack.c.l.b16 %v1454
    %v1573 = vunpack.c.h.b16 %v1454
    %v1574 = vunpack.c.l.b16 %v1455
    %v1575 = vunpack.c.h.b16 %v1455
    %v1576 = vunpack.c.l.b16 %v1456
    %v1577 = vunpack.c.h.b16 %v1456
    %v1578 = vunpack.c.l.b16 %v1457
    %v1579 = vunpack.c.h.b16 %v1457
    %v1580 = vunpack.c.l.b16 %v1458
    %v1581 = vunpack.c.h.b16 %v1458
    %v1582 = vunpack.c.l.b16 %v1459
    %v1583 = vunpack.c.h.b16 %v1459
    %v1584 = vunpack.c.l.b16 %v1460
    %v1585 = vunpack.c.h.b16 %v1460
    %v1586 = vunpack.c.l.b16 %v1461
    %v1587 = vunpack.c.h.b16 %v1461
    %v1588 = vunpack.c.l.b16 %v1462
    %v1589 = vunpack.c.h.b16 %v1462
    %v1590 = vunpack.c.l.b16 %v1463
    %v1591 = vunpack.c.h.b16 %v1463
    %v1592 = vunpack.c.l.b16 %v1464
    %v1593 = vunpack.c.h.b16 %v1464
    %v1594 = vunpack.c.l.b16 %v1465
    %v1595 = vunpack.c.h.b16 %v1465
    %v1596 = vunpack.c.l.b16 %v1466
    %v1597 = vunpack.c.h.b16 %v1466
    %v1598 = vunpack.c.l.b16 %v1467
    %v1599 = vunpack.c.h.b16 %v1467
    %v1600 = vunpack.c.l.b16 %v1468
    %v1601 = vunpack.c.h.b16 %v1468
    %v1602 = vunpack.c.l.b16 %v1469
    %v1603 = vunpack.c.h.b16 %v1469
    %v1604 = vunpack.c.l.b16 %v1470
    %v1605 = vunpack.c.h.b16 %v1470
    %v1606 = vunpack.c.l.b16 %v1471
    %v1607 = vunpack.c.h.b16 %v1471
    %v1608 = vunpack.c.l.b16 %v1472
    %v1609 = vunpack.c.h.b16 %v1472
    %v1610 = vunpack.c.l.b16 %v1473
    %v1611 = vunpack.c.h.b16 %v1473
    %v1612 = vunpack.c.l.b16 %v1474
    %v1613 = vunpack.c.h.b16 %v1474
    %v1614 = vunpack.c.l.b16 %v1475
    %v1615 = vunpack.c.h.b16 %v1475
    %v1616 = vunpack.c.l.b16 %v1476
    %v1617 = vunpack.c.h.b16 %v1476
    %v1618 = vunpack.c.l.b16 %v1477
    %v1619 = vunpack.c.h.b16 %v1477
    %v1620 = vunpack.c.l.b16 %v1478
    %v1621 = vunpack.c.h.b16 %v1478
    %v1622 = vunpack.c.l.b16 %v1479
    %v1623 = vunpack.c.h.b16 %v1479
    %v1624 = vunpack.c.l.b16 %v1480
    %v1625 = vunpack.c.h.b16 %v1480
    %v1626 = vunpack.c.l.b16 %v1481
    %v1627 = vunpack.c.h.b16 %v1481
    %v1628 = vunpack.c.l.b16 %v1482
    %v1629 = vunpack.c.h.b16 %v1482
    %v1630 = vunpack.c.l.b16 %v1483
    %v1631 = vunpack.c.h.b16 %v1483
    %v1632 = vunpack.c.l.b16 %v1484
    %v1633 = vunpack.c.h.b16 %v1484
    %v1634 = vunpack.c.l.b16 %v1485
    %v1635 = vunpack.c.h.b16 %v1485
    %v1636 = vpack.c.b16 %v1576, %v1572
    %v1637 = vpack.c.b16 %v1577, %v1573
    %v1638 = vpack.c.b16 %v1578, %v1574
    %v1639 = vpack.c.b16 %v1579, %v1575
    %v1640 = vpack.c.b16 %v1584, %v1580
    %v1641 = vpack.c.b16 %v1585, %v1581
    %v1642 = vpack.c.b16 %v1586, %v1582
    %v1643 = vpack.c.b16 %v1587, %v1583
    %v1644 = vpack.c.b16 %v1592, %v1588
    %v1645 = vpack.c.b16 %v1593, %v1589
    %v1646 = vpack.c.b16 %v1594, %v1590
    %v1647 = vpack.c.b16 %v1595, %v1591
    %v1648 = vpack.c.b16 %v1600, %v1596
    %v1649 = vpack.c.b16 %v1601, %v1597
    %v1650 = vpack.c.b16 %v1602, %v1598
    %v1651 = vpack.c.b16 %v1603, %v1599
    %v1652 = vpack.c.b16 %v1608, %v1604
    %v1653 = vpack.c.b16 %v1609, %v1605
    %v1654 = vpack.c.b16 %v1610, %v1606
    %v1655 = vpack.c.b16 %v1611, %v1607
    %v1656 = vpack.c.b16 %v1616, %v1612
    %v1657 = vpack.c.b16 %v1617, %v1613
    %v1658 = vpack.c.b16 %v1618, %v1614
    %v1659 = vpack.c.b16 %v1619, %v1615
    %v1660 = vpack.c.b16 %v1624, %v1620
    %v1661 = vpack.c.b16 %v1625, %v1621
    %v1662 = vpack.c.b16 %v1626, %v1622
    %v1663 = vpack.c.b16 %v1627, %v1623
    %v1664 = vpack.c.b16 %v1632, %v1628
    %v1665 = vpack.c.b16 %v1633, %v1629
    %v1666 = vpack.c.b16 %v1634, %v1630
    %v1667 = vpack.c.b16 %v1635, %v1631
    %1700 = vmatprep.subr.bf16.mxu0 %v1665
    %1701 = vmatpush1.bf16.msra.mxu0 %v1664
    %1702 = vmatprep.subr.bf16.mxu0 %v1661
    %1703 = vmatpush1.bf16.msra.mxu0 %v1660
    %1704 = vmatprep.subr.bf16.mxu0 %v1657
    %1705 = vmatpush1.bf16.msra.mxu0 %v1656
    %1706 = vmatprep.subr.bf16.mxu0 %v1653
    %1707 = vmatpush1.bf16.msra.mxu0 %v1652
    %1708 = vmatprep.subr.bf16.mxu0 %v1649
    %1709 = vmatpush1.bf16.msra.mxu0 %v1648
    %1710 = vmatprep.subr.bf16.mxu0 %v1645
    %1711 = vmatpush1.bf16.msra.mxu0 %v1644
    %1712 = vmatprep.subr.bf16.mxu0 %v1641
    %1713 = vmatpush1.bf16.msra.mxu0 %v1640
    %1714 = vmatprep.subr.bf16.mxu0 %v1637
    %1715 = vmatpush1.bf16.msra.mxu0 %v1636
    %1716 = vmatprep.subr.bf16.mxu0 0
    %1717 = vmatpush2.bf16.msra.mxu0 0
    %1718 = vmatprep.subr.bf16.mxu0 0
    %1719 = vmatpush2.bf16.msra.mxu0 0
    %1720 = vmatprep.subr.bf16.mxu0 0
    %1721 = vmatpush2.bf16.msra.mxu0 0
    %1722 = vmatprep.subr.bf16.mxu0 0
    %1723 = vmatpush2.bf16.msra.mxu0 0
    %1724 = vmatprep.subr.bf16.mxu0 0
    %1725 = vmatpush2.bf16.msra.mxu0 0
    %1726 = vmatprep.subr.bf16.mxu0 0
    %1727 = vmatpush2.bf16.msra.mxu0 0
    %1728 = vmatprep.subr.bf16.mxu0 0
    %1729 = vmatpush2.bf16.msra.mxu0 0
    %1730 = vmatprep.subr.bf16.mxu0 0
    %1731 = vmatpush2.bf16.msra.mxu0 0
    %1732 = vmatprep.mubr.bf16.mxu0 0
    %1733 = vmatmul.mubr.bf16.gmra.mxu0 %v1453
    %v1734 = vpop.f32.mrf.mxu0
    %v1735 = vadd.f32 %v1523, %v1734
    %v1736 = vpop.f32.mrf.mxu0
    %v1737 = vadd.f32 %v1527, %v1736
    %v1738 = vpop.f32.mrf.mxu0
    %v1739 = vadd.f32 %v1523, %v1738
    %v1740 = vpop.f32.mrf.mxu0
    %v1741 = vadd.f32 %v1527, %v1740
    %1742 = vdwg.mxu0
    %1743 = vmatprep.subr.bf16.mxu0 %v1667
    %1744 = vmatpush1.bf16.msra.mxu0 %v1666
    %1745 = vmatprep.subr.bf16.mxu0 %v1663
    %1746 = vmatpush1.bf16.msra.mxu0 %v1662
    %1747 = vmatprep.subr.bf16.mxu0 %v1659
    %1748 = vmatpush1.bf16.msra.mxu0 %v1658
    %1749 = vmatprep.subr.bf16.mxu0 %v1655
    %1750 = vmatpush1.bf16.msra.mxu0 %v1654
    %1751 = vmatprep.subr.bf16.mxu0 %v1651
    %1752 = vmatpush1.bf16.msra.mxu0 %v1650
    %1753 = vmatprep.subr.bf16.mxu0 %v1647
    %1754 = vmatpush1.bf16.msra.mxu0 %v1646
    %1755 = vmatprep.subr.bf16.mxu0 %v1643
    %1756 = vmatpush1.bf16.msra.mxu0 %v1642
    %1757 = vmatprep.subr.bf16.mxu0 %v1639
    %1758 = vmatpush1.bf16.msra.mxu0 %v1638
    %1759 = vmatprep.subr.bf16.mxu0 0
    %1760 = vmatpush2.bf16.msra.mxu0 0
    %1761 = vmatprep.subr.bf16.mxu0 0
    %1762 = vmatpush2.bf16.msra.mxu0 0
    %1763 = vmatprep.subr.bf16.mxu0 0
    %1764 = vmatpush2.bf16.msra.mxu0 0
    %1765 = vmatprep.subr.bf16.mxu0 0
    %1766 = vmatpush2.bf16.msra.mxu0 0
    %1767 = vmatprep.subr.bf16.mxu0 0
    %1768 = vmatpush2.bf16.msra.mxu0 0
    %1769 = vmatprep.subr.bf16.mxu0 0
    %1770 = vmatpush2.bf16.msra.mxu0 0
    %1771 = vmatprep.subr.bf16.mxu0 0
    %1772 = vmatpush2.bf16.msra.mxu0 0
    %1773 = vmatprep.subr.bf16.mxu0 0
    %1774 = vmatpush2.bf16.msra.mxu0 0
    %1775 = vmatprep.mubr.bf16.mxu0 0
    %1776 = vmatmul.mubr.bf16.gmra.mxu0 %v1453
    %v1777 = vpop.f32.mrf.mxu0
    %v1778 = vadd.f32 %v1531, %v1777
    %v1779 = vpop.f32.mrf.mxu0
    %v1780 = vadd.f32 %v1535, %v1779
    %v1781 = vpop.f32.mrf.mxu0
    %v1782 = vadd.f32 %v1531, %v1781
    %v1783 = vpop.f32.mrf.mxu0
    %v1784 = vadd.f32 %v1535, %v1783
    %1785 = vdwg.mxu0
    %v1818 = vunpack.c.l.b16 %v1486
    %v1819 = vunpack.c.h.b16 %v1486
    %v1820 = vunpack.c.l.b16 %v1487
    %v1821 = vunpack.c.h.b16 %v1487
    %v1822 = vunpack.c.l.b16 %v1488
    %v1823 = vunpack.c.h.b16 %v1488
    %v1824 = vunpack.c.l.b16 %v1489
    %v1825 = vunpack.c.h.b16 %v1489
    %v1826 = vunpack.c.l.b16 %v1490
    %v1827 = vunpack.c.h.b16 %v1490
    %v1828 = vunpack.c.l.b16 %v1491
    %v1829 = vunpack.c.h.b16 %v1491
    %v1830 = vunpack.c.l.b16 %v1492
    %v1831 = vunpack.c.h.b16 %v1492
    %v1832 = vunpack.c.l.b16 %v1493
    %v1833 = vunpack.c.h.b16 %v1493
    %v1834 = vunpack.c.l.b16 %v1494
    %v1835 = vunpack.c.h.b16 %v1494
    %v1836 = vunpack.c.l.b16 %v1495
    %v1837 = vunpack.c.h.b16 %v1495
    %v1838 = vunpack.c.l.b16 %v1496
    %v1839 = vunpack.c.h.b16 %v1496
    %v1840 = vunpack.c.l.b16 %v1497
    %v1841 = vunpack.c.h.b16 %v1497
    %v1842 = vunpack.c.l.b16 %v1498
    %v1843 = vunpack.c.h.b16 %v1498
    %v1844 = vunpack.c.l.b16 %v1499
    %v1845 = vunpack.c.h.b16 %v1499
    %v1846 = vunpack.c.l.b16 %v1500
    %v1847 = vunpack.c.h.b16 %v1500
    %v1848 = vunpack.c.l.b16 %v1501
    %v1849 = vunpack.c.h.b16 %v1501
    %v1850 = vunpack.c.l.b16 %v1502
    %v1851 = vunpack.c.h.b16 %v1502
    %v1852 = vunpack.c.l.b16 %v1503
    %v1853 = vunpack.c.h.b16 %v1503
    %v1854 = vunpack.c.l.b16 %v1504
    %v1855 = vunpack.c.h.b16 %v1504
    %v1856 = vunpack.c.l.b16 %v1505
    %v1857 = vunpack.c.h.b16 %v1505
    %v1858 = vunpack.c.l.b16 %v1506
    %v1859 = vunpack.c.h.b16 %v1506
    %v1860 = vunpack.c.l.b16 %v1507
    %v1861 = vunpack.c.h.b16 %v1507
    %v1862 = vunpack.c.l.b16 %v1508
    %v1863 = vunpack.c.h.b16 %v1508
    %v1864 = vunpack.c.l.b16 %v1509
    %v1865 = vunpack.c.h.b16 %v1509
    %v1866 = vunpack.c.l.b16 %v1510
    %v1867 = vunpack.c.h.b16 %v1510
    %v1868 = vunpack.c.l.b16 %v1511
    %v1869 = vunpack.c.h.b16 %v1511
    %v1870 = vunpack.c.l.b16 %v1512
    %v1871 = vunpack.c.h.b16 %v1512
    %v1872 = vunpack.c.l.b16 %v1513
    %v1873 = vunpack.c.h.b16 %v1513
    %v1874 = vunpack.c.l.b16 %v1514
    %v1875 = vunpack.c.h.b16 %v1514
    %v1876 = vunpack.c.l.b16 %v1515
    %v1877 = vunpack.c.h.b16 %v1515
    %v1878 = vunpack.c.l.b16 %v1516
    %v1879 = vunpack.c.h.b16 %v1516
    %v1880 = vunpack.c.l.b16 %v1517
    %v1881 = vunpack.c.h.b16 %v1517
    %v1882 = vpack.c.b16 %v1822, %v1818
    %v1883 = vpack.c.b16 %v1823, %v1819
    %v1884 = vpack.c.b16 %v1824, %v1820
    %v1885 = vpack.c.b16 %v1825, %v1821
    %v1886 = vpack.c.b16 %v1830, %v1826
    %v1887 = vpack.c.b16 %v1831, %v1827
    %v1888 = vpack.c.b16 %v1832, %v1828
    %v1889 = vpack.c.b16 %v1833, %v1829
    %v1890 = vpack.c.b16 %v1838, %v1834
    %v1891 = vpack.c.b16 %v1839, %v1835
    %v1892 = vpack.c.b16 %v1840, %v1836
    %v1893 = vpack.c.b16 %v1841, %v1837
    %v1894 = vpack.c.b16 %v1846, %v1842
    %v1895 = vpack.c.b16 %v1847, %v1843
    %v1896 = vpack.c.b16 %v1848, %v1844
    %v1897 = vpack.c.b16 %v1849, %v1845
    %v1898 = vpack.c.b16 %v1854, %v1850
    %v1899 = vpack.c.b16 %v1855, %v1851
    %v1900 = vpack.c.b16 %v1856, %v1852
    %v1901 = vpack.c.b16 %v1857, %v1853
    %v1902 = vpack.c.b16 %v1862, %v1858
    %v1903 = vpack.c.b16 %v1863, %v1859
    %v1904 = vpack.c.b16 %v1864, %v1860
    %v1905 = vpack.c.b16 %v1865, %v1861
    %v1906 = vpack.c.b16 %v1870, %v1866
    %v1907 = vpack.c.b16 %v1871, %v1867
    %v1908 = vpack.c.b16 %v1872, %v1868
    %v1909 = vpack.c.b16 %v1873, %v1869
    %v1910 = vpack.c.b16 %v1878, %v1874
    %v1911 = vpack.c.b16 %v1879, %v1875
    %v1912 = vpack.c.b16 %v1880, %v1876
    %v1913 = vpack.c.b16 %v1881, %v1877
    %1946 = vmatprep.subr.bf16.mxu0 %v1911
    %1947 = vmatpush1.bf16.msra.mxu0 %v1910
    %1948 = vmatprep.subr.bf16.mxu0 %v1907
    %1949 = vmatpush1.bf16.msra.mxu0 %v1906
    %1950 = vmatprep.subr.bf16.mxu0 %v1903
    %1951 = vmatpush1.bf16.msra.mxu0 %v1902
    %1952 = vmatprep.subr.bf16.mxu0 %v1899
    %1953 = vmatpush1.bf16.msra.mxu0 %v1898
    %1954 = vmatprep.subr.bf16.mxu0 %v1895
    %1955 = vmatpush1.bf16.msra.mxu0 %v1894
    %1956 = vmatprep.subr.bf16.mxu0 %v1891
    %1957 = vmatpush1.bf16.msra.mxu0 %v1890
    %1958 = vmatprep.subr.bf16.mxu0 %v1887
    %1959 = vmatpush1.bf16.msra.mxu0 %v1886
    %1960 = vmatprep.subr.bf16.mxu0 %v1883
    %1961 = vmatpush1.bf16.msra.mxu0 %v1882
    %1962 = vmatprep.subr.bf16.mxu0 0
    %1963 = vmatpush2.bf16.msra.mxu0 0
    %1964 = vmatprep.subr.bf16.mxu0 0
    %1965 = vmatpush2.bf16.msra.mxu0 0
    %1966 = vmatprep.subr.bf16.mxu0 0
    %1967 = vmatpush2.bf16.msra.mxu0 0
    %1968 = vmatprep.subr.bf16.mxu0 0
    %1969 = vmatpush2.bf16.msra.mxu0 0
    %1970 = vmatprep.subr.bf16.mxu0 0
    %1971 = vmatpush2.bf16.msra.mxu0 0
    %1972 = vmatprep.subr.bf16.mxu0 0
    %1973 = vmatpush2.bf16.msra.mxu0 0
    %1974 = vmatprep.subr.bf16.mxu0 0
    %1975 = vmatpush2.bf16.msra.mxu0 0
    %1976 = vmatprep.subr.bf16.mxu0 0
    %1977 = vmatpush2.bf16.msra.mxu0 0
    %1978 = vmatprep.mubr.bf16.mxu0 0
    %1979 = vmatmul.mubr.bf16.gmra.mxu0 0
    %v1980 = vpop.f32.mrf.mxu0
    %v1981 = vadd.f32 0.0, %v1980
    %v1982 = vpop.f32.mrf.mxu0
    %v1983 = vadd.f32 0.0, %v1982
    %v1984 = vpop.f32.mrf.mxu0
    %v1985 = vpop.f32.mrf.mxu0
    %1986 = vdwg.mxu0
    %1987 = vmatprep.subr.bf16.mxu0 %v1913
    %1988 = vmatpush1.bf16.msra.mxu0 %v1912
    %1989 = vmatprep.subr.bf16.mxu0 %v1909
    %1990 = vmatpush1.bf16.msra.mxu0 %v1908
    %1991 = vmatprep.subr.bf16.mxu0 %v1905
    %1992 = vmatpush1.bf16.msra.mxu0 %v1904
    %1993 = vmatprep.subr.bf16.mxu0 %v1901
    %1994 = vmatpush1.bf16.msra.mxu0 %v1900
    %1995 = vmatprep.subr.bf16.mxu0 %v1897
    %1996 = vmatpush1.bf16.msra.mxu0 %v1896
    %1997 = vmatprep.subr.bf16.mxu0 %v1893
    %1998 = vmatpush1.bf16.msra.mxu0 %v1892
    %1999 = vmatprep.subr.bf16.mxu0 %v1889
    %2000 = vmatpush1.bf16.msra.mxu0 %v1888
    %2001 = vmatprep.subr.bf16.mxu0 %v1885
    %2002 = vmatpush1.bf16.msra.mxu0 %v1884
    %2003 = vmatprep.subr.bf16.mxu0 0
    %2004 = vmatpush2.bf16.msra.mxu0 0
    %2005 = vmatprep.subr.bf16.mxu0 0
    %2006 = vmatpush2.bf16.msra.mxu0 0
    %2007 = vmatprep.subr.bf16.mxu0 0
    %2008 = vmatpush2.bf16.msra.mxu0 0
    %2009 = vmatprep.subr.bf16.mxu0 0
    %2010 = vmatpush2.bf16.msra.mxu0 0
    %2011 = vmatprep.subr.bf16.mxu0 0
    %2012 = vmatpush2.bf16.msra.mxu0 0
    %2013 = vmatprep.subr.bf16.mxu0 0
    %2014 = vmatpush2.bf16.msra.mxu0 0
    %2015 = vmatprep.subr.bf16.mxu0 0
    %2016 = vmatpush2.bf16.msra.mxu0 0
    %2017 = vmatprep.subr.bf16.mxu0 0
    %2018 = vmatpush2.bf16.msra.mxu0 0
    %2019 = vmatprep.mubr.bf16.mxu0 0
    %2020 = vmatmul.mubr.bf16.gmra.mxu0 0
    %v2021 = vpop.f32.mrf.mxu0
    %v2022 = vadd.f32 0.0, %v2021
    %v2023 = vpop.f32.mrf.mxu0
    %v2024 = vadd.f32 0.0, %v2023
    %v2025 = vpop.f32.mrf.mxu0
    %v2026 = vpop.f32.mrf.mxu0
    %2027 = vdwg.mxu0
    %v2028 = vadd.f32 %v1735, %v1981
    %v2029 = vadd.f32 %v1737, %v1983
    %v2030 = vadd.f32 %v1778, %v2022
    %v2031 = vadd.f32 %v1780, %v2024
    %v2032 = vxor.u32 %v2028, 2147483648
    %v2033 = vmul.f32 %v2032, 1.442695
    %v2034 = vpow.pop %v2033
    %v2035 = vadd.f32 %v2034, 1.0
    %v2036 = vrcp.pop %v2035
    %v2037 = vmul.f32 1.0, %v2036
    %v2038 = vxor.u32 %v2029, 2147483648
    %v2039 = vmul.f32 %v2038, 1.442695
    %v2040 = vpow.pop %v2039
    %v2041 = vadd.f32 %v2040, 1.0
    %v2042 = vrcp.pop %v2041
    %v2043 = vmul.f32 1.0, %v2042
    %v2044 = vxor.u32 %v2030, 2147483648
    %v2045 = vmul.f32 %v2044, 1.442695
    %v2046 = vpow.pop %v2045
    %v2047 = vadd.f32 %v2046, 1.0
    %v2048 = vrcp.pop %v2047
    %v2049 = vmul.f32 1.0, %v2048
    %v2050 = vtanh.pop %v2031
    %v2051 = vmul.f32 %v2043, 0.0
    %v2052 = vmul.f32 %v2037, %v2050
    %v2053 = vadd.f32 %v2051, %v2052
    %v2054 = vtanh.pop %v2053
    %v2055 = vmul.f32 %v2049, %v2054
    %2056 = vst [vmem:[#allocation3] sm:$0x1] %v2055
    %2057 = vst [vmem:[#allocation3 + $0x7] sm:$0x2] %v2055
    %v2058 = vpack.c.bf16 %v2055, %v2055
    %2059 = vmatprep.subr.bf16.mxu0 %v1911
    %2060 = vmatpush1.bf16.msra.mxu0 %v1910
    %2061 = vmatprep.subr.bf16.mxu0 %v1907
    %2062 = vmatpush1.bf16.msra.mxu0 %v1906
    %2063 = vmatprep.subr.bf16.mxu0 %v1903
    %2064 = vmatpush1.bf16.msra.mxu0 %v1902
    %2065 = vmatprep.subr.bf16.mxu0 %v1899
    %2066 = vmatpush1.bf16.msra.mxu0 %v1898
    %2067 = vmatprep.subr.bf16.mxu0 %v1895
    %2068 = vmatpush1.bf16.msra.mxu0 %v1894
    %2069 = vmatprep.subr.bf16.mxu0 %v1891
    %2070 = vmatpush1.bf16.msra.mxu0 %v1890
    %2071 = vmatprep.subr.bf16.mxu0 %v1887
    %2072 = vmatpush1.bf16.msra.mxu0 %v1886
    %2073 = vmatprep.subr.bf16.mxu0 %v1883
    %2074 = vmatpush1.bf16.msra.mxu0 %v1882
    %2075 = vmatprep.subr.bf16.mxu0 0
    %2076 = vmatpush2.bf16.msra.mxu0 0
    %2077 = vmatprep.subr.bf16.mxu0 0
    %2078 = vmatpush2.bf16.msra.mxu0 0
    %2079 = vmatprep.subr.bf16.mxu0 0
    %2080 = vmatpush2.bf16.msra.mxu0 0
    %2081 = vmatprep.subr.bf16.mxu0 0
    %2082 = vmatpush2.bf16.msra.mxu0 0
    %2083 = vmatprep.subr.bf16.mxu0 0
    %2084 = vmatpush2.bf16.msra.mxu0 0
    %2085 = vmatprep.subr.bf16.mxu0 0
    %2086 = vmatpush2.bf16.msra.mxu0 0
    %2087 = vmatprep.subr.bf16.mxu0 0
    %2088 = vmatpush2.bf16.msra.mxu0 0
    %2089 = vmatprep.subr.bf16.mxu0 0
    %2090 = vmatpush2.bf16.msra.mxu0 0
    %2091 = vmatprep.mubr.bf16.mxu0 0
    %2092 = vmatmul.mubr.bf16.gmra.mxu0 %v2058
    %v2093 = vpop.f32.mrf.mxu0
    %v2094 = vadd.f32 0.0, %v2093
    %v2095 = vpop.f32.mrf.mxu0
    %v2096 = vadd.f32 0.0, %v2095
    %v2097 = vpop.f32.mrf.mxu0
    %v2098 = vpop.f32.mrf.mxu0
    %2099 = vdwg.mxu0
    %2100 = vmatprep.subr.bf16.mxu0 %v1913
    %2101 = vmatpush1.bf16.msra.mxu0 %v1912
    %2102 = vmatprep.subr.bf16.mxu0 %v1909
    %2103 = vmatpush1.bf16.msra.mxu0 %v1908
    %2104 = vmatprep.subr.bf16.mxu0 %v1905
    %2105 = vmatpush1.bf16.msra.mxu0 %v1904
    %2106 = vmatprep.subr.bf16.mxu0 %v1901
    %2107 = vmatpush1.bf16.msra.mxu0 %v1900
    %2108 = vmatprep.subr.bf16.mxu0 %v1897
    %2109 = vmatpush1.bf16.msra.mxu0 %v1896
    %2110 = vmatprep.subr.bf16.mxu0 %v1893
    %2111 = vmatpush1.bf16.msra.mxu0 %v1892
    %2112 = vmatprep.subr.bf16.mxu0 %v1889
    %2113 = vmatpush1.bf16.msra.mxu0 %v1888
    %2114 = vmatprep.subr.bf16.mxu0 %v1885
    %2115 = vmatpush1.bf16.msra.mxu0 %v1884
    %2116 = vmatprep.subr.bf16.mxu0 0
    %2117 = vmatpush2.bf16.msra.mxu0 0
    %2118 = vmatprep.subr.bf16.mxu0 0
    %2119 = vmatpush2.bf16.msra.mxu0 0
    %2120 = vmatprep.subr.bf16.mxu0 0
    %2121 = vmatpush2.bf16.msra.mxu0 0
    %2122 = vmatprep.subr.bf16.mxu0 0
    %2123 = vmatpush2.bf16.msra.mxu0 0
    %2124 = vmatprep.subr.bf16.mxu0 0
    %2125 = vmatpush2.bf16.msra.mxu0 0
    %2126 = vmatprep.subr.bf16.mxu0 0
    %2127 = vmatpush2.bf16.msra.mxu0 0
    %2128 = vmatprep.subr.bf16.mxu0 0
    %2129 = vmatpush2.bf16.msra.mxu0 0
    %2130 = vmatprep.subr.bf16.mxu0 0
    %2131 = vmatpush2.bf16.msra.mxu0 0
    %2132 = vmatprep.mubr.bf16.mxu0 0
    %2133 = vmatmul.mubr.bf16.gmra.mxu0 %v2058
    %v2134 = vpop.f32.mrf.mxu0
    %v2135 = vadd.f32 0.0, %v2134
    %v2136 = vpop.f32.mrf.mxu0
    %v2137 = vadd.f32 0.0, %v2136
    %v2138 = vpop.f32.mrf.mxu0
    %v2139 = vpop.f32.mrf.mxu0
    %2140 = vdwg.mxu0
    %v2145 = vrot.slane %v2094, 6
    %v2146 = vrot.slane %v2096, 6
    %v2147 = vrot.slane %v2135, 6
    %v2148 = vrot.slane %v2137, 6
    %v2153 = vadd.f32 %v1735, %v2145
    %v2154 = vadd.f32 %v1737, %v2146
    %v2155 = vadd.f32 %v1778, %v2147
    %v2156 = vadd.f32 %v1780, %v2148
    %v2157 = vxor.u32 %v2153, 2147483648
    %v2158 = vmul.f32 %v2157, 1.442695
    %v2159 = vpow.pop %v2158
    %v2160 = vadd.f32 %v2159, 1.0
    %v2161 = vrcp.pop %v2160
    %v2162 = vmul.f32 1.0, %v2161
    %v2163 = vxor.u32 %v2154, 2147483648
    %v2164 = vmul.f32 %v2163, 1.442695
    %v2165 = vpow.pop %v2164
    %v2166 = vadd.f32 %v2165, 1.0
    %v2167 = vrcp.pop %v2166
    %v2168 = vmul.f32 1.0, %v2167
    %v2169 = vxor.u32 %v2155, 2147483648
    %v2170 = vmul.f32 %v2169, 1.442695
    %v2171 = vpow.pop %v2170
    %v2172 = vadd.f32 %v2171, 1.0
    %v2173 = vrcp.pop %v2172
    %v2174 = vmul.f32 1.0, %v2173
    %v2175 = vtanh.pop %v2156
    %v2177 = vrot.slane %v2053, 6
    %v2179 = vmul.f32 %v2168, %v2177
    %v2180 = vmul.f32 %v2162, %v2175
    %v2181 = vadd.f32 %v2179, %v2180
    %v2182 = vtanh.pop %v2181
    %v2183 = vmul.f32 %v2174, %v2182
    %2184 = vst [vmem:[#allocation3 - $0x1] sm:$0x4] %v2183
    %2185 = vst [vmem:[#allocation3 + $0x6] sm:$0x8] %v2183
    %v2186 = vpack.c.bf16 %v2183, %v2183
    %v2188 = vrot.slane %v2186, 1
    %2190 = vmatprep.subr.bf16.mxu0 %v1911
    %2191 = vmatpush1.bf16.msra.mxu0 %v1910
    %2192 = vmatprep.subr.bf16.mxu0 %v1907
    %2193 = vmatpush1.bf16.msra.mxu0 %v1906
    %2194 = vmatprep.subr.bf16.mxu0 %v1903
    %2195 = vmatpush1.bf16.msra.mxu0 %v1902
    %2196 = vmatprep.subr.bf16.mxu0 %v1899
    %2197 = vmatpush1.bf16.msra.mxu0 %v1898
    %2198 = vmatprep.subr.bf16.mxu0 %v1895
    %2199 = vmatpush1.bf16.msra.mxu0 %v1894
    %2200 = vmatprep.subr.bf16.mxu0 %v1891
    %2201 = vmatpush1.bf16.msra.mxu0 %v1890
    %2202 = vmatprep.subr.bf16.mxu0 %v1887
    %2203 = vmatpush1.bf16.msra.mxu0 %v1886
    %2204 = vmatprep.subr.bf16.mxu0 %v1883
    %2205 = vmatpush1.bf16.msra.mxu0 %v1882
    %2206 = vmatprep.subr.bf16.mxu0 0
    %2207 = vmatpush2.bf16.msra.mxu0 0
    %2208 = vmatprep.subr.bf16.mxu0 0
    %2209 = vmatpush2.bf16.msra.mxu0 0
    %2210 = vmatprep.subr.bf16.mxu0 0
    %2211 = vmatpush2.bf16.msra.mxu0 0
    %2212 = vmatprep.subr.bf16.mxu0 0
    %2213 = vmatpush2.bf16.msra.mxu0 0
    %2214 = vmatprep.subr.bf16.mxu0 0
    %2215 = vmatpush2.bf16.msra.mxu0 0
    %2216 = vmatprep.subr.bf16.mxu0 0
    %2217 = vmatpush2.bf16.msra.mxu0 0
    %2218 = vmatprep.subr.bf16.mxu0 0
    %2219 = vmatpush2.bf16.msra.mxu0 0
    %2220 = vmatprep.subr.bf16.mxu0 0
    %2221 = vmatpush2.bf16.msra.mxu0 0
    %2222 = vmatprep.mubr.bf16.mxu0 0
    %2223 = vmatmul.mubr.bf16.gmra.mxu0 %v2188
    %v2224 = vpop.f32.mrf.mxu0
    %v2225 = vadd.f32 0.0, %v2224
    %v2226 = vpop.f32.mrf.mxu0
    %v2227 = vadd.f32 0.0, %v2226
    %v2228 = vpop.f32.mrf.mxu0
    %v2229 = vpop.f32.mrf.mxu0
    %2230 = vdwg.mxu0
    %2231 = vmatprep.subr.bf16.mxu0 %v1913
    %2232 = vmatpush1.bf16.msra.mxu0 %v1912
    %2233 = vmatprep.subr.bf16.mxu0 %v1909
    %2234 = vmatpush1.bf16.msra.mxu0 %v1908
    %2235 = vmatprep.subr.bf16.mxu0 %v1905
    %2236 = vmatpush1.bf16.msra.mxu0 %v1904
    %2237 = vmatprep.subr.bf16.mxu0 %v1901
    %2238 = vmatpush1.bf16.msra.mxu0 %v1900
    %2239 = vmatprep.subr.bf16.mxu0 %v1897
    %2240 = vmatpush1.bf16.msra.mxu0 %v1896
    %2241 = vmatprep.subr.bf16.mxu0 %v1893
    %2242 = vmatpush1.bf16.msra.mxu0 %v1892
    %2243 = vmatprep.subr.bf16.mxu0 %v1889
    %2244 = vmatpush1.bf16.msra.mxu0 %v1888
    %2245 = vmatprep.subr.bf16.mxu0 %v1885
    %2246 = vmatpush1.bf16.msra.mxu0 %v1884
    %2247 = vmatprep.subr.bf16.mxu0 0
    %2248 = vmatpush2.bf16.msra.mxu0 0
    %2249 = vmatprep.subr.bf16.mxu0 0
    %2250 = vmatpush2.bf16.msra.mxu0 0
    %2251 = vmatprep.subr.bf16.mxu0 0
    %2252 = vmatpush2.bf16.msra.mxu0 0
    %2253 = vmatprep.subr.bf16.mxu0 0
    %2254 = vmatpush2.bf16.msra.mxu0 0
    %2255 = vmatprep.subr.bf16.mxu0 0
    %2256 = vmatpush2.bf16.msra.mxu0 0
    %2257 = vmatprep.subr.bf16.mxu0 0
    %2258 = vmatpush2.bf16.msra.mxu0 0
    %2259 = vmatprep.subr.bf16.mxu0 0
    %2260 = vmatpush2.bf16.msra.mxu0 0
    %2261 = vmatprep.subr.bf16.mxu0 0
    %2262 = vmatpush2.bf16.msra.mxu0 0
    %2263 = vmatprep.mubr.bf16.mxu0 0
    %2264 = vmatmul.mubr.bf16.gmra.mxu0 %v2188
    %v2265 = vpop.f32.mrf.mxu0
    %v2266 = vadd.f32 0.0, %v2265
    %v2267 = vpop.f32.mrf.mxu0
    %v2268 = vadd.f32 0.0, %v2267
    %v2269 = vpop.f32.mrf.mxu0
    %v2270 = vpop.f32.mrf.mxu0
    %2271 = vdwg.mxu0
    %v2276 = vrot.slane %v2225, 4
    %v2277 = vrot.slane %v2227, 4
    %v2278 = vrot.slane %v2266, 4
    %v2279 = vrot.slane %v2268, 4
    %v2284 = vadd.f32 %v1735, %v2276
    %v2285 = vadd.f32 %v1737, %v2277
    %v2286 = vadd.f32 %v1778, %v2278
    %v2287 = vadd.f32 %v1780, %v2279
    %v2288 = vxor.u32 %v2284, 2147483648
    %v2289 = vmul.f32 %v2288, 1.442695
    %v2290 = vpow.pop %v2289
    %v2291 = vadd.f32 %v2290, 1.0
    %v2292 = vrcp.pop %v2291
    %v2293 = vmul.f32 1.0, %v2292
    %v2294 = vxor.u32 %v2285, 2147483648
    %v2295 = vmul.f32 %v2294, 1.442695
    %v2296 = vpow.pop %v2295
    %v2297 = vadd.f32 %v2296, 1.0
    %v2298 = vrcp.pop %v2297
    %v2299 = vmul.f32 1.0, %v2298
    %v2300 = vxor.u32 %v2286, 2147483648
    %v2301 = vmul.f32 %v2300, 1.442695
    %v2302 = vpow.pop %v2301
    %v2303 = vadd.f32 %v2302, 1.0
    %v2304 = vrcp.pop %v2303
    %v2305 = vmul.f32 1.0, %v2304
    %v2306 = vtanh.pop %v2287
    %v2308 = vrot.slane %v2181, 6
    %v2310 = vmul.f32 %v2299, %v2308
    %v2311 = vmul.f32 %v2293, %v2306
    %v2312 = vadd.f32 %v2310, %v2311
    %v2313 = vtanh.pop %v2312
    %v2314 = vmul.f32 %v2305, %v2313
    %2315 = vst [vmem:[#allocation3 - $0x2] sm:$0x10] %v2314
    %2316 = vst [vmem:[#allocation3 + $0x5] sm:$0x20] %v2314
    %v2317 = vpack.c.bf16 %v2314, %v2314
    %v2319 = vrot.slane %v2317, 2
    %2321 = vmatprep.subr.bf16.mxu0 %v1911
    %2322 = vmatpush1.bf16.msra.mxu0 %v1910
    %2323 = vmatprep.subr.bf16.mxu0 %v1907
    %2324 = vmatpush1.bf16.msra.mxu0 %v1906
    %2325 = vmatprep.subr.bf16.mxu0 %v1903
    %2326 = vmatpush1.bf16.msra.mxu0 %v1902
    %2327 = vmatprep.subr.bf16.mxu0 %v1899
    %2328 = vmatpush1.bf16.msra.mxu0 %v1898
    %2329 = vmatprep.subr.bf16.mxu0 %v1895
    %2330 = vmatpush1.bf16.msra.mxu0 %v1894
    %2331 = vmatprep.subr.bf16.mxu0 %v1891
    %2332 = vmatpush1.bf16.msra.mxu0 %v1890
    %2333 = vmatprep.subr.bf16.mxu0 %v1887
    %2334 = vmatpush1.bf16.msra.mxu0 %v1886
    %2335 = vmatprep.subr.bf16.mxu0 %v1883
    %2336 = vmatpush1.bf16.msra.mxu0 %v1882
    %2337 = vmatprep.subr.bf16.mxu0 0
    %2338 = vmatpush2.bf16.msra.mxu0 0
    %2339 = vmatprep.subr.bf16.mxu0 0
    %2340 = vmatpush2.bf16.msra.mxu0 0
    %2341 = vmatprep.subr.bf16.mxu0 0
    %2342 = vmatpush2.bf16.msra.mxu0 0
    %2343 = vmatprep.subr.bf16.mxu0 0
    %2344 = vmatpush2.bf16.msra.mxu0 0
    %2345 = vmatprep.subr.bf16.mxu0 0
    %2346 = vmatpush2.bf16.msra.mxu0 0
    %2347 = vmatprep.subr.bf16.mxu0 0
    %2348 = vmatpush2.bf16.msra.mxu0 0
    %2349 = vmatprep.subr.bf16.mxu0 0
    %2350 = vmatpush2.bf16.msra.mxu0 0
    %2351 = vmatprep.subr.bf16.mxu0 0
    %2352 = vmatpush2.bf16.msra.mxu0 0
    %2353 = vmatprep.mubr.bf16.mxu0 0
    %2354 = vmatmul.mubr.bf16.gmra.mxu0 %v2319
    %v2355 = vpop.f32.mrf.mxu0
    %v2356 = vadd.f32 0.0, %v2355
    %v2357 = vpop.f32.mrf.mxu0
    %v2358 = vadd.f32 0.0, %v2357
    %v2359 = vpop.f32.mrf.mxu0
    %v2360 = vpop.f32.mrf.mxu0
    %2361 = vdwg.mxu0
    %2362 = vmatprep.subr.bf16.mxu0 %v1913
    %2363 = vmatpush1.bf16.msra.mxu0 %v1912
    %2364 = vmatprep.subr.bf16.mxu0 %v1909
    %2365 = vmatpush1.bf16.msra.mxu0 %v1908
    %2366 = vmatprep.subr.bf16.mxu0 %v1905
    %2367 = vmatpush1.bf16.msra.mxu0 %v1904
    %2368 = vmatprep.subr.bf16.mxu0 %v1901
    %2369 = vmatpush1.bf16.msra.mxu0 %v1900
    %2370 = vmatprep.subr.bf16.mxu0 %v1897
    %2371 = vmatpush1.bf16.msra.mxu0 %v1896
    %2372 = vmatprep.subr.bf16.mxu0 %v1893
    %2373 = vmatpush1.bf16.msra.mxu0 %v1892
    %2374 = vmatprep.subr.bf16.mxu0 %v1889
    %2375 = vmatpush1.bf16.msra.mxu0 %v1888
    %2376 = vmatprep.subr.bf16.mxu0 %v1885
    %2377 = vmatpush1.bf16.msra.mxu0 %v1884
    %2378 = vmatprep.subr.bf16.mxu0 0
    %2379 = vmatpush2.bf16.msra.mxu0 0
    %2380 = vmatprep.subr.bf16.mxu0 0
    %2381 = vmatpush2.bf16.msra.mxu0 0
    %2382 = vmatprep.subr.bf16.mxu0 0
    %2383 = vmatpush2.bf16.msra.mxu0 0
    %2384 = vmatprep.subr.bf16.mxu0 0
    %2385 = vmatpush2.bf16.msra.mxu0 0
    %2386 = vmatprep.subr.bf16.mxu0 0
    %2387 = vmatpush2.bf16.msra.mxu0 0
    %2388 = vmatprep.subr.bf16.mxu0 0
    %2389 = vmatpush2.bf16.msra.mxu0 0
    %2390 = vmatprep.subr.bf16.mxu0 0
    %2391 = vmatpush2.bf16.msra.mxu0 0
    %2392 = vmatprep.subr.bf16.mxu0 0
    %2393 = vmatpush2.bf16.msra.mxu0 0
    %2394 = vmatprep.mubr.bf16.mxu0 0
    %2395 = vmatmul.mubr.bf16.gmra.mxu0 %v2319
    %v2396 = vpop.f32.mrf.mxu0
    %v2397 = vadd.f32 0.0, %v2396
    %v2398 = vpop.f32.mrf.mxu0
    %v2399 = vadd.f32 0.0, %v2398
    %v2400 = vpop.f32.mrf.mxu0
    %v2401 = vpop.f32.mrf.mxu0
    %2402 = vdwg.mxu0
    %v2407 = vrot.slane %v2356, 2
    %v2408 = vrot.slane %v2358, 2
    %v2409 = vrot.slane %v2397, 2
    %v2410 = vrot.slane %v2399, 2
    %v2415 = vadd.f32 %v1735, %v2407
    %v2416 = vadd.f32 %v1737, %v2408
    %v2417 = vadd.f32 %v1778, %v2409
    %v2418 = vadd.f32 %v1780, %v2410
    %v2419 = vxor.u32 %v2415, 2147483648
    %v2420 = vmul.f32 %v2419, 1.442695
    %v2421 = vpow.pop %v2420
    %v2422 = vadd.f32 %v2421, 1.0
    %v2423 = vrcp.pop %v2422
    %v2424 = vmul.f32 1.0, %v2423
    %v2425 = vxor.u32 %v2416, 2147483648
    %v2426 = vmul.f32 %v2425, 1.442695
    %v2427 = vpow.pop %v2426
    %v2428 = vadd.f32 %v2427, 1.0
    %v2429 = vrcp.pop %v2428
    %v2430 = vmul.f32 1.0, %v2429
    %v2431 = vxor.u32 %v2417, 2147483648
    %v2432 = vmul.f32 %v2431, 1.442695
    %v2433 = vpow.pop %v2432
    %v2434 = vadd.f32 %v2433, 1.0
    %v2435 = vrcp.pop %v2434
    %v2436 = vmul.f32 1.0, %v2435
    %v2437 = vtanh.pop %v2418
    %v2439 = vrot.slane %v2312, 6
    %v2441 = vmul.f32 %v2430, %v2439
    %v2442 = vmul.f32 %v2424, %v2437
    %v2443 = vadd.f32 %v2441, %v2442
    %v2444 = vtanh.pop %v2443
    %v2445 = vmul.f32 %v2436, %v2444
    %2446 = vst [vmem:[#allocation3 - $0x3] sm:$0x40] %v2445
    %2447 = vst [vmem:[#allocation3 + $0x4] sm:$0x80] %v2445
    %v2448 = vpack.c.bf16 %v2445, %v2445
    %v2450 = vrot.slane %v2448, 3
    %2452 = vmatprep.subr.bf16.mxu0 %v1911
    %2453 = vmatpush1.bf16.msra.mxu0 %v1910
    %2454 = vmatprep.subr.bf16.mxu0 %v1907
    %2455 = vmatpush1.bf16.msra.mxu0 %v1906
    %2456 = vmatprep.subr.bf16.mxu0 %v1903
    %2457 = vmatpush1.bf16.msra.mxu0 %v1902
    %2458 = vmatprep.subr.bf16.mxu0 %v1899
    %2459 = vmatpush1.bf16.msra.mxu0 %v1898
    %2460 = vmatprep.subr.bf16.mxu0 %v1895
    %2461 = vmatpush1.bf16.msra.mxu0 %v1894
    %2462 = vmatprep.subr.bf16.mxu0 %v1891
    %2463 = vmatpush1.bf16.msra.mxu0 %v1890
    %2464 = vmatprep.subr.bf16.mxu0 %v1887
    %2465 = vmatpush1.bf16.msra.mxu0 %v1886
    %2466 = vmatprep.subr.bf16.mxu0 %v1883
    %2467 = vmatpush1.bf16.msra.mxu0 %v1882
    %2468 = vmatprep.subr.bf16.mxu0 0
    %2469 = vmatpush2.bf16.msra.mxu0 0
    %2470 = vmatprep.subr.bf16.mxu0 0
    %2471 = vmatpush2.bf16.msra.mxu0 0
    %2472 = vmatprep.subr.bf16.mxu0 0
    %2473 = vmatpush2.bf16.msra.mxu0 0
    %2474 = vmatprep.subr.bf16.mxu0 0
    %2475 = vmatpush2.bf16.msra.mxu0 0
    %2476 = vmatprep.subr.bf16.mxu0 0
    %2477 = vmatpush2.bf16.msra.mxu0 0
    %2478 = vmatprep.subr.bf16.mxu0 0
    %2479 = vmatpush2.bf16.msra.mxu0 0
    %2480 = vmatprep.subr.bf16.mxu0 0
    %2481 = vmatpush2.bf16.msra.mxu0 0
    %2482 = vmatprep.subr.bf16.mxu0 0
    %2483 = vmatpush2.bf16.msra.mxu0 0
    %2484 = vmatprep.mubr.bf16.mxu0 0
    %2485 = vmatmul.mubr.bf16.gmra.mxu0 %v2450
    %v2486 = vpop.f32.mrf.mxu0
    %v2487 = vadd.f32 0.0, %v2486
    %v2488 = vpop.f32.mrf.mxu0
    %v2489 = vadd.f32 0.0, %v2488
    %v2490 = vpop.f32.mrf.mxu0
    %v2491 = vpop.f32.mrf.mxu0
    %2492 = vdwg.mxu0
    %2493 = vmatprep.subr.bf16.mxu0 %v1913
    %2494 = vmatpush1.bf16.msra.mxu0 %v1912
    %2495 = vmatprep.subr.bf16.mxu0 %v1909
    %2496 = vmatpush1.bf16.msra.mxu0 %v1908
    %2497 = vmatprep.subr.bf16.mxu0 %v1905
    %2498 = vmatpush1.bf16.msra.mxu0 %v1904
    %2499 = vmatprep.subr.bf16.mxu0 %v1901
    %2500 = vmatpush1.bf16.msra.mxu0 %v1900
    %2501 = vmatprep.subr.bf16.mxu0 %v1897
    %2502 = vmatpush1.bf16.msra.mxu0 %v1896
    %2503 = vmatprep.subr.bf16.mxu0 %v1893
    %2504 = vmatpush1.bf16.msra.mxu0 %v1892
    %2505 = vmatprep.subr.bf16.mxu0 %v1889
    %2506 = vmatpush1.bf16.msra.mxu0 %v1888
    %2507 = vmatprep.subr.bf16.mxu0 %v1885
    %2508 = vmatpush1.bf16.msra.mxu0 %v1884
    %2509 = vmatprep.subr.bf16.mxu0 0
    %2510 = vmatpush2.bf16.msra.mxu0 0
    %2511 = vmatprep.subr.bf16.mxu0 0
    %2512 = vmatpush2.bf16.msra.mxu0 0
    %2513 = vmatprep.subr.bf16.mxu0 0
    %2514 = vmatpush2.bf16.msra.mxu0 0
    %2515 = vmatprep.subr.bf16.mxu0 0
    %2516 = vmatpush2.bf16.msra.mxu0 0
    %2517 = vmatprep.subr.bf16.mxu0 0
    %2518 = vmatpush2.bf16.msra.mxu0 0
    %2519 = vmatprep.subr.bf16.mxu0 0
    %2520 = vmatpush2.bf16.msra.mxu0 0
    %2521 = vmatprep.subr.bf16.mxu0 0
    %2522 = vmatpush2.bf16.msra.mxu0 0
    %2523 = vmatprep.subr.bf16.mxu0 0
    %2524 = vmatpush2.bf16.msra.mxu0 0
    %2525 = vmatprep.mubr.bf16.mxu0 0
    %2526 = vmatmul.mubr.bf16.gmra.mxu0 %v2450
    %v2527 = vpop.f32.mrf.mxu0
    %v2528 = vadd.f32 0.0, %v2527
    %v2529 = vpop.f32.mrf.mxu0
    %v2530 = vadd.f32 0.0, %v2529
    %v2531 = vpop.f32.mrf.mxu0
    %v2532 = vpop.f32.mrf.mxu0
    %2533 = vdwg.mxu0
    %v2534 = vadd.f32 %v1739, %v2487
    %v2535 = vadd.f32 %v1741, %v2489
    %v2536 = vadd.f32 %v1782, %v2528
    %v2537 = vadd.f32 %v1784, %v2530
    %v2538 = vxor.u32 %v2534, 2147483648
    %v2539 = vmul.f32 %v2538, 1.442695
    %v2540 = vpow.pop %v2539
    %v2541 = vadd.f32 %v2540, 1.0
    %v2542 = vrcp.pop %v2541
    %v2543 = vmul.f32 1.0, %v2542
    %v2544 = vxor.u32 %v2535, 2147483648
    %v2545 = vmul.f32 %v2544, 1.442695
    %v2546 = vpow.pop %v2545
    %v2547 = vadd.f32 %v2546, 1.0
    %v2548 = vrcp.pop %v2547
    %v2549 = vmul.f32 1.0, %v2548
    %v2550 = vxor.u32 %v2536, 2147483648
    %v2551 = vmul.f32 %v2550, 1.442695
    %v2552 = vpow.pop %v2551
    %v2553 = vadd.f32 %v2552, 1.0
    %v2554 = vrcp.pop %v2553
    %v2555 = vmul.f32 1.0, %v2554
    %v2556 = vtanh.pop %v2537
    %v2558 = vrot.slane %v2443, 6
    %v2560 = vmul.f32 %v2549, %v2558
    %v2561 = vmul.f32 %v2543, %v2556
    %v2562 = vadd.f32 %v2560, %v2561
    %v2563 = vtanh.pop %v2562
    %v2564 = vmul.f32 %v2555, %v2563
    %2565 = vst [vmem:[#allocation3 + $0x4] sm:$0x1] %v2564
    %2566 = vst [vmem:[#allocation3 + $0xb] sm:$0x2] %v2564
    %v2567 = vpack.c.bf16 %v2564, %v2564
    %2568 = vmatprep.subr.bf16.mxu0 %v1911
    %2569 = vmatpush1.bf16.msra.mxu0 %v1910
    %2570 = vmatprep.subr.bf16.mxu0 %v1907
    %2571 = vmatpush1.bf16.msra.mxu0 %v1906
    %2572 = vmatprep.subr.bf16.mxu0 %v1903
    %2573 = vmatpush1.bf16.msra.mxu0 %v1902
    %2574 = vmatprep.subr.bf16.mxu0 %v1899
    %2575 = vmatpush1.bf16.msra.mxu0 %v1898
    %2576 = vmatprep.subr.bf16.mxu0 %v1895
    %2577 = vmatpush1.bf16.msra.mxu0 %v1894
    %2578 = vmatprep.subr.bf16.mxu0 %v1891
    %2579 = vmatpush1.bf16.msra.mxu0 %v1890
    %2580 = vmatprep.subr.bf16.mxu0 %v1887
    %2581 = vmatpush1.bf16.msra.mxu0 %v1886
    %2582 = vmatprep.subr.bf16.mxu0 %v1883
    %2583 = vmatpush1.bf16.msra.mxu0 %v1882
    %2584 = vmatprep.subr.bf16.mxu0 0
    %2585 = vmatpush2.bf16.msra.mxu0 0
    %2586 = vmatprep.subr.bf16.mxu0 0
    %2587 = vmatpush2.bf16.msra.mxu0 0
    %2588 = vmatprep.subr.bf16.mxu0 0
    %2589 = vmatpush2.bf16.msra.mxu0 0
    %2590 = vmatprep.subr.bf16.mxu0 0
    %2591 = vmatpush2.bf16.msra.mxu0 0
    %2592 = vmatprep.subr.bf16.mxu0 0
    %2593 = vmatpush2.bf16.msra.mxu0 0
    %2594 = vmatprep.subr.bf16.mxu0 0
    %2595 = vmatpush2.bf16.msra.mxu0 0
    %2596 = vmatprep.subr.bf16.mxu0 0
    %2597 = vmatpush2.bf16.msra.mxu0 0
    %2598 = vmatprep.subr.bf16.mxu0 0
    %2599 = vmatpush2.bf16.msra.mxu0 0
    %2600 = vmatprep.mubr.bf16.mxu0 0
    %2601 = vmatmul.mubr.bf16.gmra.mxu0 %v2567
    %v2602 = vpop.f32.mrf.mxu0
    %v2603 = vadd.f32 0.0, %v2602
    %v2604 = vpop.f32.mrf.mxu0
    %v2605 = vadd.f32 0.0, %v2604
    %v2606 = vpop.f32.mrf.mxu0
    %v2607 = vpop.f32.mrf.mxu0
    %2608 = vdwg.mxu0
    %2609 = vmatprep.subr.bf16.mxu0 %v1913
    %2610 = vmatpush1.bf16.msra.mxu0 %v1912
    %2611 = vmatprep.subr.bf16.mxu0 %v1909
    %2612 = vmatpush1.bf16.msra.mxu0 %v1908
    %2613 = vmatprep.subr.bf16.mxu0 %v1905
    %2614 = vmatpush1.bf16.msra.mxu0 %v1904
    %2615 = vmatprep.subr.bf16.mxu0 %v1901
    %2616 = vmatpush1.bf16.msra.mxu0 %v1900
    %2617 = vmatprep.subr.bf16.mxu0 %v1897
    %2618 = vmatpush1.bf16.msra.mxu0 %v1896
    %2619 = vmatprep.subr.bf16.mxu0 %v1893
    %2620 = vmatpush1.bf16.msra.mxu0 %v1892
    %2621 = vmatprep.subr.bf16.mxu0 %v1889
    %2622 = vmatpush1.bf16.msra.mxu0 %v1888
    %2623 = vmatprep.subr.bf16.mxu0 %v1885
    %2624 = vmatpush1.bf16.msra.mxu0 %v1884
    %2625 = vmatprep.subr.bf16.mxu0 0
    %2626 = vmatpush2.bf16.msra.mxu0 0
    %2627 = vmatprep.subr.bf16.mxu0 0
    %2628 = vmatpush2.bf16.msra.mxu0 0
    %2629 = vmatprep.subr.bf16.mxu0 0
    %2630 = vmatpush2.bf16.msra.mxu0 0
    %2631 = vmatprep.subr.bf16.mxu0 0
    %2632 = vmatpush2.bf16.msra.mxu0 0
    %2633 = vmatprep.subr.bf16.mxu0 0
    %2634 = vmatpush2.bf16.msra.mxu0 0
    %2635 = vmatprep.subr.bf16.mxu0 0
    %2636 = vmatpush2.bf16.msra.mxu0 0
    %2637 = vmatprep.subr.bf16.mxu0 0
    %2638 = vmatpush2.bf16.msra.mxu0 0
    %2639 = vmatprep.subr.bf16.mxu0 0
    %2640 = vmatpush2.bf16.msra.mxu0 0
    %2641 = vmatprep.mubr.bf16.mxu0 0
    %2642 = vmatmul.mubr.bf16.gmra.mxu0 %v2567
    %v2643 = vpop.f32.mrf.mxu0
    %v2644 = vadd.f32 0.0, %v2643
    %v2645 = vpop.f32.mrf.mxu0
    %v2646 = vadd.f32 0.0, %v2645
    %v2647 = vpop.f32.mrf.mxu0
    %v2648 = vpop.f32.mrf.mxu0
    %2649 = vdwg.mxu0
    %v2654 = vrot.slane %v2603, 6
    %v2655 = vrot.slane %v2605, 6
    %v2656 = vrot.slane %v2644, 6
    %v2657 = vrot.slane %v2646, 6
    %v2662 = vadd.f32 %v1739, %v2654
    %v2663 = vadd.f32 %v1741, %v2655
    %v2664 = vadd.f32 %v1782, %v2656
    %v2665 = vadd.f32 %v1784, %v2657
    %v2666 = vxor.u32 %v2662, 2147483648
    %v2667 = vmul.f32 %v2666, 1.442695
    %v2668 = vpow.pop %v2667
    %v2669 = vadd.f32 %v2668, 1.0
    %v2670 = vrcp.pop %v2669
    %v2671 = vmul.f32 1.0, %v2670
    %v2672 = vxor.u32 %v2663, 2147483648
    %v2673 = vmul.f32 %v2672, 1.442695
    %v2674 = vpow.pop %v2673
    %v2675 = vadd.f32 %v2674, 1.0
    %v2676 = vrcp.pop %v2675
    %v2677 = vmul.f32 1.0, %v2676
    %v2678 = vxor.u32 %v2664, 2147483648
    %v2679 = vmul.f32 %v2678, 1.442695
    %v2680 = vpow.pop %v2679
    %v2681 = vadd.f32 %v2680, 1.0
    %v2682 = vrcp.pop %v2681
    %v2683 = vmul.f32 1.0, %v2682
    %v2684 = vtanh.pop %v2665
    %v2686 = vrot.slane %v2562, 6
    %v2688 = vmul.f32 %v2677, %v2686
    %v2689 = vmul.f32 %v2671, %v2684
    %v2690 = vadd.f32 %v2688, %v2689
    %v2691 = vtanh.pop %v2690
    %v2692 = vmul.f32 %v2683, %v2691
    %2693 = vst [vmem:[#allocation3 + $0x3] sm:$0x4] %v2692
    %2694 = vst [vmem:[#allocation3 + $0xa] sm:$0x8] %v2692
    %v2695 = vpack.c.bf16 %v2692, %v2692
    %v2697 = vrot.slane %v2695, 1
    %2699 = vmatprep.subr.bf16.mxu0 %v1911
    %2700 = vmatpush1.bf16.msra.mxu0 %v1910
    %2701 = vmatprep.subr.bf16.mxu0 %v1907
    %2702 = vmatpush1.bf16.msra.mxu0 %v1906
    %2703 = vmatprep.subr.bf16.mxu0 %v1903
    %2704 = vmatpush1.bf16.msra.mxu0 %v1902
    %2705 = vmatprep.subr.bf16.mxu0 %v1899
    %2706 = vmatpush1.bf16.msra.mxu0 %v1898
    %2707 = vmatprep.subr.bf16.mxu0 %v1895
    %2708 = vmatpush1.bf16.msra.mxu0 %v1894
    %2709 = vmatprep.subr.bf16.mxu0 %v1891
    %2710 = vmatpush1.bf16.msra.mxu0 %v1890
    %2711 = vmatprep.subr.bf16.mxu0 %v1887
    %2712 = vmatpush1.bf16.msra.mxu0 %v1886
    %2713 = vmatprep.subr.bf16.mxu0 %v1883
    %2714 = vmatpush1.bf16.msra.mxu0 %v1882
    %2715 = vmatprep.subr.bf16.mxu0 0
    %2716 = vmatpush2.bf16.msra.mxu0 0
    %2717 = vmatprep.subr.bf16.mxu0 0
    %2718 = vmatpush2.bf16.msra.mxu0 0
    %2719 = vmatprep.subr.bf16.mxu0 0
    %2720 = vmatpush2.bf16.msra.mxu0 0
    %2721 = vmatprep.subr.bf16.mxu0 0
    %2722 = vmatpush2.bf16.msra.mxu0 0
    %2723 = vmatprep.subr.bf16.mxu0 0
    %2724 = vmatpush2.bf16.msra.mxu0 0
    %2725 = vmatprep.subr.bf16.mxu0 0
    %2726 = vmatpush2.bf16.msra.mxu0 0
    %2727 = vmatprep.subr.bf16.mxu0 0
    %2728 = vmatpush2.bf16.msra.mxu0 0
    %2729 = vmatprep.subr.bf16.mxu0 0
    %2730 = vmatpush2.bf16.msra.mxu0 0
    %2731 = vmatprep.mubr.bf16.mxu0 0
    %2732 = vmatmul.mubr.bf16.gmra.mxu0 %v2697
    %v2733 = vpop.f32.mrf.mxu0
    %v2734 = vadd.f32 0.0, %v2733
    %v2735 = vpop.f32.mrf.mxu0
    %v2736 = vadd.f32 0.0, %v2735
    %v2737 = vpop.f32.mrf.mxu0
    %v2738 = vpop.f32.mrf.mxu0
    %2739 = vdwg.mxu0
    %2740 = vmatprep.subr.bf16.mxu0 %v1913
    %2741 = vmatpush1.bf16.msra.mxu0 %v1912
    %2742 = vmatprep.subr.bf16.mxu0 %v1909
    %2743 = vmatpush1.bf16.msra.mxu0 %v1908
    %2744 = vmatprep.subr.bf16.mxu0 %v1905
    %2745 = vmatpush1.bf16.msra.mxu0 %v1904
    %2746 = vmatprep.subr.bf16.mxu0 %v1901
    %2747 = vmatpush1.bf16.msra.mxu0 %v1900
    %2748 = vmatprep.subr.bf16.mxu0 %v1897
    %2749 = vmatpush1.bf16.msra.mxu0 %v1896
    %2750 = vmatprep.subr.bf16.mxu0 %v1893
    %2751 = vmatpush1.bf16.msra.mxu0 %v1892
    %2752 = vmatprep.subr.bf16.mxu0 %v1889
    %2753 = vmatpush1.bf16.msra.mxu0 %v1888
    %2754 = vmatprep.subr.bf16.mxu0 %v1885
    %2755 = vmatpush1.bf16.msra.mxu0 %v1884
    %2756 = vmatprep.subr.bf16.mxu0 0
    %2757 = vmatpush2.bf16.msra.mxu0 0
    %2758 = vmatprep.subr.bf16.mxu0 0
    %2759 = vmatpush2.bf16.msra.mxu0 0
    %2760 = vmatprep.subr.bf16.mxu0 0
    %2761 = vmatpush2.bf16.msra.mxu0 0
    %2762 = vmatprep.subr.bf16.mxu0 0
    %2763 = vmatpush2.bf16.msra.mxu0 0
    %2764 = vmatprep.subr.bf16.mxu0 0
    %2765 = vmatpush2.bf16.msra.mxu0 0
    %2766 = vmatprep.subr.bf16.mxu0 0
    %2767 = vmatpush2.bf16.msra.mxu0 0
    %2768 = vmatprep.subr.bf16.mxu0 0
    %2769 = vmatpush2.bf16.msra.mxu0 0
    %2770 = vmatprep.subr.bf16.mxu0 0
    %2771 = vmatpush2.bf16.msra.mxu0 0
    %2772 = vmatprep.mubr.bf16.mxu0 0
    %2773 = vmatmul.mubr.bf16.gmra.mxu0 %v2697
    %v2774 = vpop.f32.mrf.mxu0
    %v2775 = vadd.f32 0.0, %v2774
    %v2776 = vpop.f32.mrf.mxu0
    %v2777 = vadd.f32 0.0, %v2776
    %v2778 = vpop.f32.mrf.mxu0
    %v2779 = vpop.f32.mrf.mxu0
    %2780 = vdwg.mxu0
    %v2785 = vrot.slane %v2734, 4
    %v2786 = vrot.slane %v2736, 4
    %v2787 = vrot.slane %v2775, 4
    %v2788 = vrot.slane %v2777, 4
    %v2793 = vadd.f32 %v1739, %v2785
    %v2794 = vadd.f32 %v1741, %v2786
    %v2795 = vadd.f32 %v1782, %v2787
    %v2796 = vadd.f32 %v1784, %v2788
    %v2797 = vxor.u32 %v2793, 2147483648
    %v2798 = vmul.f32 %v2797, 1.442695
    %v2799 = vpow.pop %v2798
    %v2800 = vadd.f32 %v2799, 1.0
    %v2801 = vrcp.pop %v2800
    %v2802 = vmul.f32 1.0, %v2801
    %v2803 = vxor.u32 %v2794, 2147483648
    %v2804 = vmul.f32 %v2803, 1.442695
    %v2805 = vpow.pop %v2804
    %v2806 = vadd.f32 %v2805, 1.0
    %v2807 = vrcp.pop %v2806
    %v2808 = vmul.f32 1.0, %v2807
    %v2809 = vxor.u32 %v2795, 2147483648
    %v2810 = vmul.f32 %v2809, 1.442695
    %v2811 = vpow.pop %v2810
    %v2812 = vadd.f32 %v2811, 1.0
    %v2813 = vrcp.pop %v2812
    %v2814 = vmul.f32 1.0, %v2813
    %v2815 = vtanh.pop %v2796
    %v2817 = vrot.slane %v2690, 6
    %v2819 = vmul.f32 %v2808, %v2817
    %v2820 = vmul.f32 %v2802, %v2815
    %v2821 = vadd.f32 %v2819, %v2820
    %v2822 = vtanh.pop %v2821
    %v2823 = vmul.f32 %v2814, %v2822
    %2824 = vst [vmem:[#allocation3 + $0x2] sm:$0x10] %v2823
    %2825 = vst [vmem:[#allocation3 + $0x9] sm:$0x20] %v2823
    %v2826 = vpack.c.bf16 %v2823, %v2823
    %v2828 = vrot.slane %v2826, 2
    %2830 = vmatprep.subr.bf16.mxu0 %v1911
    %2831 = vmatpush1.bf16.msra.mxu0 %v1910
    %2832 = vmatprep.subr.bf16.mxu0 %v1907
    %2833 = vmatpush1.bf16.msra.mxu0 %v1906
    %2834 = vmatprep.subr.bf16.mxu0 %v1903
    %2835 = vmatpush1.bf16.msra.mxu0 %v1902
    %2836 = vmatprep.subr.bf16.mxu0 %v1899
    %2837 = vmatpush1.bf16.msra.mxu0 %v1898
    %2838 = vmatprep.subr.bf16.mxu0 %v1895
    %2839 = vmatpush1.bf16.msra.mxu0 %v1894
    %2840 = vmatprep.subr.bf16.mxu0 %v1891
    %2841 = vmatpush1.bf16.msra.mxu0 %v1890
    %2842 = vmatprep.subr.bf16.mxu0 %v1887
    %2843 = vmatpush1.bf16.msra.mxu0 %v1886
    %2844 = vmatprep.subr.bf16.mxu0 %v1883
    %2845 = vmatpush1.bf16.msra.mxu0 %v1882
    %2846 = vmatprep.subr.bf16.mxu0 0
    %2847 = vmatpush2.bf16.msra.mxu0 0
    %2848 = vmatprep.subr.bf16.mxu0 0
    %2849 = vmatpush2.bf16.msra.mxu0 0
    %2850 = vmatprep.subr.bf16.mxu0 0
    %2851 = vmatpush2.bf16.msra.mxu0 0
    %2852 = vmatprep.subr.bf16.mxu0 0
    %2853 = vmatpush2.bf16.msra.mxu0 0
    %2854 = vmatprep.subr.bf16.mxu0 0
    %2855 = vmatpush2.bf16.msra.mxu0 0
    %2856 = vmatprep.subr.bf16.mxu0 0
    %2857 = vmatpush2.bf16.msra.mxu0 0
    %2858 = vmatprep.subr.bf16.mxu0 0
    %2859 = vmatpush2.bf16.msra.mxu0 0
    %2860 = vmatprep.subr.bf16.mxu0 0
    %2861 = vmatpush2.bf16.msra.mxu0 0
    %2862 = vmatprep.mubr.bf16.mxu0 0
    %2863 = vmatmul.mubr.bf16.gmra.mxu0 %v2828
    %v2864 = vpop.f32.mrf.mxu0
    %v2865 = vadd.f32 0.0, %v2864
    %v2866 = vpop.f32.mrf.mxu0
    %v2867 = vadd.f32 0.0, %v2866
    %v2868 = vpop.f32.mrf.mxu0
    %v2869 = vpop.f32.mrf.mxu0
    %2870 = vdwg.mxu0
    %2871 = vmatprep.subr.bf16.mxu0 %v1913
    %2872 = vmatpush1.bf16.msra.mxu0 %v1912
    %2873 = vmatprep.subr.bf16.mxu0 %v1909
    %2874 = vmatpush1.bf16.msra.mxu0 %v1908
    %2875 = vmatprep.subr.bf16.mxu0 %v1905
    %2876 = vmatpush1.bf16.msra.mxu0 %v1904
    %2877 = vmatprep.subr.bf16.mxu0 %v1901
    %2878 = vmatpush1.bf16.msra.mxu0 %v1900
    %2879 = vmatprep.subr.bf16.mxu0 %v1897
    %2880 = vmatpush1.bf16.msra.mxu0 %v1896
    %2881 = vmatprep.subr.bf16.mxu0 %v1893
    %2882 = vmatpush1.bf16.msra.mxu0 %v1892
    %2883 = vmatprep.subr.bf16.mxu0 %v1889
    %2884 = vmatpush1.bf16.msra.mxu0 %v1888
    %2885 = vmatprep.subr.bf16.mxu0 %v1885
    %2886 = vmatpush1.bf16.msra.mxu0 %v1884
    %2887 = vmatprep.subr.bf16.mxu0 0
    %2888 = vmatpush2.bf16.msra.mxu0 0
    %2889 = vmatprep.subr.bf16.mxu0 0
    %2890 = vmatpush2.bf16.msra.mxu0 0
    %2891 = vmatprep.subr.bf16.mxu0 0
    %2892 = vmatpush2.bf16.msra.mxu0 0
    %2893 = vmatprep.subr.bf16.mxu0 0
    %2894 = vmatpush2.bf16.msra.mxu0 0
    %2895 = vmatprep.subr.bf16.mxu0 0
    %2896 = vmatpush2.bf16.msra.mxu0 0
    %2897 = vmatprep.subr.bf16.mxu0 0
    %2898 = vmatpush2.bf16.msra.mxu0 0
    %2899 = vmatprep.subr.bf16.mxu0 0
    %2900 = vmatpush2.bf16.msra.mxu0 0
    %2901 = vmatprep.subr.bf16.mxu0 0
    %2902 = vmatpush2.bf16.msra.mxu0 0
    %2903 = vmatprep.mubr.bf16.mxu0 0
    %2904 = vmatmul.mubr.bf16.gmra.mxu0 %v2828
    %v2905 = vpop.f32.mrf.mxu0
    %v2906 = vadd.f32 0.0, %v2905
    %v2907 = vpop.f32.mrf.mxu0
    %v2908 = vadd.f32 0.0, %v2907
    %v2909 = vpop.f32.mrf.mxu0
    %v2910 = vpop.f32.mrf.mxu0
    %2911 = vdwg.mxu0
    %v2916 = vrot.slane %v2865, 2
    %v2917 = vrot.slane %v2867, 2
    %v2918 = vrot.slane %v2906, 2
    %v2919 = vrot.slane %v2908, 2
    %v2924 = vadd.f32 %v1739, %v2916
    %v2925 = vadd.f32 %v1741, %v2917
    %v2926 = vadd.f32 %v1782, %v2918
    %v2927 = vadd.f32 %v1784, %v2919
    %v2928 = vxor.u32 %v2924, 2147483648
    %v2929 = vmul.f32 %v2928, 1.442695
    %v2930 = vpow.pop %v2929
    %v2931 = vadd.f32 %v2930, 1.0
    %v2932 = vrcp.pop %v2931
    %v2933 = vmul.f32 1.0, %v2932
    %v2934 = vxor.u32 %v2925, 2147483648
    %v2935 = vmul.f32 %v2934, 1.442695
    %v2936 = vpow.pop %v2935
    %v2937 = vadd.f32 %v2936, 1.0
    %v2938 = vrcp.pop %v2937
    %v2939 = vmul.f32 1.0, %v2938
    %v2940 = vxor.u32 %v2926, 2147483648
    %v2941 = vmul.f32 %v2940, 1.442695
    %v2942 = vpow.pop %v2941
    %v2943 = vadd.f32 %v2942, 1.0
    %v2944 = vrcp.pop %v2943
    %v2945 = vmul.f32 1.0, %v2944
    %v2946 = vtanh.pop %v2927
    %v2948 = vrot.slane %v2821, 6
    %v2950 = vmul.f32 %v2939, %v2948
    %v2951 = vmul.f32 %v2933, %v2946
    %v2952 = vadd.f32 %v2950, %v2951
    %v2953 = vtanh.pop %v2952
    %v2954 = vmul.f32 %v2945, %v2953
    %2955 = vst [vmem:[#allocation3 + $0x1] sm:$0x40] %v2954
    %2956 = vst [vmem:[#allocation3 + $0x8] sm:$0x80] %v2954
    %v2957 = vld [vmem:[#allocation10] sm:$0xf]
    %v2958 = vld [vmem:[#allocation10 + $0x4] sm:$0xf]
    %v2959 = vld [vmem:[#allocation10 + $0x8] sm:$0xf]
    %v2960 = vld [vmem:[#allocation10 + $0xc] sm:$0xf]
    %v2961 = vld [vmem:[#allocation10 + $0x10] sm:$0xf]
    %v2962 = vld [vmem:[#allocation10 + $0x14] sm:$0xf]
    %v2963 = vld [vmem:[#allocation10 + $0x18] sm:$0xf]
    %v2964 = vld [vmem:[#allocation10 + $0x1c] sm:$0xf]
    %v2965 = vld [vmem:[#allocation10 + $0x20] sm:$0xf]
    %v2966 = vld [vmem:[#allocation10 + $0x24] sm:$0xf]
    %v2967 = vld [vmem:[#allocation10 + $0x28] sm:$0xf]
    %v2968 = vld [vmem:[#allocation10 + $0x2c] sm:$0xf]
    %v2969 = vld [vmem:[#allocation10 + $0x30] sm:$0xf]
    %v2970 = vld [vmem:[#allocation10 + $0x34] sm:$0xf]
    %v2971 = vld [vmem:[#allocation10 + $0x38] sm:$0xf]
    %v2972 = vld [vmem:[#allocation10 + $0x3c] sm:$0xf]
    %v2973 = vld [vmem:[%s8] sm:$0x1]
    %v2974 = vld [vmem:[#allocation3] sm:$0xff]
    %2975 = vmatprep.subr.mxu0 0.0
    %2976 = vmatpush1.xpose.msra.mxu0 0.0
    %2977 = vmatprep.subr.mxu0 0.0
    %2978 = vmatpush1.xpose.msra.mxu0 0.0
    %2979 = vmatprep.subr.mxu0 0.0
    %2980 = vmatpush1.xpose.msra.mxu0 0.0
    %2981 = vmatprep.subr.mxu0 0.0
    %2982 = vmatpush1.xpose.msra.mxu0 0.0
    %2983 = vmatprep.subr.mxu0 0.0
    %2984 = vmatpush1.xpose.msra.mxu0 0.0
    %2985 = vmatprep.subr.mxu0 0.0
    %2986 = vmatpush1.xpose.msra.mxu0 0.0
    %2987 = vmatprep.subr.mxu0 0.0
    %2988 = vmatpush1.xpose.msra.mxu0 0.0
    %2989 = vmatprep.subr.mxu0 0.0
    %2990 = vmatpush1.xpose.msra.mxu0 0.0
    %2991 = vmatprep.subr.mxu0 0.0
    %2992 = vmatpush1.xpose.msra.mxu0 0.0
    %2993 = vmatprep.subr.mxu0 0.0
    %2994 = vmatpush1.xpose.msra.mxu0 0.0
    %2995 = vmatprep.subr.mxu0 0.0
    %2996 = vmatpush1.xpose.msra.mxu0 0.0
    %2997 = vmatprep.subr.mxu0 0.0
    %2998 = vmatpush1.xpose.msra.mxu0 0.0
    %2999 = vmatprep.subr.mxu0 0.0
    %3000 = vmatpush1.xpose.msra.mxu0 0.0
    %3001 = vmatprep.subr.mxu0 0.0
    %3002 = vmatpush1.xpose.msra.mxu0 0.0
    %3003 = vmatprep.subr.mxu0 0.0
    %3004 = vmatpush1.xpose.msra.mxu0 0.0
    %3005 = vmatprep.subr.mxu0 0.0
    %3006 = vmatpush1.xpose.msra.mxu0 %v2974
    %3007 = vmatprep.subr.mxu0 0.0
    %3008 = vmatpush2.xpose.msra.mxu0 0.0
    %3009 = vmatprep.subr.mxu0 0.0
    %3010 = vmatpush2.xpose.msra.mxu0 0.0
    %3011 = vmatprep.subr.mxu0 0.0
    %3012 = vmatpush2.xpose.msra.mxu0 0.0
    %3013 = vmatprep.subr.mxu0 0.0
    %3014 = vmatpush2.xpose.msra.mxu0 0.0
    %3015 = vmatprep.subr.mxu0 0.0
    %3016 = vmatpush2.xpose.msra.mxu0 0.0
    %3017 = vmatprep.subr.mxu0 0.0
    %3018 = vmatpush2.xpose.msra.mxu0 0.0
    %3019 = vmatprep.subr.mxu0 0.0
    %3020 = vmatpush2.xpose.msra.mxu0 0.0
    %3021 = vmatprep.subr.mxu0 0.0
    %3022 = vmatpush2.xpose.msra.mxu0 0.0
    %3023 = vmatprep.subr.mxu0 0.0
    %3024 = vmatpush2.xpose.msra.mxu0 0.0
    %3025 = vmatprep.subr.mxu0 0.0
    %3026 = vmatpush2.xpose.msra.mxu0 0.0
    %3027 = vmatprep.subr.mxu0 0.0
    %3028 = vmatpush2.xpose.msra.mxu0 0.0
    %3029 = vmatprep.subr.mxu0 0.0
    %3030 = vmatpush2.xpose.msra.mxu0 0.0
    %3031 = vmatprep.subr.mxu0 0.0
    %3032 = vmatpush2.xpose.msra.mxu0 0.0
    %3033 = vmatprep.subr.mxu0 0.0
    %3034 = vmatpush2.xpose.msra.mxu0 0.0
    %3035 = vmatprep.subr.mxu0 0.0
    %3036 = vmatpush2.xpose.msra.mxu0 0.0
    %3037 = vmatprep.subr.mxu0 0.0
    %3038 = vmatpush2.xpose.msra.mxu0 0.0
    %3039 = vmatprep.mubr.f32.mxu0 0.0
    %3040 = vmatmul.mubr.f32.gmra.mxu0 %v2974
    %v3041 = vpop.f32.mrf.mxu0
    %v3042 = vadd.f32 0.0, %v3041
    %v3043 = vpop.f32.mrf.mxu0
    %3044 = vdwg.mxu0
    %vm3045 = vcmask 64512
    %v3046 = vsel %vm3045, %v3042, -inf
    %3047 = vmax.xlane.f32.xlu0 %v3046
    %v3048 = vpop.xlane.xlu0 %3047
    %v3049 = vsub.f32 %v3042, %v3048
    %v3050 = vmul.f32 %v3049, 1.442695
    %v3051 = vpow.pop %v3050
    %v3052 = vsel %vm3045, %v3051, 0.0
    %3053 = vadd.xlane.f32.xlu0 %v3052
    %v3054 = vpop.xlane.xlu0 %3053
    %v3055 = vrcp.pop %v3054
    %v3056 = vmul.f32 %v3051, %v3055
    %v3057 = vsel %vm3045, %v3056, 0.0
    %v3058 = vrot.slane %v3057, 4
    %v3059 = vadd.f32 %v3057, %v3058
    %v3060 = vrot.slane %v3059, 2
    %v3061 = vadd.f32 %v3059, %v3060
    %v3062 = vrot.slane %v3061, 1
    %v3063 = vadd.f32 %v3061, %v3062
    %v3064 = vmul.f32 %v3063, 0.125
    %v3066 = vsel %vm3045, %v3064, 0
    %3068 = vmatprep.subr.mxu0 0.0
    %3069 = vmatpush1.msra.mxu0 0.0
    %3070 = vmatprep.subr.mxu0 0.0
    %3071 = vmatpush1.msra.mxu0 0.0
    %3072 = vmatprep.subr.mxu0 0.0
    %3073 = vmatpush1.msra.mxu0 0.0
    %3074 = vmatprep.subr.mxu0 0.0
    %3075 = vmatpush1.msra.mxu0 0.0
    %3076 = vmatprep.subr.mxu0 0.0
    %3077 = vmatpush1.msra.mxu0 0.0
    %3078 = vmatprep.subr.mxu0 0.0
    %3079 = vmatpush1.msra.mxu0 0.0
    %3080 = vmatprep.subr.mxu0 0.0
    %3081 = vmatpush1.msra.mxu0 0.0
    %3082 = vmatprep.subr.mxu0 0.0
    %3083 = vmatpush1.msra.mxu0 0.0
    %3084 = vmatprep.subr.mxu0 0.0
    %3085 = vmatpush1.msra.mxu0 0.0
    %3086 = vmatprep.subr.mxu0 0.0
    %3087 = vmatpush1.msra.mxu0 0.0
    %3088 = vmatprep.subr.mxu0 0.0
    %3089 = vmatpush1.msra.mxu0 0.0
    %3090 = vmatprep.subr.mxu0 0.0
    %3091 = vmatpush1.msra.mxu0 0.0
    %3092 = vmatprep.subr.mxu0 0.0
    %3093 = vmatpush1.msra.mxu0 0.0
    %3094 = vmatprep.subr.mxu0 0.0
    %3095 = vmatpush1.msra.mxu0 0.0
    %3096 = vmatprep.subr.mxu0 0.0
    %3097 = vmatpush1.msra.mxu0 0.0
    %3098 = vmatprep.subr.mxu0 0.0
    %3099 = vmatpush1.msra.mxu0 %v2974
    %3100 = vmatprep.subr.mxu0 0.0
    %3101 = vmatpush2.msra.mxu0 0.0
    %3102 = vmatprep.subr.mxu0 0.0
    %3103 = vmatpush2.msra.mxu0 0.0
    %3104 = vmatprep.subr.mxu0 0.0
    %3105 = vmatpush2.msra.mxu0 0.0
    %3106 = vmatprep.subr.mxu0 0.0
    %3107 = vmatpush2.msra.mxu0 0.0
    %3108 = vmatprep.subr.mxu0 0.0
    %3109 = vmatpush2.msra.mxu0 0.0
    %3110 = vmatprep.subr.mxu0 0.0
    %3111 = vmatpush2.msra.mxu0 0.0
    %3112 = vmatprep.subr.mxu0 0.0
    %3113 = vmatpush2.msra.mxu0 0.0
    %3114 = vmatprep.subr.mxu0 0.0
    %3115 = vmatpush2.msra.mxu0 0.0
    %3116 = vmatprep.subr.mxu0 0.0
    %3117 = vmatpush2.msra.mxu0 0.0
    %3118 = vmatprep.subr.mxu0 0.0
    %3119 = vmatpush2.msra.mxu0 0.0
    %3120 = vmatprep.subr.mxu0 0.0
    %3121 = vmatpush2.msra.mxu0 0.0
    %3122 = vmatprep.subr.mxu0 0.0
    %3123 = vmatpush2.msra.mxu0 0.0
    %3124 = vmatprep.subr.mxu0 0.0
    %3125 = vmatpush2.msra.mxu0 0.0
    %3126 = vmatprep.subr.mxu0 0.0
    %3127 = vmatpush2.msra.mxu0 0.0
    %3128 = vmatprep.subr.mxu0 0.0
    %3129 = vmatpush2.msra.mxu0 0.0
    %3130 = vmatprep.subr.mxu0 0.0
    %3131 = vmatpush2.msra.mxu0 0.0
    %3132 = vmatprep.mubr.f32.mxu0 0.0
    %3133 = vmatmul.mubr.f32.gmra.mxu0 %v3066
    %v3134 = vpop.f32.mrf.mxu0
    %v3135 = vadd.f32 0.0, %v3134
    %v3136 = vpop.f32.mrf.mxu0
    %3137 = vdwg.mxu0
    %v3138 = vpack.c.bf16 %v3135, %v3135
    %v3155 = vunpack.c.l.b16 %v2957
    %v3156 = vunpack.c.l.b16 %v2958
    %v3157 = vunpack.c.l.b16 %v2959
    %v3158 = vunpack.c.l.b16 %v2960
    %v3159 = vunpack.c.l.b16 %v2961
    %v3160 = vunpack.c.l.b16 %v2962
    %v3161 = vunpack.c.l.b16 %v2963
    %v3162 = vunpack.c.l.b16 %v2964
    %v3163 = vunpack.c.l.b16 %v2965
    %v3164 = vunpack.c.l.b16 %v2966
    %v3165 = vunpack.c.l.b16 %v2967
    %v3166 = vunpack.c.l.b16 %v2968
    %v3167 = vunpack.c.l.b16 %v2969
    %v3168 = vunpack.c.l.b16 %v2970
    %v3169 = vunpack.c.l.b16 %v2971
    %v3170 = vunpack.c.l.b16 %v2972
    %v3171 = vpack.c.b16 %v3156, %v3155
    %v3172 = vpack.c.b16 %v3158, %v3157
    %v3173 = vpack.c.b16 %v3160, %v3159
    %v3174 = vpack.c.b16 %v3162, %v3161
    %v3175 = vpack.c.b16 %v3164, %v3163
    %v3176 = vpack.c.b16 %v3166, %v3165
    %v3177 = vpack.c.b16 %v3168, %v3167
    %v3178 = vpack.c.b16 %v3170, %v3169
    %3187 = vmatprep.subr.bf16.mxu0 0
    %3188 = vmatpush1.bf16.msra.mxu0 %v3178
    %3189 = vmatprep.subr.bf16.mxu0 0
    %3190 = vmatpush1.bf16.msra.mxu0 %v3177
    %3191 = vmatprep.subr.bf16.mxu0 0
    %3192 = vmatpush1.bf16.msra.mxu0 %v3176
    %3193 = vmatprep.subr.bf16.mxu0 0
    %3194 = vmatpush1.bf16.msra.mxu0 %v3175
    %3195 = vmatprep.subr.bf16.mxu0 0
    %3196 = vmatpush1.bf16.msra.mxu0 %v3174
    %3197 = vmatprep.subr.bf16.mxu0 0
    %3198 = vmatpush1.bf16.msra.mxu0 %v3173
    %3199 = vmatprep.subr.bf16.mxu0 0
    %3200 = vmatpush1.bf16.msra.mxu0 %v3172
    %3201 = vmatprep.subr.bf16.mxu0 0
    %3202 = vmatpush1.bf16.msra.mxu0 %v3171
    %3203 = vmatprep.subr.bf16.mxu0 0
    %3204 = vmatpush2.bf16.msra.mxu0 0
    %3205 = vmatprep.subr.bf16.mxu0 0
    %3206 = vmatpush2.bf16.msra.mxu0 0
    %3207 = vmatprep.subr.bf16.mxu0 0
    %3208 = vmatpush2.bf16.msra.mxu0 0
    %3209 = vmatprep.subr.bf16.mxu0 0
    %3210 = vmatpush2.bf16.msra.mxu0 0
    %3211 = vmatprep.subr.bf16.mxu0 0
    %3212 = vmatpush2.bf16.msra.mxu0 0
    %3213 = vmatprep.subr.bf16.mxu0 0
    %3214 = vmatpush2.bf16.msra.mxu0 0
    %3215 = vmatprep.subr.bf16.mxu0 0
    %3216 = vmatpush2.bf16.msra.mxu0 0
    %3217 = vmatprep.subr.bf16.mxu0 0
    %3218 = vmatpush2.bf16.msra.mxu0 0
    %3219 = vmatprep.mubr.bf16.mxu0 0
    %3220 = vmatmul.mubr.bf16.gmra.mxu0 %v3138
    %v3221 = vpop.f32.mrf.mxu0
    %v3222 = vadd.f32 %v2973, %v3221
    %v3223 = vpop.f32.mrf.mxu0
    %v3224 = vpop.f32.mrf.mxu0
    %v3225 = vpop.f32.mrf.mxu0
    %3226 = vdwg.mxu0
    %3227 = vst [vmem:[#allocation12] sm:$0x1] %v3222
    %v3228 = vld [vmem:[#allocation3 + $0x8] sm:$0xff]
    %3229 = vmatprep.subr.mxu0 0.0
    %3230 = vmatpush1.xpose.msra.mxu0 0.0
    %3231 = vmatprep.subr.mxu0 0.0
    %3232 = vmatpush1.xpose.msra.mxu0 0.0
    %3233 = vmatprep.subr.mxu0 0.0
    %3234 = vmatpush1.xpose.msra.mxu0 0.0
    %3235 = vmatprep.subr.mxu0 0.0
    %3236 = vmatpush1.xpose.msra.mxu0 0.0
    %3237 = vmatprep.subr.mxu0 0.0
    %3238 = vmatpush1.xpose.msra.mxu0 0.0
    %3239 = vmatprep.subr.mxu0 0.0
    %3240 = vmatpush1.xpose.msra.mxu0 0.0
    %3241 = vmatprep.subr.mxu0 0.0
    %3242 = vmatpush1.xpose.msra.mxu0 0.0
    %3243 = vmatprep.subr.mxu0 0.0
    %3244 = vmatpush1.xpose.msra.mxu0 0.0
    %3245 = vmatprep.subr.mxu0 0.0
    %3246 = vmatpush1.xpose.msra.mxu0 0.0
    %3247 = vmatprep.subr.mxu0 0.0
    %3248 = vmatpush1.xpose.msra.mxu0 0.0
    %3249 = vmatprep.subr.mxu0 0.0
    %3250 = vmatpush1.xpose.msra.mxu0 0.0
    %3251 = vmatprep.subr.mxu0 0.0
    %3252 = vmatpush1.xpose.msra.mxu0 0.0
    %3253 = vmatprep.subr.mxu0 0.0
    %3254 = vmatpush1.xpose.msra.mxu0 0.0
    %3255 = vmatprep.subr.mxu0 0.0
    %3256 = vmatpush1.xpose.msra.mxu0 0.0
    %3257 = vmatprep.subr.mxu0 0.0
    %3258 = vmatpush1.xpose.msra.mxu0 0.0
    %3259 = vmatprep.subr.mxu0 0.0
    %3260 = vmatpush1.xpose.msra.mxu0 %v3228
    %3261 = vmatprep.subr.mxu0 0.0
    %3262 = vmatpush2.xpose.msra.mxu0 0.0
    %3263 = vmatprep.subr.mxu0 0.0
    %3264 = vmatpush2.xpose.msra.mxu0 0.0
    %3265 = vmatprep.subr.mxu0 0.0
    %3266 = vmatpush2.xpose.msra.mxu0 0.0
    %3267 = vmatprep.subr.mxu0 0.0
    %3268 = vmatpush2.xpose.msra.mxu0 0.0
    %3269 = vmatprep.subr.mxu0 0.0
    %3270 = vmatpush2.xpose.msra.mxu0 0.0
    %3271 = vmatprep.subr.mxu0 0.0
    %3272 = vmatpush2.xpose.msra.mxu0 0.0
    %3273 = vmatprep.subr.mxu0 0.0
    %3274 = vmatpush2.xpose.msra.mxu0 0.0
    %3275 = vmatprep.subr.mxu0 0.0
    %3276 = vmatpush2.xpose.msra.mxu0 0.0
    %3277 = vmatprep.subr.mxu0 0.0
    %3278 = vmatpush2.xpose.msra.mxu0 0.0
    %3279 = vmatprep.subr.mxu0 0.0
    %3280 = vmatpush2.xpose.msra.mxu0 0.0
    %3281 = vmatprep.subr.mxu0 0.0
    %3282 = vmatpush2.xpose.msra.mxu0 0.0
    %3283 = vmatprep.subr.mxu0 0.0
    %3284 = vmatpush2.xpose.msra.mxu0 0.0
    %3285 = vmatprep.subr.mxu0 0.0
    %3286 = vmatpush2.xpose.msra.mxu0 0.0
    %3287 = vmatprep.subr.mxu0 0.0
    %3288 = vmatpush2.xpose.msra.mxu0 0.0
    %3289 = vmatprep.subr.mxu0 0.0
    %3290 = vmatpush2.xpose.msra.mxu0 0.0
    %3291 = vmatprep.subr.mxu0 0.0
    %3292 = vmatpush2.xpose.msra.mxu0 0.0
    %3293 = vmatprep.mubr.f32.mxu0 0.0
    %3294 = vmatmul.mubr.f32.gmra.mxu0 %v3228
    %v3295 = vpop.f32.mrf.mxu0
    %v3296 = vadd.f32 0.0, %v3295
    %v3297 = vpop.f32.mrf.mxu0
    %3298 = vdwg.mxu0
    %v3299 = vsel %vm3045, %v3296, -inf
    %3300 = vmax.xlane.f32.xlu0 %v3299
    %v3301 = vpop.xlane.xlu0 %3300
    %v3302 = vsub.f32 %v3296, %v3301
    %v3303 = vmul.f32 %v3302, 1.442695
    %v3304 = vpow.pop %v3303
    %v3305 = vsel %vm3045, %v3304, 0.0
    %3306 = vadd.xlane.f32.xlu0 %v3305
    %v3307 = vpop.xlane.xlu0 %3306
    %v3308 = vrcp.pop %v3307
    %v3309 = vmul.f32 %v3304, %v3308
    %v3310 = vsel %vm3045, %v3309, 0.0
    %v3311 = vrot.slane %v3310, 4
    %v3312 = vadd.f32 %v3310, %v3311
    %v3313 = vrot.slane %v3312, 2
    %v3314 = vadd.f32 %v3312, %v3313
    %v3315 = vrot.slane %v3314, 1
    %v3316 = vadd.f32 %v3314, %v3315
    %v3317 = vmul.f32 %v3316, 0.125
    %v3319 = vsel %vm3045, %v3317, 0
    %3321 = vmatprep.subr.mxu0 0.0
    %3322 = vmatpush1.msra.mxu0 0.0
    %3323 = vmatprep.subr.mxu0 0.0
    %3324 = vmatpush1.msra.mxu0 0.0
    %3325 = vmatprep.subr.mxu0 0.0
    %3326 = vmatpush1.msra.mxu0 0.0
    %3327 = vmatprep.subr.mxu0 0.0
    %3328 = vmatpush1.msra.mxu0 0.0
    %3329 = vmatprep.subr.mxu0 0.0
    %3330 = vmatpush1.msra.mxu0 0.0
    %3331 = vmatprep.subr.mxu0 0.0
    %3332 = vmatpush1.msra.mxu0 0.0
    %3333 = vmatprep.subr.mxu0 0.0
    %3334 = vmatpush1.msra.mxu0 0.0
    %3335 = vmatprep.subr.mxu0 0.0
    %3336 = vmatpush1.msra.mxu0 0.0
    %3337 = vmatprep.subr.mxu0 0.0
    %3338 = vmatpush1.msra.mxu0 0.0
    %3339 = vmatprep.subr.mxu0 0.0
    %3340 = vmatpush1.msra.mxu0 0.0
    %3341 = vmatprep.subr.mxu0 0.0
    %3342 = vmatpush1.msra.mxu0 0.0
    %3343 = vmatprep.subr.mxu0 0.0
    %3344 = vmatpush1.msra.mxu0 0.0
    %3345 = vmatprep.subr.mxu0 0.0
    %3346 = vmatpush1.msra.mxu0 0.0
    %3347 = vmatprep.subr.mxu0 0.0
    %3348 = vmatpush1.msra.mxu0 0.0
    %3349 = vmatprep.subr.mxu0 0.0
    %3350 = vmatpush1.msra.mxu0 0.0
    %3351 = vmatprep.subr.mxu0 0.0
    %3352 = vmatpush1.msra.mxu0 %v3228
    %3353 = vmatprep.subr.mxu0 0.0
    %3354 = vmatpush2.msra.mxu0 0.0
    %3355 = vmatprep.subr.mxu0 0.0
    %3356 = vmatpush2.msra.mxu0 0.0
    %3357 = vmatprep.subr.mxu0 0.0
    %3358 = vmatpush2.msra.mxu0 0.0
    %3359 = vmatprep.subr.mxu0 0.0
    %3360 = vmatpush2.msra.mxu0 0.0
    %3361 = vmatprep.subr.mxu0 0.0
    %3362 = vmatpush2.msra.mxu0 0.0
    %3363 = vmatprep.subr.mxu0 0.0
    %3364 = vmatpush2.msra.mxu0 0.0
    %3365 = vmatprep.subr.mxu0 0.0
    %3366 = vmatpush2.msra.mxu0 0.0
    %3367 = vmatprep.subr.mxu0 0.0
    %3368 = vmatpush2.msra.mxu0 0.0
    %3369 = vmatprep.subr.mxu0 0.0
    %3370 = vmatpush2.msra.mxu0 0.0
    %3371 = vmatprep.subr.mxu0 0.0
    %3372 = vmatpush2.msra.mxu0 0.0
    %3373 = vmatprep.subr.mxu0 0.0
    %3374 = vmatpush2.msra.mxu0 0.0
    %3375 = vmatprep.subr.mxu0 0.0
    %3376 = vmatpush2.msra.mxu0 0.0
    %3377 = vmatprep.subr.mxu0 0.0
    %3378 = vmatpush2.msra.mxu0 0.0
    %3379 = vmatprep.subr.mxu0 0.0
    %3380 = vmatpush2.msra.mxu0 0.0
    %3381 = vmatprep.subr.mxu0 0.0
    %3382 = vmatpush2.msra.mxu0 0.0
    %3383 = vmatprep.subr.mxu0 0.0
    %3384 = vmatpush2.msra.mxu0 0.0
    %3385 = vmatprep.mubr.f32.mxu0 0.0
    %3386 = vmatmul.mubr.f32.gmra.mxu0 %v3319
    %v3387 = vpop.f32.mrf.mxu0
    %v3388 = vadd.f32 0.0, %v3387
    %v3389 = vpop.f32.mrf.mxu0
    %3390 = vdwg.mxu0
    %v3391 = vpack.c.bf16 %v3388, %v3388
    %3392 = vmatprep.subr.bf16.mxu0 0
    %3393 = vmatpush1.bf16.msra.mxu0 %v3178
    %3394 = vmatprep.subr.bf16.mxu0 0
    %3395 = vmatpush1.bf16.msra.mxu0 %v3177
    %3396 = vmatprep.subr.bf16.mxu0 0
    %3397 = vmatpush1.bf16.msra.mxu0 %v3176
    %3398 = vmatprep.subr.bf16.mxu0 0
    %3399 = vmatpush1.bf16.msra.mxu0 %v3175
    %3400 = vmatprep.subr.bf16.mxu0 0
    %3401 = vmatpush1.bf16.msra.mxu0 %v3174
    %3402 = vmatprep.subr.bf16.mxu0 0
    %3403 = vmatpush1.bf16.msra.mxu0 %v3173
    %3404 = vmatprep.subr.bf16.mxu0 0
    %3405 = vmatpush1.bf16.msra.mxu0 %v3172
    %3406 = vmatprep.subr.bf16.mxu0 0
    %3407 = vmatpush1.bf16.msra.mxu0 %v3171
    %3408 = vmatprep.subr.bf16.mxu0 0
    %3409 = vmatpush2.bf16.msra.mxu0 0
    %3410 = vmatprep.subr.bf16.mxu0 0
    %3411 = vmatpush2.bf16.msra.mxu0 0
    %3412 = vmatprep.subr.bf16.mxu0 0
    %3413 = vmatpush2.bf16.msra.mxu0 0
    %3414 = vmatprep.subr.bf16.mxu0 0
    %3415 = vmatpush2.bf16.msra.mxu0 0
    %3416 = vmatprep.subr.bf16.mxu0 0
    %3417 = vmatpush2.bf16.msra.mxu0 0
    %3418 = vmatprep.subr.bf16.mxu0 0
    %3419 = vmatpush2.bf16.msra.mxu0 0
    %3420 = vmatprep.subr.bf16.mxu0 0
    %3421 = vmatpush2.bf16.msra.mxu0 0
    %3422 = vmatprep.subr.bf16.mxu0 0
    %3423 = vmatpush2.bf16.msra.mxu0 0
    %3424 = vmatprep.mubr.bf16.mxu0 0
    %3425 = vmatmul.mubr.bf16.gmra.mxu0 %v3391
    %v3426 = vpop.f32.mrf.mxu0
    %v3427 = vadd.f32 %v2973, %v3426
    %v3428 = vpop.f32.mrf.mxu0
    %v3429 = vpop.f32.mrf.mxu0
    %v3430 = vpop.f32.mrf.mxu0
    %3431 = vdwg.mxu0
    %3432 = vst [vmem:[#allocation12 + $0x1] sm:$0x1] %v3427
    // Predicated region
    $region54: #{forward.1} parent=1 // pred_check
      _
    $region55: #{forward.1} parent=1 // pred_check_branch
      %3434 = sbr.rel (0) target = $region57
    $region56: #{forward.1} parent=1 // pred_region
      %s3436 = ssub.s32 32, 32
      %3437 = vsyncadd [#allocation6], %s3436
      %s3439 = sshll.u32 [#allocation12], 4
      %s3440 = int_to_ptr.vmem [resolvable:$true] %s3439
      %3442 = dma.vmem_to_hbm [thread:$0]  %s3440, 32, %s9, [#allocation6]
    $region57: #{forward.1} parent=1 // pred_fallthru
      _
    // Predicated region
    $region58: #{forward.1} parent=1 // pred_check
      _
    $region59: #{forward.1} parent=1 // pred_check_branch
      %3444 = sbr.rel (0) target = $region61
    $region60: #{forward.1} parent=1 // pred_region
      %3445 = dma.done [#allocation6], 32
    $region61: #{forward.1} parent=1 // pred_fallthru
      _
    %3446 = vsyncpa [#allocation5], 1
    %3447 = vsyncpa [#allocation8], 1
    %3448 = vsyncpa [#allocation11], 1
    %3449 = vsyncpa [#allocation6], 1

</llo_original>
